<compile_context>
chip_gen: v7x
topology: tpu7x:2x2x1
jax: 0.10.0
libtpu: 0.0.40
codegen_flags: <defaults>
</compile_context>

<pallas_src>
import jax
import jax.numpy as jnp
from jax.experimental import pallas as pl
from jax.experimental.pallas import tpu as pltpu

H1, H2, H3, H4 = 256, 512, 720, 1024
H3_PAD = 768  # 720 rounded up to the 128-lane multiple


def _round_up(x, m):
    return (x + m - 1) // m * m


def _leaky_relu(v, slope=0.2):
    return jnp.where(v > 0, v, slope * v)


def _linear(h_f32, w_ref, b_ref):
    # bf16 operands feed the MXU; accumulation and bias add stay fp32.
    acc = jnp.dot(h_f32.astype(jnp.bfloat16), w_ref[...],
                  preferred_element_type=jnp.float32)
    return acc + b_ref[...]


def generator_kernel(x_ref,
                     w1_ref, b1_ref,
                     w2_ref, b2_ref,
                     w3_ref, b3_ref,
                     w4_ref, b4_ref,
                     w5_ref, b5_ref,
                     out_ref):
    h = x_ref[...]                                   # fp32 activations
    h = _leaky_relu(_linear(h, w1_ref, b1_ref))      # z_dim -> 256
    h = _leaky_relu(_linear(h, w2_ref, b2_ref))      # 256   -> 512
    h = _leaky_relu(_linear(h, w3_ref, b3_ref))      # 512   -> 768 (720 padded)
    h = _leaky_relu(_linear(h, w4_ref, b4_ref))      # 768   -> 1024
    out_ref[...] = jnp.tanh(_linear(h, w5_ref, b5_ref))  # 1024 -> out_pad


def init_generator_params(key, z_dim, out_dim):
    """Deterministic PyTorch-style (uniform +-1/sqrt(fan_in)) init, true shapes."""
    dims = [z_dim, H1, H2, H3, H4, out_dim]
    params = []
    for i in range(len(dims) - 1):
        fan_in, fan_out = dims[i], dims[i + 1]
        key, kw, kb = jax.random.split(key, 3)
        bound = 1.0 / (fan_in ** 0.5)
        w = jax.random.uniform(kw, (fan_in, fan_out), jnp.float32, -bound, bound)
        b = jax.random.uniform(kb, (1, fan_out), jnp.float32, -bound, bound)
        params.append((w, b))
    return params


def pack_generator_params(params):
    """Zero-pad the 720 hidden dim -> 768 and out_dim -> mult of 128; cast W to bf16."""
    (w1, b1), (w2, b2), (w3, b3), (w4, b4), (w5, b5) = params
    out_dim = w5.shape[1]
    out_pad = _round_up(out_dim, 128)

    def pad2(a, rows, cols):
        return jnp.pad(a, ((0, rows - a.shape[0]), (0, cols - a.shape[1])))

    w3p = pad2(w3, w3.shape[0], H3_PAD)   # pad output cols 720 -> 768
    b3p = pad2(b3, 1, H3_PAD)
    w4p = pad2(w4, H3_PAD, w4.shape[1])   # pad K rows 720 -> 768 (zeros -> no effect)
    w5p = pad2(w5, w5.shape[0], out_pad)  # pad output cols -> lane-dense store
    b5p = pad2(b5, 1, out_pad)

    weights = [w1, w2, w3p, w4p, w5p]
    biases = [b1, b2, b3p, b4, b5p]
    flat = []
    for w, b in zip(weights, biases):
        flat.append(w.astype(jnp.bfloat16))  # halves weight HBM->VMEM bytes
        flat.append(b.astype(jnp.float32))   # biases stay fp32 (tiny)
    return flat


def generator_forward(x, packed_params, out_dim):
    """x: (B, z_dim) float32; packed_params: output of pack_generator_params."""
    B, z_dim = x.shape
    out_pad = packed_params[-1].shape[1]  # padded b5 width

    # Batch tiling: stream activations, keep weights VMEM-resident across tiles.
    tile_b = 128 if B >= 128 else _round_up(B, 8)
    b_pad = _round_up(B, tile_b)
    if b_pad != B:
        x = jnp.pad(x, ((0, b_pad - B), (0, 0)))
    grid = (b_pad // tile_b,)

    x_spec = pl.BlockSpec((tile_b, z_dim), lambda i: (i, 0))
    param_specs = [pl.BlockSpec(p.shape, lambda i: (0, 0)) for p in packed_params]
    out_spec = pl.BlockSpec((tile_b, out_pad), lambda i: (i, 0))

    weight_bytes = sum(int(p.size) * p.dtype.itemsize for p in packed_params)
    flops = 2 * b_pad * (z_dim * H1 + H1 * H2 + H2 * H3_PAD + H3_PAD * H4
                         + H4 * out_pad)
    bytes_accessed = (weight_bytes
                      + int(x.size) * x.dtype.itemsize
                      + b_pad * out_pad * 4)
    cost = pl.CostEstimate(flops=flops,
                           transcendentals=b_pad * out_pad,
                           bytes_accessed=bytes_accessed)

    out = pl.pallas_call(
        generator_kernel,
        out_shape=jax.ShapeDtypeStruct((b_pad, out_pad), jnp.float32),
        grid=grid,
        in_specs=[x_spec] + param_specs,
        out_specs=out_spec,
        compiler_params=pltpu.CompilerParams(
            dimension_semantics=("parallel",)),
        cost_estimate=cost,
    )(x, *packed_params)
    return out[:B, :out_dim]


def generator_ref(x, params):
    """Pure-JAX fp32 reference for correctness checking."""
    h = x
    n = len(params)
    for i, (w, b) in enumerate(params):
        h = h @ w + b
        if i < n - 1:
            h = jnp.where(h > 0, h, 0.2 * h)
        else:
            h = jnp.tanh(h)
    return h


if __name__ == "__main__":
    B, Z_DIM, OUT_DIM = 8, 32, 64

    key = jax.random.PRNGKey(0)
    key, kx = jax.random.split(key)
    x = jax.random.normal(kx, (B, Z_DIM), jnp.float32)
    params = init_generator_params(key, Z_DIM, OUT_DIM)
    packed = pack_generator_params(params)

    out = generator_forward(x, packed, OUT_DIM)
    out = jax.block_until_ready(out)

    ref = generator_ref(x, params)
    assert out.shape == (B, OUT_DIM), out.shape
    # bf16 weight storage -> loosened tolerance vs the fp32 reference.
    assert jnp.allclose(out, ref, atol=5e-2, rtol=5e-2), "mismatch vs reference"

    print("KERNEL_OK")
</pallas_src>

<mosaic_0001>
module attributes {stable_mosaic.version = 11 : i64} {
  func.func @generator_kernel(%arg0: i32, %arg1: memref<8x32xf32, #tpu.memory_space<vmem>>, %arg2: memref<32x256xbf16, #tpu.memory_space<vmem>>, %arg3: memref<1x256xf32, #tpu.memory_space<vmem>>, %arg4: memref<256x512xbf16, #tpu.memory_space<vmem>>, %arg5: memref<1x512xf32, #tpu.memory_space<vmem>>, %arg6: memref<512x768xbf16, #tpu.memory_space<vmem>>, %arg7: memref<1x768xf32, #tpu.memory_space<vmem>>, %arg8: memref<768x1024xbf16, #tpu.memory_space<vmem>>, %arg9: memref<1x1024xf32, #tpu.memory_space<vmem>>, %arg10: memref<1024x128xbf16, #tpu.memory_space<vmem>>, %arg11: memref<1x128xf32, #tpu.memory_space<vmem>>, %arg12: memref<8x128xf32, #tpu.memory_space<vmem>>) attributes {dimension_semantics = [#tpu.dimension_semantics<parallel>], iteration_bounds = array<i64: 1>, scalar_prefetch = 0 : i64, scratch_operands = 0 : i64, tpu.core_type = #tpu.core_type<tc>, window_params = [{transform_indices = @transform_0, window_bounds = array<i64: 8, 32>}, {pipeline_mode = #tpu.pipeline_mode<synchronous>, transform_indices = @transform_1, window_bounds = array<i64: 32, 256>}, {pipeline_mode = #tpu.pipeline_mode<synchronous>, transform_indices = @transform_2, window_bounds = array<i64: 1, 256>}, {pipeline_mode = #tpu.pipeline_mode<synchronous>, transform_indices = @transform_3, window_bounds = array<i64: 256, 512>}, {pipeline_mode = #tpu.pipeline_mode<synchronous>, transform_indices = @transform_4, window_bounds = array<i64: 1, 512>}, {pipeline_mode = #tpu.pipeline_mode<synchronous>, transform_indices = @transform_5, window_bounds = array<i64: 512, 768>}, {pipeline_mode = #tpu.pipeline_mode<synchronous>, transform_indices = @transform_6, window_bounds = array<i64: 1, 768>}, {pipeline_mode = #tpu.pipeline_mode<synchronous>, transform_indices = @transform_7, window_bounds = array<i64: 768, 1024>}, {pipeline_mode = #tpu.pipeline_mode<synchronous>, transform_indices = @transform_8, window_bounds = array<i64: 1, 1024>}, {pipeline_mode = #tpu.pipeline_mode<synchronous>, transform_indices = @transform_9, window_bounds = array<i64: 1024, 128>}, {pipeline_mode = #tpu.pipeline_mode<synchronous>, transform_indices = @transform_10, window_bounds = array<i64: 1, 128>}, {transform_indices = @transform_11, window_bounds = array<i64: 8, 128>}]} {
    %c0 = arith.constant 0 : index
    %c0_0 = arith.constant 0 : index
    %0 = vector.load %arg1[%c0, %c0_0] : memref<8x32xf32, #tpu.memory_space<vmem>>, vector<8x32xf32>
    %1 = arith.truncf %0 : vector<8x32xf32> to vector<8x32xbf16>
    %c0_1 = arith.constant 0 : index
    %c0_2 = arith.constant 0 : index
    %2 = vector.load %arg2[%c0_1, %c0_2] : memref<32x256xbf16, #tpu.memory_space<vmem>>, vector<32x256xbf16>
    %cst = arith.constant dense<0.000000e+00> : vector<8x256xf32>
    %3 = tpu.matmul %1, %2, %cst {dimension_numbers = #tpu.dot_dimension_numbers<[1], [0], [0], [1], [0, 0, 1, 1], [], []>} : vector<8x32xbf16>, vector<32x256xbf16>, vector<8x256xf32> -> vector<8x256xf32>
    %c0_3 = arith.constant 0 : index
    %c0_4 = arith.constant 0 : index
    %4 = vector.load %arg3[%c0_3, %c0_4] : memref<1x256xf32, #tpu.memory_space<vmem>>, vector<1x256xf32>
    %5 = vector.broadcast %4 : vector<1x256xf32> to vector<8x256xf32>
    %6 = arith.addf %3, %5 : vector<8x256xf32>
    %cst_5 = arith.constant 0.000000e+00 : f32
    %7 = vector.broadcast %cst_5 : f32 to vector<8x256xf32>
    %8 = arith.cmpf ogt, %6, %7 : vector<8x256xf32>
    %cst_6 = arith.constant 2.000000e-01 : f32
    %9 = vector.broadcast %cst_6 : f32 to vector<8x256xf32>
    %10 = arith.mulf %9, %6 : vector<8x256xf32>
    %11 = arith.select %8, %6, %10 : vector<8x256xi1>, vector<8x256xf32>
    %12 = arith.truncf %11 : vector<8x256xf32> to vector<8x256xbf16>
    %c0_7 = arith.constant 0 : index
    %c0_8 = arith.constant 0 : index
    %13 = vector.load %arg4[%c0_7, %c0_8] : memref<256x512xbf16, #tpu.memory_space<vmem>>, vector<256x512xbf16>
    %cst_9 = arith.constant dense<0.000000e+00> : vector<8x512xf32>
    %14 = tpu.matmul %12, %13, %cst_9 {dimension_numbers = #tpu.dot_dimension_numbers<[1], [0], [0], [1], [0, 0, 1, 1], [], []>} : vector<8x256xbf16>, vector<256x512xbf16>, vector<8x512xf32> -> vector<8x512xf32>
    %c0_10 = arith.constant 0 : index
    %c0_11 = arith.constant 0 : index
    %15 = vector.load %arg5[%c0_10, %c0_11] : memref<1x512xf32, #tpu.memory_space<vmem>>, vector<1x512xf32>
    %16 = vector.broadcast %15 : vector<1x512xf32> to vector<8x512xf32>
    %17 = arith.addf %14, %16 : vector<8x512xf32>
    %cst_12 = arith.constant 0.000000e+00 : f32
    %18 = vector.broadcast %cst_12 : f32 to vector<8x512xf32>
    %19 = arith.cmpf ogt, %17, %18 : vector<8x512xf32>
    %cst_13 = arith.constant 2.000000e-01 : f32
    %20 = vector.broadcast %cst_13 : f32 to vector<8x512xf32>
    %21 = arith.mulf %20, %17 : vector<8x512xf32>
    %22 = arith.select %19, %17, %21 : vector<8x512xi1>, vector<8x512xf32>
    %23 = arith.truncf %22 : vector<8x512xf32> to vector<8x512xbf16>
    %c0_14 = arith.constant 0 : index
    %c0_15 = arith.constant 0 : index
    %24 = vector.load %arg6[%c0_14, %c0_15] : memref<512x768xbf16, #tpu.memory_space<vmem>>, vector<512x768xbf16>
    %cst_16 = arith.constant dense<0.000000e+00> : vector<8x768xf32>
    %25 = tpu.matmul %23, %24, %cst_16 {dimension_numbers = #tpu.dot_dimension_numbers<[1], [0], [0], [1], [0, 0, 1, 1], [], []>} : vector<8x512xbf16>, vector<512x768xbf16>, vector<8x768xf32> -> vector<8x768xf32>
    %c0_17 = arith.constant 0 : index
    %c0_18 = arith.constant 0 : index
    %26 = vector.load %arg7[%c0_17, %c0_18] : memref<1x768xf32, #tpu.memory_space<vmem>>, vector<1x768xf32>
    %27 = vector.broadcast %26 : vector<1x768xf32> to vector<8x768xf32>
    %28 = arith.addf %25, %27 : vector<8x768xf32>
    %cst_19 = arith.constant 0.000000e+00 : f32
    %29 = vector.broadcast %cst_19 : f32 to vector<8x768xf32>
    %30 = arith.cmpf ogt, %28, %29 : vector<8x768xf32>
    %cst_20 = arith.constant 2.000000e-01 : f32
    %31 = vector.broadcast %cst_20 : f32 to vector<8x768xf32>
    %32 = arith.mulf %31, %28 : vector<8x768xf32>
    %33 = arith.select %30, %28, %32 : vector<8x768xi1>, vector<8x768xf32>
    %34 = arith.truncf %33 : vector<8x768xf32> to vector<8x768xbf16>
    %c0_21 = arith.constant 0 : index
    %c0_22 = arith.constant 0 : index
    %35 = vector.load %arg8[%c0_21, %c0_22] : memref<768x1024xbf16, #tpu.memory_space<vmem>>, vector<768x1024xbf16>
    %cst_23 = arith.constant dense<0.000000e+00> : vector<8x1024xf32>
    %36 = tpu.matmul %34, %35, %cst_23 {dimension_numbers = #tpu.dot_dimension_numbers<[1], [0], [0], [1], [0, 0, 1, 1], [], []>} : vector<8x768xbf16>, vector<768x1024xbf16>, vector<8x1024xf32> -> vector<8x1024xf32>
    %c0_24 = arith.constant 0 : index
    %c0_25 = arith.constant 0 : index
    %37 = vector.load %arg9[%c0_24, %c0_25] : memref<1x1024xf32, #tpu.memory_space<vmem>>, vector<1x1024xf32>
    %38 = vector.broadcast %37 : vector<1x1024xf32> to vector<8x1024xf32>
    %39 = arith.addf %36, %38 : vector<8x1024xf32>
    %cst_26 = arith.constant 0.000000e+00 : f32
    %40 = vector.broadcast %cst_26 : f32 to vector<8x1024xf32>
    %41 = arith.cmpf ogt, %39, %40 : vector<8x1024xf32>
    %cst_27 = arith.constant 2.000000e-01 : f32
    %42 = vector.broadcast %cst_27 : f32 to vector<8x1024xf32>
    %43 = arith.mulf %42, %39 : vector<8x1024xf32>
    %44 = arith.select %41, %39, %43 : vector<8x1024xi1>, vector<8x1024xf32>
    %45 = arith.truncf %44 : vector<8x1024xf32> to vector<8x1024xbf16>
    %c0_28 = arith.constant 0 : index
    %c0_29 = arith.constant 0 : index
    %46 = vector.load %arg10[%c0_28, %c0_29] : memref<1024x128xbf16, #tpu.memory_space<vmem>>, vector<1024x128xbf16>
    %cst_30 = arith.constant dense<0.000000e+00> : vector<8x128xf32>
    %47 = tpu.matmul %45, %46, %cst_30 {dimension_numbers = #tpu.dot_dimension_numbers<[1], [0], [0], [1], [0, 0, 1, 1], [], []>} : vector<8x1024xbf16>, vector<1024x128xbf16>, vector<8x128xf32> -> vector<8x128xf32>
    %c0_31 = arith.constant 0 : index
    %c0_32 = arith.constant 0 : index
    %48 = vector.load %arg11[%c0_31, %c0_32] : memref<1x128xf32, #tpu.memory_space<vmem>>, vector<1x128xf32>
    %49 = vector.broadcast %48 : vector<1x128xf32> to vector<8x128xf32>
    %50 = arith.addf %47, %49 : vector<8x128xf32>
    %51 = math.tanh %50 : vector<8x128xf32>
    %c0_33 = arith.constant 0 : index
    %c0_34 = arith.constant 0 : index
    %52 = vector.load %arg12[%c0_33, %c0_34] : memref<8x128xf32, #tpu.memory_space<vmem>>, vector<8x128xf32>
    tpu.vector_store %arg12[%c0_33, %c0_34], %51 {strides = array<i32>} : memref<8x128xf32, #tpu.memory_space<vmem>>, vector<8x128xf32>,
    return
  }
  func.func @transform_0(%arg0: i32) -> (i32, i32) {
    %c0_i32 = arith.constant 0 : i32
    %c0_i32_0 = arith.constant 0 : i32
    return %arg0, %c0_i32 : i32, i32
  }
  func.func @transform_1(%arg0: i32) -> (i32, i32) {
    %c0_i32 = arith.constant 0 : i32
    %c0_i32_0 = arith.constant 0 : i32
    %c0_i32_1 = arith.constant 0 : i32
    return %c0_i32, %c0_i32_0 : i32, i32
  }
  func.func @transform_2(%arg0: i32) -> (i32, i32) {
    %c0_i32 = arith.constant 0 : i32
    %c0_i32_0 = arith.constant 0 : i32
    %c0_i32_1 = arith.constant 0 : i32
    return %c0_i32, %c0_i32_0 : i32, i32
  }
  func.func @transform_3(%arg0: i32) -> (i32, i32) {
    %c0_i32 = arith.constant 0 : i32
    %c0_i32_0 = arith.constant 0 : i32
    %c0_i32_1 = arith.constant 0 : i32
    return %c0_i32, %c0_i32_0 : i32, i32
  }
  func.func @transform_4(%arg0: i32) -> (i32, i32) {
    %c0_i32 = arith.constant 0 : i32
    %c0_i32_0 = arith.constant 0 : i32
    %c0_i32_1 = arith.constant 0 : i32
    return %c0_i32, %c0_i32_0 : i32, i32
  }
  func.func @transform_5(%arg0: i32) -> (i32, i32) {
    %c0_i32 = arith.constant 0 : i32
    %c0_i32_0 = arith.constant 0 : i32
    %c0_i32_1 = arith.constant 0 : i32
    return %c0_i32, %c0_i32_0 : i32, i32
  }
  func.func @transform_6(%arg0: i32) -> (i32, i32) {
    %c0_i32 = arith.constant 0 : i32
    %c0_i32_0 = arith.constant 0 : i32
    %c0_i32_1 = arith.constant 0 : i32
    return %c0_i32, %c0_i32_0 : i32, i32
  }
  func.func @transform_7(%arg0: i32) -> (i32, i32) {
    %c0_i32 = arith.constant 0 : i32
    %c0_i32_0 = arith.constant 0 : i32
    %c0_i32_1 = arith.constant 0 : i32
    return %c0_i32, %c0_i32_0 : i32, i32
  }
  func.func @transform_8(%arg0: i32) -> (i32, i32) {
    %c0_i32 = arith.constant 0 : i32
    %c0_i32_0 = arith.constant 0 : i32
    %c0_i32_1 = arith.constant 0 : i32
    return %c0_i32, %c0_i32_0 : i32, i32
  }
  func.func @transform_9(%arg0: i32) -> (i32, i32) {
    %c0_i32 = arith.constant 0 : i32
    %c0_i32_0 = arith.constant 0 : i32
    %c0_i32_1 = arith.constant 0 : i32
    return %c0_i32, %c0_i32_0 : i32, i32
  }
  func.func @transform_10(%arg0: i32) -> (i32, i32) {
    %c0_i32 = arith.constant 0 : i32
    %c0_i32_0 = arith.constant 0 : i32
    %c0_i32_1 = arith.constant 0 : i32
    return %c0_i32, %c0_i32_0 : i32, i32
  }
  func.func @transform_11(%arg0: i32) -> (i32, i32) {
    %c0_i32 = arith.constant 0 : i32
    %c0_i32_0 = arith.constant 0 : i32
    return %arg0, %c0_i32 : i32, i32
  }
}

</mosaic_0001>

<llo_original>
// kernel: tpu_custom_call.1
$region0: #{tpu_custom_call.1}
  #allocation0 [shape = 'u32[]', space=smem, size = 0x4, offset = 0x4, fixed_abs, tag = 'smem constant byte address 0x4 - core index']
  #allocation1 [shape = 'u32[144,128]{1,0:T(1,128)}', space=vmem, size = 0x12000, scoped, tag = 'internal scratch']
  %s0 = inlined_call_operand.hbm [shape: f32[8,32], index: 0, kind: input, shape index: {}]
  %s1 = inlined_call_operand.hbm [shape: bf16[32,256], index: 1, kind: input, shape index: {}]
  %s2 = inlined_call_operand.hbm [shape: f32[1,256], index: 2, kind: input, shape index: {}]
  %s3 = inlined_call_operand.hbm [shape: bf16[256,512], index: 3, kind: input, shape index: {}]
  %s4 = inlined_call_operand.hbm [shape: f32[1,512], index: 4, kind: input, shape index: {}]
  %s5 = inlined_call_operand.hbm [shape: bf16[512,768], index: 5, kind: input, shape index: {}]
  %s6 = inlined_call_operand.hbm [shape: f32[1,768], index: 6, kind: input, shape index: {}]
  %s7 = inlined_call_operand.hbm [shape: bf16[768,1024], index: 7, kind: input, shape index: {}]
  %s8 = inlined_call_operand.hbm [shape: f32[1,1024], index: 8, kind: input, shape index: {}]
  %s9 = inlined_call_operand.hbm [shape: bf16[1024,128], index: 9, kind: input, shape index: {}]
  %s10 = inlined_call_operand.hbm [shape: f32[1,128], index: 10, kind: input, shape index: {}]
  %s11 = inlined_call_operand.hbm [shape: f32[8,128], index: 11, kind: output, shape index: {}]
  %s12 = sld [smem:[#allocation0]]
  $region98: #{tpu_custom_call.1} parent=0
    _
  %s14 = ssub.s32 1, %s12
  %s15 = scalar_select 0, %s14, %s12
  $region1: #{tpu_custom_call.1} parent=0
    #allocation2 [shape = 'u8[4096]{0}', space=vmem, size = 0x1000, scoped, tag = 'input window, operand 0, single buffered']
    #allocation3 [shape = 's32[1]{0}', space=sflag, size = 0x4, scoped, tag = 'scoped memory for tpu_custom_call.1']
    #allocation4 [shape = 's32[1]{0}', space=sflag, size = 0x4, scoped, tag = 'scoped memory for tpu_custom_call.1']
    #allocation5 [shape = 'u8[16384]{0}', space=vmem, size = 0x4000, scoped, tag = 'input window, operand 1, single buffered']
    #allocation6 [shape = 's32[1]{0}', space=sflag, size = 0x4, scoped, tag = 'scoped memory for tpu_custom_call.1']
    #allocation7 [shape = 'u8[1024]{0}', space=vmem, size = 0x400, scoped, tag = 'input window, operand 2, single buffered']
    #allocation8 [shape = 'u8[262144]{0}', space=vmem, size = 0x40000, scoped, tag = 'input window, operand 3, single buffered']
    #allocation9 [shape = 's32[1]{0}', space=sflag, size = 0x4, scoped, tag = 'scoped memory for tpu_custom_call.1']
    #allocation10 [shape = 'u8[2048]{0}', space=vmem, size = 0x800, scoped, tag = 'input window, operand 4, single buffered']
    #allocation11 [shape = 'u8[786432]{0}', space=vmem, size = 0xc0000, scoped, tag = 'input window, operand 5, single buffered']
    #allocation12 [shape = 's32[1]{0}', space=sflag, size = 0x4, scoped, tag = 'scoped memory for tpu_custom_call.1']
    #allocation13 [shape = 'u8[3072]{0}', space=vmem, size = 0xc00, scoped, tag = 'input window, operand 6, single buffered']
    #allocation14 [shape = 'u8[1572864]{0}', space=vmem, size = 0x180000, scoped, tag = 'input window, operand 7, single buffered']
    #allocation15 [shape = 's32[1]{0}', space=sflag, size = 0x4, scoped, tag = 'scoped memory for tpu_custom_call.1']
    #allocation16 [shape = 'u8[4096]{0}', space=vmem, size = 0x1000, scoped, tag = 'input window, operand 8, single buffered']
    #allocation17 [shape = 'u8[262144]{0}', space=vmem, size = 0x40000, scoped, tag = 'input window, operand 9, single buffered']
    #allocation18 [shape = 's32[1]{0}', space=sflag, size = 0x4, scoped, tag = 'scoped memory for tpu_custom_call.1']
    #allocation19 [shape = 'u8[512]{0}', space=vmem, size = 0x400, scoped, tag = 'input window, operand 10, single buffered']
    #allocation20 [shape = 'u8[4096]{0}', space=vmem, size = 0x1000, scoped, tag = 'output window, operand 0, single buffered']
    %16 = vsyncpa [#allocation3], 0
    %17 = vsyncpa [#allocation6], 0
    %18 = vsyncpa [#allocation9], 0
    %19 = vsyncpa [#allocation12], 0
    %20 = vsyncpa [#allocation15], 0
    %21 = vsyncpa [#allocation18], 0
    %22 = vsyncpa [#allocation4], 0
    // Predicated region
    $region2: #{tpu_custom_call.1} parent=1 // pred_check
      _
    $region3: #{tpu_custom_call.1} parent=1 // pred_check_branch
      %24 = sbr.rel (0) target = $region5
    $region4: #{tpu_custom_call.1} parent=1 // pred_region
      %s26 = ssub.s32 128, 128
      %27 = vsyncadd [#allocation3], %s26
      %s29 = sshll.u32 [#allocation2], 4
      %s30 = int_to_ptr.vmem [resolvable:$true] %s29
      %32 = dma.hbm_to_vmem [thread:$0]  %s0, 128, %s30, [#allocation3]
    $region5: #{tpu_custom_call.1} parent=1 // pred_fallthru
      _
    // Predicated region
    $region6: #{tpu_custom_call.1} parent=1 // pred_check
      _
    $region7: #{tpu_custom_call.1} parent=1 // pred_check_branch
      %34 = sbr.rel (0) target = $region9
    $region8: #{tpu_custom_call.1} parent=1 // pred_region
      %s36 = ssub.s32 512, 512
      %37 = vsyncadd [#allocation6], %s36
      %s38 = sshll.u32 [#allocation5], 4
      %s39 = int_to_ptr.vmem [resolvable:$true] %s38
      %44 = dma.hbm_to_vmem [thread:$0]  %s1, 512, %s39, [#allocation6], 128, 128, 8
    $region9: #{tpu_custom_call.1} parent=1 // pred_fallthru
      _
    // Predicated region
    $region10: #{tpu_custom_call.1} parent=1 // pred_check
      _
    $region11: #{tpu_custom_call.1} parent=1 // pred_check_branch
      %46 = sbr.rel (0) target = $region13
    $region12: #{tpu_custom_call.1} parent=1 // pred_region
      %s48 = ssub.s32 32, 32
      %49 = vsyncadd [#allocation6], %s48
      %s51 = sshll.u32 [#allocation7], 4
      %s52 = int_to_ptr.vmem [resolvable:$true] %s51
      %54 = dma.hbm_to_vmem [thread:$0]  %s2, 32, %s52, [#allocation6]
    $region13: #{tpu_custom_call.1} parent=1 // pred_fallthru
      _
    // Predicated region
    $region14: #{tpu_custom_call.1} parent=1 // pred_check
      _
    $region15: #{tpu_custom_call.1} parent=1 // pred_check_branch
      %56 = sbr.rel (0) target = $region17
    $region16: #{tpu_custom_call.1} parent=1 // pred_region
      %s58 = ssub.s32 8192, 8192
      %59 = vsyncadd [#allocation9], %s58
      %s60 = sshll.u32 [#allocation8], 4
      %s61 = int_to_ptr.vmem [resolvable:$true] %s60
      %66 = dma.hbm_to_vmem [thread:$0]  %s3, 8192, %s61, [#allocation9], 256, 256, 16
    $region17: #{tpu_custom_call.1} parent=1 // pred_fallthru
      _
    // Predicated region
    $region18: #{tpu_custom_call.1} parent=1 // pred_check
      _
    $region19: #{tpu_custom_call.1} parent=1 // pred_check_branch
      %68 = sbr.rel (0) target = $region21
    $region20: #{tpu_custom_call.1} parent=1 // pred_region
      %s70 = ssub.s32 64, 64
      %71 = vsyncadd [#allocation9], %s70
      %s73 = sshll.u32 [#allocation10], 4
      %s74 = int_to_ptr.vmem [resolvable:$true] %s73
      %76 = dma.hbm_to_vmem [thread:$0]  %s4, 64, %s74, [#allocation9]
    $region21: #{tpu_custom_call.1} parent=1 // pred_fallthru
      _
    // Predicated region
    $region22: #{tpu_custom_call.1} parent=1 // pred_check
      _
    $region23: #{tpu_custom_call.1} parent=1 // pred_check_branch
      %78 = sbr.rel (0) target = $region25
    $region24: #{tpu_custom_call.1} parent=1 // pred_region
      %s80 = ssub.s32 24576, 24576
      %81 = vsyncadd [#allocation12], %s80
      %s82 = sshll.u32 [#allocation11], 4
      %s83 = int_to_ptr.vmem [resolvable:$true] %s82
      %88 = dma.hbm_to_vmem [thread:$0]  %s5, 24576, %s83, [#allocation12], 384, 384, 24
    $region25: #{tpu_custom_call.1} parent=1 // pred_fallthru
      _
    // Predicated region
    $region26: #{tpu_custom_call.1} parent=1 // pred_check
      _
    $region27: #{tpu_custom_call.1} parent=1 // pred_check_branch
      %90 = sbr.rel (0) target = $region29
    $region28: #{tpu_custom_call.1} parent=1 // pred_region
      %s92 = ssub.s32 96, 96
      %93 = vsyncadd [#allocation12], %s92
      %s95 = sshll.u32 [#allocation13], 4
      %s96 = int_to_ptr.vmem [resolvable:$true] %s95
      %98 = dma.hbm_to_vmem [thread:$0]  %s6, 96, %s96, [#allocation12]
    $region29: #{tpu_custom_call.1} parent=1 // pred_fallthru
      _
    // Predicated region
    $region30: #{tpu_custom_call.1} parent=1 // pred_check
      _
    $region31: #{tpu_custom_call.1} parent=1 // pred_check_branch
      %100 = sbr.rel (0) target = $region33
    $region32: #{tpu_custom_call.1} parent=1 // pred_region
      %s102 = ssub.s32 49152, 49152
      %103 = vsyncadd [#allocation15], %s102
      %s104 = sshll.u32 [#allocation14], 4
      %s105 = int_to_ptr.vmem [resolvable:$true] %s104
      %110 = dma.hbm_to_vmem [thread:$0]  %s7, 49152, %s105, [#allocation15], 512, 512, 32
    $region33: #{tpu_custom_call.1} parent=1 // pred_fallthru
      _
    // Predicated region
    $region34: #{tpu_custom_call.1} parent=1 // pred_check
      _
    $region35: #{tpu_custom_call.1} parent=1 // pred_check_branch
      %112 = sbr.rel (0) target = $region37
    $region36: #{tpu_custom_call.1} parent=1 // pred_region
      %s114 = ssub.s32 128, 128
      %115 = vsyncadd [#allocation15], %s114
      %s117 = sshll.u32 [#allocation16], 4
      %s118 = int_to_ptr.vmem [resolvable:$true] %s117
      %120 = dma.hbm_to_vmem [thread:$0]  %s8, 128, %s118, [#allocation15]
    $region37: #{tpu_custom_call.1} parent=1 // pred_fallthru
      _
    // Predicated region
    $region38: #{tpu_custom_call.1} parent=1 // pred_check
      _
    $region39: #{tpu_custom_call.1} parent=1 // pred_check_branch
      %122 = sbr.rel (0) target = $region41
    $region40: #{tpu_custom_call.1} parent=1 // pred_region
      %s124 = ssub.s32 8192, 8192
      %125 = vsyncadd [#allocation18], %s124
      %s126 = sshll.u32 [#allocation17], 4
      %s127 = int_to_ptr.vmem [resolvable:$true] %s126
      %132 = dma.hbm_to_vmem [thread:$0]  %s9, 8192, %s127, [#allocation18], 64, 64, 4
    $region41: #{tpu_custom_call.1} parent=1 // pred_fallthru
      _
    // Predicated region
    $region42: #{tpu_custom_call.1} parent=1 // pred_check
      _
    $region43: #{tpu_custom_call.1} parent=1 // pred_check_branch
      %134 = sbr.rel (0) target = $region45
    $region44: #{tpu_custom_call.1} parent=1 // pred_region
      %s136 = ssub.s32 16, 16
      %137 = vsyncadd [#allocation18], %s136
      %s139 = sshll.u32 [#allocation19], 4
      %s140 = int_to_ptr.vmem [resolvable:$true] %s139
      %142 = dma.hbm_to_vmem [thread:$0]  %s10, 16, %s140, [#allocation18]
    $region45: #{tpu_custom_call.1} parent=1 // pred_fallthru
      _
    // Predicated region
    $region46: #{tpu_custom_call.1} parent=1 // pred_check
      _
    $region47: #{tpu_custom_call.1} parent=1 // pred_check_branch
      %144 = sbr.rel (0) target = $region49
    $region48: #{tpu_custom_call.1} parent=1 // pred_region
      %145 = dma.done [#allocation3], 128
    $region49: #{tpu_custom_call.1} parent=1 // pred_fallthru
      _
    // Predicated region
    $region50: #{tpu_custom_call.1} parent=1 // pred_check
      _
    $region51: #{tpu_custom_call.1} parent=1 // pred_check_branch
      %147 = sbr.rel (0) target = $region53
    $region52: #{tpu_custom_call.1} parent=1 // pred_region
      %148 = dma.done [#allocation6], 512
    $region53: #{tpu_custom_call.1} parent=1 // pred_fallthru
      _
    // Predicated region
    $region54: #{tpu_custom_call.1} parent=1 // pred_check
      _
    $region55: #{tpu_custom_call.1} parent=1 // pred_check_branch
      %150 = sbr.rel (0) target = $region57
    $region56: #{tpu_custom_call.1} parent=1 // pred_region
      %151 = dma.done [#allocation6], 32
    $region57: #{tpu_custom_call.1} parent=1 // pred_fallthru
      _
    // Predicated region
    $region58: #{tpu_custom_call.1} parent=1 // pred_check
      _
    $region59: #{tpu_custom_call.1} parent=1 // pred_check_branch
      %153 = sbr.rel (0) target = $region61
    $region60: #{tpu_custom_call.1} parent=1 // pred_region
      %154 = dma.done [#allocation9], 8192
    $region61: #{tpu_custom_call.1} parent=1 // pred_fallthru
      _
    // Predicated region
    $region62: #{tpu_custom_call.1} parent=1 // pred_check
      _
    $region63: #{tpu_custom_call.1} parent=1 // pred_check_branch
      %156 = sbr.rel (0) target = $region65
    $region64: #{tpu_custom_call.1} parent=1 // pred_region
      %157 = dma.done [#allocation9], 64
    $region65: #{tpu_custom_call.1} parent=1 // pred_fallthru
      _
    // Predicated region
    $region66: #{tpu_custom_call.1} parent=1 // pred_check
      _
    $region67: #{tpu_custom_call.1} parent=1 // pred_check_branch
      %159 = sbr.rel (0) target = $region69
    $region68: #{tpu_custom_call.1} parent=1 // pred_region
      %160 = dma.done [#allocation12], 24576
    $region69: #{tpu_custom_call.1} parent=1 // pred_fallthru
      _
    // Predicated region
    $region70: #{tpu_custom_call.1} parent=1 // pred_check
      _
    $region71: #{tpu_custom_call.1} parent=1 // pred_check_branch
      %162 = sbr.rel (0) target = $region73
    $region72: #{tpu_custom_call.1} parent=1 // pred_region
      %163 = dma.done [#allocation12], 96
    $region73: #{tpu_custom_call.1} parent=1 // pred_fallthru
      _
    // Predicated region
    $region74: #{tpu_custom_call.1} parent=1 // pred_check
      _
    $region75: #{tpu_custom_call.1} parent=1 // pred_check_branch
      %165 = sbr.rel (0) target = $region77
    $region76: #{tpu_custom_call.1} parent=1 // pred_region
      %166 = dma.done [#allocation15], 49152
    $region77: #{tpu_custom_call.1} parent=1 // pred_fallthru
      _
    // Predicated region
    $region78: #{tpu_custom_call.1} parent=1 // pred_check
      _
    $region79: #{tpu_custom_call.1} parent=1 // pred_check_branch
      %168 = sbr.rel (0) target = $region81
    $region80: #{tpu_custom_call.1} parent=1 // pred_region
      %169 = dma.done [#allocation15], 128
    $region81: #{tpu_custom_call.1} parent=1 // pred_fallthru
      _
    // Predicated region
    $region82: #{tpu_custom_call.1} parent=1 // pred_check
      _
    $region83: #{tpu_custom_call.1} parent=1 // pred_check_branch
      %171 = sbr.rel (0) target = $region85
    $region84: #{tpu_custom_call.1} parent=1 // pred_region
      %172 = dma.done [#allocation18], 8192
    $region85: #{tpu_custom_call.1} parent=1 // pred_fallthru
      _
    // Predicated region
    $region86: #{tpu_custom_call.1} parent=1 // pred_check
      _
    $region87: #{tpu_custom_call.1} parent=1 // pred_check_branch
      %174 = sbr.rel (0) target = $region89
    $region88: #{tpu_custom_call.1} parent=1 // pred_region
      %175 = dma.done [#allocation18], 16
    $region89: #{tpu_custom_call.1} parent=1 // pred_fallthru
      _
    %v177 = vld [vmem:[#allocation2] sm:$0xff]
    %v178 = vpack.c.bf16 %v177, %v177
    %v179 = vld [vmem:[#allocation5] sm:$0xff]
    %v180 = vld [vmem:[#allocation5 + $0x8] sm:$0xff]
    %v181 = vld [vmem:[#allocation5 + $0x10] sm:$0xff]
    %v182 = vld [vmem:[#allocation5 + $0x18] sm:$0xff]
    %v183 = vld [vmem:[#allocation7] sm:$0x3]
    %v185 = vlaneseq
    %v186 = vshrl.u32 %v185, 7
    %v187 = vsub.s32 0, %v186
    %v188 = vrot.slane %v183, %v187
    %v189 = vlaneseq
    %v190 = vshrl.u32 %v189, 7
    %v191 = vsub.s32 1, %v190
    %v192 = vrot.slane %v183, %v191
    %v199 = vunpack.c.l.b16 %v179
    %v200 = vunpack.c.h.b16 %v179
    %v201 = vunpack.c.l.b16 %v180
    %v202 = vunpack.c.h.b16 %v180
    %v203 = vunpack.c.l.b16 %v181
    %v204 = vunpack.c.h.b16 %v181
    %v205 = vunpack.c.l.b16 %v182
    %v206 = vunpack.c.h.b16 %v182
    %v207 = vpack.c.b16 %v201, %v199
    %v208 = vpack.c.b16 %v202, %v200
    %v209 = vpack.c.b16 %v205, %v203
    %v210 = vpack.c.b16 %v206, %v204
    %vm215 = vcmask 261120
    %v217 = vsel %vm215, %v178, 0
    %219 = vmatprep.subr.bf16.mxu0 %v208
    %220 = vmatpush1.bf16.msra.mxu0 %v207
    %221 = vmatprep.subr.bf16.mxu0 %v210
    %222 = vmatpush1.bf16.msra.mxu0 %v209
    %223 = vmatprep.subr.bf16.mxu0 0
    %224 = vmatpush1.bf16.msra.mxu0 0
    %225 = vmatprep.subr.bf16.mxu0 0
    %226 = vmatpush1.bf16.msra.mxu0 0
    %227 = vmatprep.subr.bf16.mxu0 0
    %228 = vmatpush1.bf16.msra.mxu0 0
    %229 = vmatprep.subr.bf16.mxu0 0
    %230 = vmatpush1.bf16.msra.mxu0 0
    %231 = vmatprep.subr.bf16.mxu0 0
    %232 = vmatpush1.bf16.msra.mxu0 0
    %233 = vmatprep.subr.bf16.mxu0 0
    %234 = vmatpush1.bf16.msra.mxu0 0
    %235 = vmatprep.subr.bf16.mxu0 0
    %236 = vmatpush1.bf16.msra.mxu0 0
    %237 = vmatprep.subr.bf16.mxu0 0
    %238 = vmatpush1.bf16.msra.mxu0 0
    %239 = vmatprep.subr.bf16.mxu0 0
    %240 = vmatpush1.bf16.msra.mxu0 0
    %241 = vmatprep.subr.bf16.mxu0 0
    %242 = vmatpush1.bf16.msra.mxu0 0
    %243 = vmatprep.subr.bf16.mxu0 0
    %244 = vmatpush1.bf16.msra.mxu0 0
    %245 = vmatprep.subr.bf16.mxu0 0
    %246 = vmatpush1.bf16.msra.mxu0 0
    %247 = vmatprep.subr.bf16.mxu0 0
    %248 = vmatpush1.bf16.msra.mxu0 0
    %249 = vmatprep.subr.bf16.mxu0 0
    %250 = vmatpush1.bf16.msra.mxu0 0
    %251 = vmatprep.mubr.bf16.mxu0 0
    %252 = vmatmul.mubr.bf16.gmra.mrb[0].mxu0 %v217
    %v253 = vpop.f32.mrb[0].mxu0
    %v254 = vadd.f32 %v188, %v253
    %v255 = vpop.f32.mrb[0].mxu0
    %v256 = vadd.f32 %v192, %v255
    %v257 = vpop.f32.mrb[0].mxu0
    %v258 = vpop.f32.mrb[0].mxu0
    %259 = vdwg.mxu0
    %vm260 = vcmp.gt.f32.partialorder %v254, 0.0
    %vm261 = vcmp.gt.f32.partialorder %v256, 0.0
    %v262 = vmul.f32 %v254, 0.2
    %v263 = vmul.f32 %v256, 0.2
    %v264 = vsel %vm260, %v254, %v262
    %v265 = vsel %vm261, %v256, %v263
    %v266 = vpack.c.bf16 %v264, %v264
    %v267 = vpack.c.bf16 %v265, %v265
    %v268 = vld [vmem:[#allocation8] sm:$0xff]
    %v269 = vld [vmem:[#allocation8 + $0x8] sm:$0xff]
    %v270 = vld [vmem:[#allocation8 + $0x10] sm:$0xff]
    %v271 = vld [vmem:[#allocation8 + $0x18] sm:$0xff]
    %v272 = vld [vmem:[#allocation8 + $0x20] sm:$0xff]
    %v273 = vld [vmem:[#allocation8 + $0x28] sm:$0xff]
    %v274 = vld [vmem:[#allocation8 + $0x30] sm:$0xff]
    %v275 = vld [vmem:[#allocation8 + $0x38] sm:$0xff]
    %v276 = vld [vmem:[#allocation8 + $0x40] sm:$0xff]
    %v277 = vld [vmem:[#allocation8 + $0x48] sm:$0xff]
    %v278 = vld [vmem:[#allocation8 + $0x50] sm:$0xff]
    %v279 = vld [vmem:[#allocation8 + $0x58] sm:$0xff]
    %v280 = vld [vmem:[#allocation8 + $0x60] sm:$0xff]
    %v281 = vld [vmem:[#allocation8 + $0x68] sm:$0xff]
    %v282 = vld [vmem:[#allocation8 + $0x70] sm:$0xff]
    %v283 = vld [vmem:[#allocation8 + $0x78] sm:$0xff]
    %v284 = vld [vmem:[#allocation8 + $0x80] sm:$0xff]
    %v285 = vld [vmem:[#allocation8 + $0x88] sm:$0xff]
    %v286 = vld [vmem:[#allocation8 + $0x90] sm:$0xff]
    %v287 = vld [vmem:[#allocation8 + $0x98] sm:$0xff]
    %v288 = vld [vmem:[#allocation8 + $0xa0] sm:$0xff]
    %v289 = vld [vmem:[#allocation8 + $0xa8] sm:$0xff]
    %v290 = vld [vmem:[#allocation8 + $0xb0] sm:$0xff]
    %v291 = vld [vmem:[#allocation8 + $0xb8] sm:$0xff]
    %v292 = vld [vmem:[#allocation8 + $0xc0] sm:$0xff]
    %v293 = vld [vmem:[#allocation8 + $0xc8] sm:$0xff]
    %v294 = vld [vmem:[#allocation8 + $0xd0] sm:$0xff]
    %v295 = vld [vmem:[#allocation8 + $0xd8] sm:$0xff]
    %v296 = vld [vmem:[#allocation8 + $0xe0] sm:$0xff]
    %v297 = vld [vmem:[#allocation8 + $0xe8] sm:$0xff]
    %v298 = vld [vmem:[#allocation8 + $0xf0] sm:$0xff]
    %v299 = vld [vmem:[#allocation8 + $0xf8] sm:$0xff]
    %v300 = vld [vmem:[#allocation8 + $0x100] sm:$0xff]
    %v301 = vld [vmem:[#allocation8 + $0x108] sm:$0xff]
    %v302 = vld [vmem:[#allocation8 + $0x110] sm:$0xff]
    %v303 = vld [vmem:[#allocation8 + $0x118] sm:$0xff]
    %v304 = vld [vmem:[#allocation8 + $0x120] sm:$0xff]
    %v305 = vld [vmem:[#allocation8 + $0x128] sm:$0xff]
    %v306 = vld [vmem:[#allocation8 + $0x130] sm:$0xff]
    %v307 = vld [vmem:[#allocation8 + $0x138] sm:$0xff]
    %v308 = vld [vmem:[#allocation8 + $0x140] sm:$0xff]
    %v309 = vld [vmem:[#allocation8 + $0x148] sm:$0xff]
    %v310 = vld [vmem:[#allocation8 + $0x150] sm:$0xff]
    %v311 = vld [vmem:[#allocation8 + $0x158] sm:$0xff]
    %v312 = vld [vmem:[#allocation8 + $0x160] sm:$0xff]
    %v313 = vld [vmem:[#allocation8 + $0x168] sm:$0xff]
    %v314 = vld [vmem:[#allocation8 + $0x170] sm:$0xff]
    %v315 = vld [vmem:[#allocation8 + $0x178] sm:$0xff]
    %v316 = vld [vmem:[#allocation8 + $0x180] sm:$0xff]
    %v317 = vld [vmem:[#allocation8 + $0x188] sm:$0xff]
    %v318 = vld [vmem:[#allocation8 + $0x190] sm:$0xff]
    %v319 = vld [vmem:[#allocation8 + $0x198] sm:$0xff]
    %v320 = vld [vmem:[#allocation8 + $0x1a0] sm:$0xff]
    %v321 = vld [vmem:[#allocation8 + $0x1a8] sm:$0xff]
    %v322 = vld [vmem:[#allocation8 + $0x1b0] sm:$0xff]
    %v323 = vld [vmem:[#allocation8 + $0x1b8] sm:$0xff]
    %v324 = vld [vmem:[#allocation8 + $0x1c0] sm:$0xff]
    %v325 = vld [vmem:[#allocation8 + $0x1c8] sm:$0xff]
    %v326 = vld [vmem:[#allocation8 + $0x1d0] sm:$0xff]
    %v327 = vld [vmem:[#allocation8 + $0x1d8] sm:$0xff]
    %v328 = vld [vmem:[#allocation8 + $0x1e0] sm:$0xff]
    %v329 = vld [vmem:[#allocation8 + $0x1e8] sm:$0xff]
    %v330 = vld [vmem:[#allocation8 + $0x1f0] sm:$0xff]
    %v331 = vld [vmem:[#allocation8 + $0x1f8] sm:$0xff]
    %v332 = vld [vmem:[#allocation10] sm:$0xf]
    %v334 = vlaneseq
    %v335 = vshrl.u32 %v334, 7
    %v336 = vsub.s32 0, %v335
    %v337 = vrot.slane %v332, %v336
    %v338 = vlaneseq
    %v339 = vshrl.u32 %v338, 7
    %v340 = vsub.s32 1, %v339
    %v341 = vrot.slane %v332, %v340
    %v342 = vlaneseq
    %v343 = vshrl.u32 %v342, 7
    %v344 = vsub.s32 2, %v343
    %v345 = vrot.slane %v332, %v344
    %v346 = vlaneseq
    %v347 = vshrl.u32 %v346, 7
    %v348 = vsub.s32 3, %v347
    %v349 = vrot.slane %v332, %v348
    %v418 = vunpack.c.l.b16 %v268
    %v419 = vunpack.c.h.b16 %v268
    %v420 = vunpack.c.l.b16 %v269
    %v421 = vunpack.c.h.b16 %v269
    %v422 = vunpack.c.l.b16 %v270
    %v423 = vunpack.c.h.b16 %v270
    %v424 = vunpack.c.l.b16 %v271
    %v425 = vunpack.c.h.b16 %v271
    %v426 = vunpack.c.l.b16 %v272
    %v427 = vunpack.c.h.b16 %v272
    %v428 = vunpack.c.l.b16 %v273
    %v429 = vunpack.c.h.b16 %v273
    %v430 = vunpack.c.l.b16 %v274
    %v431 = vunpack.c.h.b16 %v274
    %v432 = vunpack.c.l.b16 %v275
    %v433 = vunpack.c.h.b16 %v275
    %v434 = vunpack.c.l.b16 %v276
    %v435 = vunpack.c.h.b16 %v276
    %v436 = vunpack.c.l.b16 %v277
    %v437 = vunpack.c.h.b16 %v277
    %v438 = vunpack.c.l.b16 %v278
    %v439 = vunpack.c.h.b16 %v278
    %v440 = vunpack.c.l.b16 %v279
    %v441 = vunpack.c.h.b16 %v279
    %v442 = vunpack.c.l.b16 %v280
    %v443 = vunpack.c.h.b16 %v280
    %v444 = vunpack.c.l.b16 %v281
    %v445 = vunpack.c.h.b16 %v281
    %v446 = vunpack.c.l.b16 %v282
    %v447 = vunpack.c.h.b16 %v282
    %v448 = vunpack.c.l.b16 %v283
    %v449 = vunpack.c.h.b16 %v283
    %v450 = vunpack.c.l.b16 %v284
    %v451 = vunpack.c.h.b16 %v284
    %v452 = vunpack.c.l.b16 %v285
    %v453 = vunpack.c.h.b16 %v285
    %v454 = vunpack.c.l.b16 %v286
    %v455 = vunpack.c.h.b16 %v286
    %v456 = vunpack.c.l.b16 %v287
    %v457 = vunpack.c.h.b16 %v287
    %v458 = vunpack.c.l.b16 %v288
    %v459 = vunpack.c.h.b16 %v288
    %v460 = vunpack.c.l.b16 %v289
    %v461 = vunpack.c.h.b16 %v289
    %v462 = vunpack.c.l.b16 %v290
    %v463 = vunpack.c.h.b16 %v290
    %v464 = vunpack.c.l.b16 %v291
    %v465 = vunpack.c.h.b16 %v291
    %v466 = vunpack.c.l.b16 %v292
    %v467 = vunpack.c.h.b16 %v292
    %v468 = vunpack.c.l.b16 %v293
    %v469 = vunpack.c.h.b16 %v293
    %v470 = vunpack.c.l.b16 %v294
    %v471 = vunpack.c.h.b16 %v294
    %v472 = vunpack.c.l.b16 %v295
    %v473 = vunpack.c.h.b16 %v295
    %v474 = vunpack.c.l.b16 %v296
    %v475 = vunpack.c.h.b16 %v296
    %v476 = vunpack.c.l.b16 %v297
    %v477 = vunpack.c.h.b16 %v297
    %v478 = vunpack.c.l.b16 %v298
    %v479 = vunpack.c.h.b16 %v298
    %v480 = vunpack.c.l.b16 %v299
    %v481 = vunpack.c.h.b16 %v299
    %v482 = vunpack.c.l.b16 %v300
    %v483 = vunpack.c.h.b16 %v300
    %v484 = vunpack.c.l.b16 %v301
    %v485 = vunpack.c.h.b16 %v301
    %v486 = vunpack.c.l.b16 %v302
    %v487 = vunpack.c.h.b16 %v302
    %v488 = vunpack.c.l.b16 %v303
    %v489 = vunpack.c.h.b16 %v303
    %v490 = vunpack.c.l.b16 %v304
    %v491 = vunpack.c.h.b16 %v304
    %v492 = vunpack.c.l.b16 %v305
    %v493 = vunpack.c.h.b16 %v305
    %v494 = vunpack.c.l.b16 %v306
    %v495 = vunpack.c.h.b16 %v306
    %v496 = vunpack.c.l.b16 %v307
    %v497 = vunpack.c.h.b16 %v307
    %v498 = vunpack.c.l.b16 %v308
    %v499 = vunpack.c.h.b16 %v308
    %v500 = vunpack.c.l.b16 %v309
    %v501 = vunpack.c.h.b16 %v309
    %v502 = vunpack.c.l.b16 %v310
    %v503 = vunpack.c.h.b16 %v310
    %v504 = vunpack.c.l.b16 %v311
    %v505 = vunpack.c.h.b16 %v311
    %v506 = vunpack.c.l.b16 %v312
    %v507 = vunpack.c.h.b16 %v312
    %v508 = vunpack.c.l.b16 %v313
    %v509 = vunpack.c.h.b16 %v313
    %v510 = vunpack.c.l.b16 %v314
    %v511 = vunpack.c.h.b16 %v314
    %v512 = vunpack.c.l.b16 %v315
    %v513 = vunpack.c.h.b16 %v315
    %v514 = vunpack.c.l.b16 %v316
    %v515 = vunpack.c.h.b16 %v316
    %v516 = vunpack.c.l.b16 %v317
    %v517 = vunpack.c.h.b16 %v317
    %v518 = vunpack.c.l.b16 %v318
    %v519 = vunpack.c.h.b16 %v318
    %v520 = vunpack.c.l.b16 %v319
    %v521 = vunpack.c.h.b16 %v319
    %v522 = vunpack.c.l.b16 %v320
    %v523 = vunpack.c.h.b16 %v320
    %v524 = vunpack.c.l.b16 %v321
    %v525 = vunpack.c.h.b16 %v321
    %v526 = vunpack.c.l.b16 %v322
    %v527 = vunpack.c.h.b16 %v322
    %v528 = vunpack.c.l.b16 %v323
    %v529 = vunpack.c.h.b16 %v323
    %v530 = vunpack.c.l.b16 %v324
    %v531 = vunpack.c.h.b16 %v324
    %v532 = vunpack.c.l.b16 %v325
    %v533 = vunpack.c.h.b16 %v325
    %v534 = vunpack.c.l.b16 %v326
    %v535 = vunpack.c.h.b16 %v326
    %v536 = vunpack.c.l.b16 %v327
    %v537 = vunpack.c.h.b16 %v327
    %v538 = vunpack.c.l.b16 %v328
    %v539 = vunpack.c.h.b16 %v328
    %v540 = vunpack.c.l.b16 %v329
    %v541 = vunpack.c.h.b16 %v329
    %v542 = vunpack.c.l.b16 %v330
    %v543 = vunpack.c.h.b16 %v330
    %v544 = vunpack.c.l.b16 %v331
    %v545 = vunpack.c.h.b16 %v331
    %v546 = vpack.c.b16 %v422, %v418
    %v547 = vpack.c.b16 %v423, %v419
    %v548 = vpack.c.b16 %v424, %v420
    %v549 = vpack.c.b16 %v425, %v421
    %v550 = vpack.c.b16 %v430, %v426
    %v551 = vpack.c.b16 %v431, %v427
    %v552 = vpack.c.b16 %v432, %v428
    %v553 = vpack.c.b16 %v433, %v429
    %v554 = vpack.c.b16 %v438, %v434
    %v555 = vpack.c.b16 %v439, %v435
    %v556 = vpack.c.b16 %v440, %v436
    %v557 = vpack.c.b16 %v441, %v437
    %v558 = vpack.c.b16 %v446, %v442
    %v559 = vpack.c.b16 %v447, %v443
    %v560 = vpack.c.b16 %v448, %v444
    %v561 = vpack.c.b16 %v449, %v445
    %v562 = vpack.c.b16 %v454, %v450
    %v563 = vpack.c.b16 %v455, %v451
    %v564 = vpack.c.b16 %v456, %v452
    %v565 = vpack.c.b16 %v457, %v453
    %v566 = vpack.c.b16 %v462, %v458
    %v567 = vpack.c.b16 %v463, %v459
    %v568 = vpack.c.b16 %v464, %v460
    %v569 = vpack.c.b16 %v465, %v461
    %v570 = vpack.c.b16 %v470, %v466
    %v571 = vpack.c.b16 %v471, %v467
    %v572 = vpack.c.b16 %v472, %v468
    %v573 = vpack.c.b16 %v473, %v469
    %v574 = vpack.c.b16 %v478, %v474
    %v575 = vpack.c.b16 %v479, %v475
    %v576 = vpack.c.b16 %v480, %v476
    %v577 = vpack.c.b16 %v481, %v477
    %v578 = vpack.c.b16 %v486, %v482
    %v579 = vpack.c.b16 %v487, %v483
    %v580 = vpack.c.b16 %v488, %v484
    %v581 = vpack.c.b16 %v489, %v485
    %v582 = vpack.c.b16 %v494, %v490
    %v583 = vpack.c.b16 %v495, %v491
    %v584 = vpack.c.b16 %v496, %v492
    %v585 = vpack.c.b16 %v497, %v493
    %v586 = vpack.c.b16 %v502, %v498
    %v587 = vpack.c.b16 %v503, %v499
    %v588 = vpack.c.b16 %v504, %v500
    %v589 = vpack.c.b16 %v505, %v501
    %v590 = vpack.c.b16 %v510, %v506
    %v591 = vpack.c.b16 %v511, %v507
    %v592 = vpack.c.b16 %v512, %v508
    %v593 = vpack.c.b16 %v513, %v509
    %v594 = vpack.c.b16 %v518, %v514
    %v595 = vpack.c.b16 %v519, %v515
    %v596 = vpack.c.b16 %v520, %v516
    %v597 = vpack.c.b16 %v521, %v517
    %v598 = vpack.c.b16 %v526, %v522
    %v599 = vpack.c.b16 %v527, %v523
    %v600 = vpack.c.b16 %v528, %v524
    %v601 = vpack.c.b16 %v529, %v525
    %v602 = vpack.c.b16 %v534, %v530
    %v603 = vpack.c.b16 %v535, %v531
    %v604 = vpack.c.b16 %v536, %v532
    %v605 = vpack.c.b16 %v537, %v533
    %v606 = vpack.c.b16 %v542, %v538
    %v607 = vpack.c.b16 %v543, %v539
    %v608 = vpack.c.b16 %v544, %v540
    %v609 = vpack.c.b16 %v545, %v541
    %674 = vmatprep.subr.bf16.mxu0 %v547
    %675 = vmatpush1.bf16.msra.mxu0 %v546
    %676 = vmatprep.subr.bf16.mxu0 %v551
    %677 = vmatpush1.bf16.msra.mxu0 %v550
    %678 = vmatprep.subr.bf16.mxu0 %v555
    %679 = vmatpush1.bf16.msra.mxu0 %v554
    %680 = vmatprep.subr.bf16.mxu0 %v559
    %681 = vmatpush1.bf16.msra.mxu0 %v558
    %682 = vmatprep.subr.bf16.mxu0 %v563
    %683 = vmatpush1.bf16.msra.mxu0 %v562
    %684 = vmatprep.subr.bf16.mxu0 %v567
    %685 = vmatpush1.bf16.msra.mxu0 %v566
    %686 = vmatprep.subr.bf16.mxu0 %v571
    %687 = vmatpush1.bf16.msra.mxu0 %v570
    %688 = vmatprep.subr.bf16.mxu0 %v575
    %689 = vmatpush1.bf16.msra.mxu0 %v574
    %690 = vmatprep.subr.bf16.mxu0 %v579
    %691 = vmatpush1.bf16.msra.mxu0 %v578
    %692 = vmatprep.subr.bf16.mxu0 %v583
    %693 = vmatpush1.bf16.msra.mxu0 %v582
    %694 = vmatprep.subr.bf16.mxu0 %v587
    %695 = vmatpush1.bf16.msra.mxu0 %v586
    %696 = vmatprep.subr.bf16.mxu0 %v591
    %697 = vmatpush1.bf16.msra.mxu0 %v590
    %698 = vmatprep.subr.bf16.mxu0 %v595
    %699 = vmatpush1.bf16.msra.mxu0 %v594
    %700 = vmatprep.subr.bf16.mxu0 %v599
    %701 = vmatpush1.bf16.msra.mxu0 %v598
    %702 = vmatprep.subr.bf16.mxu0 %v603
    %703 = vmatpush1.bf16.msra.mxu0 %v602
    %704 = vmatprep.subr.bf16.mxu0 %v607
    %705 = vmatpush1.bf16.msra.mxu0 %v606
    %706 = vmatprep.mubr.bf16.mxu0 %v267
    %707 = vmatmul.mubr.bf16.gmra.mrb[0].mxu0 %v266
    %v708 = vpop.f32.mrb[0].mxu0
    %v709 = vadd.f32 %v337, %v708
    %v710 = vpop.f32.mrb[0].mxu0
    %v711 = vadd.f32 %v341, %v710
    %v712 = vpop.f32.mrb[0].mxu0
    %v713 = vpop.f32.mrb[0].mxu0
    %714 = vdwg.mxu0
    %715 = vmatprep.subr.bf16.mxu0 %v549
    %716 = vmatpush1.bf16.msra.mxu0 %v548
    %717 = vmatprep.subr.bf16.mxu0 %v553
    %718 = vmatpush1.bf16.msra.mxu0 %v552
    %719 = vmatprep.subr.bf16.mxu0 %v557
    %720 = vmatpush1.bf16.msra.mxu0 %v556
    %721 = vmatprep.subr.bf16.mxu0 %v561
    %722 = vmatpush1.bf16.msra.mxu0 %v560
    %723 = vmatprep.subr.bf16.mxu0 %v565
    %724 = vmatpush1.bf16.msra.mxu0 %v564
    %725 = vmatprep.subr.bf16.mxu0 %v569
    %726 = vmatpush1.bf16.msra.mxu0 %v568
    %727 = vmatprep.subr.bf16.mxu0 %v573
    %728 = vmatpush1.bf16.msra.mxu0 %v572
    %729 = vmatprep.subr.bf16.mxu0 %v577
    %730 = vmatpush1.bf16.msra.mxu0 %v576
    %731 = vmatprep.subr.bf16.mxu0 %v581
    %732 = vmatpush1.bf16.msra.mxu0 %v580
    %733 = vmatprep.subr.bf16.mxu0 %v585
    %734 = vmatpush1.bf16.msra.mxu0 %v584
    %735 = vmatprep.subr.bf16.mxu0 %v589
    %736 = vmatpush1.bf16.msra.mxu0 %v588
    %737 = vmatprep.subr.bf16.mxu0 %v593
    %738 = vmatpush1.bf16.msra.mxu0 %v592
    %739 = vmatprep.subr.bf16.mxu0 %v597
    %740 = vmatpush1.bf16.msra.mxu0 %v596
    %741 = vmatprep.subr.bf16.mxu0 %v601
    %742 = vmatpush1.bf16.msra.mxu0 %v600
    %743 = vmatprep.subr.bf16.mxu0 %v605
    %744 = vmatpush1.bf16.msra.mxu0 %v604
    %745 = vmatprep.subr.bf16.mxu0 %v609
    %746 = vmatpush1.bf16.msra.mxu0 %v608
    %747 = vmatprep.mubr.bf16.mxu0 %v267
    %748 = vmatmul.mubr.bf16.gmra.mrb[0].mxu0 %v266
    %v749 = vpop.f32.mrb[0].mxu0
    %v750 = vadd.f32 %v345, %v749
    %v751 = vpop.f32.mrb[0].mxu0
    %v752 = vadd.f32 %v349, %v751
    %v753 = vpop.f32.mrb[0].mxu0
    %v754 = vpop.f32.mrb[0].mxu0
    %755 = vdwg.mxu0
    %vm756 = vcmp.gt.f32.partialorder %v709, 0.0
    %vm757 = vcmp.gt.f32.partialorder %v711, 0.0
    %vm758 = vcmp.gt.f32.partialorder %v750, 0.0
    %vm759 = vcmp.gt.f32.partialorder %v752, 0.0
    %v760 = vmul.f32 %v709, 0.2
    %v761 = vmul.f32 %v711, 0.2
    %v762 = vmul.f32 %v750, 0.2
    %v763 = vmul.f32 %v752, 0.2
    %v764 = vsel %vm756, %v709, %v760
    %v765 = vsel %vm757, %v711, %v761
    %v766 = vsel %vm758, %v750, %v762
    %v767 = vsel %vm759, %v752, %v763
    %v768 = vpack.c.bf16 %v764, %v764
    %v769 = vpack.c.bf16 %v765, %v765
    %v770 = vpack.c.bf16 %v766, %v766
    %v771 = vpack.c.bf16 %v767, %v767
    %v772 = vld [vmem:[#allocation11] sm:$0xff]
    %v773 = vld [vmem:[#allocation11 + $0x8] sm:$0xff]
    %v774 = vld [vmem:[#allocation11 + $0x10] sm:$0xff]
    %v775 = vld [vmem:[#allocation11 + $0x18] sm:$0xff]
    %v776 = vld [vmem:[#allocation11 + $0x20] sm:$0xff]
    %v777 = vld [vmem:[#allocation11 + $0x28] sm:$0xff]
    %v778 = vld [vmem:[#allocation11 + $0x30] sm:$0xff]
    %v779 = vld [vmem:[#allocation11 + $0x38] sm:$0xff]
    %v780 = vld [vmem:[#allocation11 + $0x40] sm:$0xff]
    %v781 = vld [vmem:[#allocation11 + $0x48] sm:$0xff]
    %v782 = vld [vmem:[#allocation11 + $0x50] sm:$0xff]
    %v783 = vld [vmem:[#allocation11 + $0x58] sm:$0xff]
    %v784 = vld [vmem:[#allocation11 + $0x60] sm:$0xff]
    %v785 = vld [vmem:[#allocation11 + $0x68] sm:$0xff]
    %v786 = vld [vmem:[#allocation11 + $0x70] sm:$0xff]
    %v787 = vld [vmem:[#allocation11 + $0x78] sm:$0xff]
    %v788 = vld [vmem:[#allocation11 + $0x80] sm:$0xff]
    %v789 = vld [vmem:[#allocation11 + $0x88] sm:$0xff]
    %v790 = vld [vmem:[#allocation11 + $0x90] sm:$0xff]
    %v791 = vld [vmem:[#allocation11 + $0x98] sm:$0xff]
    %v792 = vld [vmem:[#allocation11 + $0xa0] sm:$0xff]
    %v793 = vld [vmem:[#allocation11 + $0xa8] sm:$0xff]
    %v794 = vld [vmem:[#allocation11 + $0xb0] sm:$0xff]
    %v795 = vld [vmem:[#allocation11 + $0xb8] sm:$0xff]
    %v796 = vld [vmem:[#allocation11 + $0xc0] sm:$0xff]
    %v797 = vld [vmem:[#allocation11 + $0xc8] sm:$0xff]
    %v798 = vld [vmem:[#allocation11 + $0xd0] sm:$0xff]
    %v799 = vld [vmem:[#allocation11 + $0xd8] sm:$0xff]
    %v800 = vld [vmem:[#allocation11 + $0xe0] sm:$0xff]
    %v801 = vld [vmem:[#allocation11 + $0xe8] sm:$0xff]
    %v802 = vld [vmem:[#allocation11 + $0xf0] sm:$0xff]
    %v803 = vld [vmem:[#allocation11 + $0xf8] sm:$0xff]
    %v804 = vld [vmem:[#allocation11 + $0x100] sm:$0xff]
    %v805 = vld [vmem:[#allocation11 + $0x108] sm:$0xff]
    %v806 = vld [vmem:[#allocation11 + $0x110] sm:$0xff]
    %v807 = vld [vmem:[#allocation11 + $0x118] sm:$0xff]
    %v808 = vld [vmem:[#allocation11 + $0x120] sm:$0xff]
    %v809 = vld [vmem:[#allocation11 + $0x128] sm:$0xff]
    %v810 = vld [vmem:[#allocation11 + $0x130] sm:$0xff]
    %v811 = vld [vmem:[#allocation11 + $0x138] sm:$0xff]
    %v812 = vld [vmem:[#allocation11 + $0x140] sm:$0xff]
    %v813 = vld [vmem:[#allocation11 + $0x148] sm:$0xff]
    %v814 = vld [vmem:[#allocation11 + $0x150] sm:$0xff]
    %v815 = vld [vmem:[#allocation11 + $0x158] sm:$0xff]
    %v816 = vld [vmem:[#allocation11 + $0x160] sm:$0xff]
    %v817 = vld [vmem:[#allocation11 + $0x168] sm:$0xff]
    %v818 = vld [vmem:[#allocation11 + $0x170] sm:$0xff]
    %v819 = vld [vmem:[#allocation11 + $0x178] sm:$0xff]
    %v820 = vld [vmem:[#allocation11 + $0x180] sm:$0xff]
    %v821 = vld [vmem:[#allocation11 + $0x188] sm:$0xff]
    %v822 = vld [vmem:[#allocation11 + $0x190] sm:$0xff]
    %v823 = vld [vmem:[#allocation11 + $0x198] sm:$0xff]
    %v824 = vld [vmem:[#allocation11 + $0x1a0] sm:$0xff]
    %v825 = vld [vmem:[#allocation11 + $0x1a8] sm:$0xff]
    %v826 = vld [vmem:[#allocation11 + $0x1b0] sm:$0xff]
    %v827 = vld [vmem:[#allocation11 + $0x1b8] sm:$0xff]
    %v828 = vld [vmem:[#allocation11 + $0x1c0] sm:$0xff]
    %v829 = vld [vmem:[#allocation11 + $0x1c8] sm:$0xff]
    %v830 = vld [vmem:[#allocation11 + $0x1d0] sm:$0xff]
    %v831 = vld [vmem:[#allocation11 + $0x1d8] sm:$0xff]
    %v832 = vld [vmem:[#allocation11 + $0x1e0] sm:$0xff]
    %v833 = vld [vmem:[#allocation11 + $0x1e8] sm:$0xff]
    %v834 = vld [vmem:[#allocation11 + $0x1f0] sm:$0xff]
    %v835 = vld [vmem:[#allocation11 + $0x1f8] sm:$0xff]
    %v836 = vld [vmem:[#allocation11 + $0x200] sm:$0xff]
    %v837 = vld [vmem:[#allocation11 + $0x208] sm:$0xff]
    %v838 = vld [vmem:[#allocation11 + $0x210] sm:$0xff]
    %v839 = vld [vmem:[#allocation11 + $0x218] sm:$0xff]
    %v840 = vld [vmem:[#allocation11 + $0x220] sm:$0xff]
    %v841 = vld [vmem:[#allocation11 + $0x228] sm:$0xff]
    %v842 = vld [vmem:[#allocation11 + $0x230] sm:$0xff]
    %v843 = vld [vmem:[#allocation11 + $0x238] sm:$0xff]
    %v844 = vld [vmem:[#allocation11 + $0x240] sm:$0xff]
    %v845 = vld [vmem:[#allocation11 + $0x248] sm:$0xff]
    %v846 = vld [vmem:[#allocation11 + $0x250] sm:$0xff]
    %v847 = vld [vmem:[#allocation11 + $0x258] sm:$0xff]
    %v848 = vld [vmem:[#allocation11 + $0x260] sm:$0xff]
    %v849 = vld [vmem:[#allocation11 + $0x268] sm:$0xff]
    %v850 = vld [vmem:[#allocation11 + $0x270] sm:$0xff]
    %v851 = vld [vmem:[#allocation11 + $0x278] sm:$0xff]
    %v852 = vld [vmem:[#allocation11 + $0x280] sm:$0xff]
    %v853 = vld [vmem:[#allocation11 + $0x288] sm:$0xff]
    %v854 = vld [vmem:[#allocation11 + $0x290] sm:$0xff]
    %v855 = vld [vmem:[#allocation11 + $0x298] sm:$0xff]
    %v856 = vld [vmem:[#allocation11 + $0x2a0] sm:$0xff]
    %v857 = vld [vmem:[#allocation11 + $0x2a8] sm:$0xff]
    %v858 = vld [vmem:[#allocation11 + $0x2b0] sm:$0xff]
    %v859 = vld [vmem:[#allocation11 + $0x2b8] sm:$0xff]
    %v860 = vld [vmem:[#allocation11 + $0x2c0] sm:$0xff]
    %v861 = vld [vmem:[#allocation11 + $0x2c8] sm:$0xff]
    %v862 = vld [vmem:[#allocation11 + $0x2d0] sm:$0xff]
    %v863 = vld [vmem:[#allocation11 + $0x2d8] sm:$0xff]
    %v864 = vld [vmem:[#allocation11 + $0x2e0] sm:$0xff]
    %v865 = vld [vmem:[#allocation11 + $0x2e8] sm:$0xff]
    %v866 = vld [vmem:[#allocation11 + $0x2f0] sm:$0xff]
    %v867 = vld [vmem:[#allocation11 + $0x2f8] sm:$0xff]
    %v868 = vld [vmem:[#allocation11 + $0x300] sm:$0xff]
    %v869 = vld [vmem:[#allocation11 + $0x308] sm:$0xff]
    %v870 = vld [vmem:[#allocation11 + $0x310] sm:$0xff]
    %v871 = vld [vmem:[#allocation11 + $0x318] sm:$0xff]
    %v872 = vld [vmem:[#allocation11 + $0x320] sm:$0xff]
    %v873 = vld [vmem:[#allocation11 + $0x328] sm:$0xff]
    %v874 = vld [vmem:[#allocation11 + $0x330] sm:$0xff]
    %v875 = vld [vmem:[#allocation11 + $0x338] sm:$0xff]
    %v876 = vld [vmem:[#allocation11 + $0x340] sm:$0xff]
    %v877 = vld [vmem:[#allocation11 + $0x348] sm:$0xff]
    %v878 = vld [vmem:[#allocation11 + $0x350] sm:$0xff]
    %v879 = vld [vmem:[#allocation11 + $0x358] sm:$0xff]
    %v880 = vld [vmem:[#allocation11 + $0x360] sm:$0xff]
    %v881 = vld [vmem:[#allocation11 + $0x368] sm:$0xff]
    %v882 = vld [vmem:[#allocation11 + $0x370] sm:$0xff]
    %v883 = vld [vmem:[#allocation11 + $0x378] sm:$0xff]
    %v884 = vld [vmem:[#allocation11 + $0x380] sm:$0xff]
    %v885 = vld [vmem:[#allocation11 + $0x388] sm:$0xff]
    %v886 = vld [vmem:[#allocation11 + $0x390] sm:$0xff]
    %v887 = vld [vmem:[#allocation11 + $0x398] sm:$0xff]
    %v888 = vld [vmem:[#allocation11 + $0x3a0] sm:$0xff]
    %v889 = vld [vmem:[#allocation11 + $0x3a8] sm:$0xff]
    %v890 = vld [vmem:[#allocation11 + $0x3b0] sm:$0xff]
    %v891 = vld [vmem:[#allocation11 + $0x3b8] sm:$0xff]
    %v892 = vld [vmem:[#allocation11 + $0x3c0] sm:$0xff]
    %v893 = vld [vmem:[#allocation11 + $0x3c8] sm:$0xff]
    %v894 = vld [vmem:[#allocation11 + $0x3d0] sm:$0xff]
    %v895 = vld [vmem:[#allocation11 + $0x3d8] sm:$0xff]
    %v896 = vld [vmem:[#allocation11 + $0x3e0] sm:$0xff]
    %v897 = vld [vmem:[#allocation11 + $0x3e8] sm:$0xff]
    %v898 = vld [vmem:[#allocation11 + $0x3f0] sm:$0xff]
    %v899 = vld [vmem:[#allocation11 + $0x3f8] sm:$0xff]
    %v900 = vld [vmem:[#allocation11 + $0x400] sm:$0xff]
    %v901 = vld [vmem:[#allocation11 + $0x408] sm:$0xff]
    %v902 = vld [vmem:[#allocation11 + $0x410] sm:$0xff]
    %v903 = vld [vmem:[#allocation11 + $0x418] sm:$0xff]
    %v904 = vld [vmem:[#allocation11 + $0x420] sm:$0xff]
    %v905 = vld [vmem:[#allocation11 + $0x428] sm:$0xff]
    %v906 = vld [vmem:[#allocation11 + $0x430] sm:$0xff]
    %v907 = vld [vmem:[#allocation11 + $0x438] sm:$0xff]
    %v908 = vld [vmem:[#allocation11 + $0x440] sm:$0xff]
    %v909 = vld [vmem:[#allocation11 + $0x448] sm:$0xff]
    %v910 = vld [vmem:[#allocation11 + $0x450] sm:$0xff]
    %v911 = vld [vmem:[#allocation11 + $0x458] sm:$0xff]
    %v912 = vld [vmem:[#allocation11 + $0x460] sm:$0xff]
    %v913 = vld [vmem:[#allocation11 + $0x468] sm:$0xff]
    %v914 = vld [vmem:[#allocation11 + $0x470] sm:$0xff]
    %v915 = vld [vmem:[#allocation11 + $0x478] sm:$0xff]
    %v916 = vld [vmem:[#allocation11 + $0x480] sm:$0xff]
    %v917 = vld [vmem:[#allocation11 + $0x488] sm:$0xff]
    %v918 = vld [vmem:[#allocation11 + $0x490] sm:$0xff]
    %v919 = vld [vmem:[#allocation11 + $0x498] sm:$0xff]
    %v920 = vld [vmem:[#allocation11 + $0x4a0] sm:$0xff]
    %v921 = vld [vmem:[#allocation11 + $0x4a8] sm:$0xff]
    %v922 = vld [vmem:[#allocation11 + $0x4b0] sm:$0xff]
    %v923 = vld [vmem:[#allocation11 + $0x4b8] sm:$0xff]
    %v924 = vld [vmem:[#allocation11 + $0x4c0] sm:$0xff]
    %v925 = vld [vmem:[#allocation11 + $0x4c8] sm:$0xff]
    %v926 = vld [vmem:[#allocation11 + $0x4d0] sm:$0xff]
    %v927 = vld [vmem:[#allocation11 + $0x4d8] sm:$0xff]
    %v928 = vld [vmem:[#allocation11 + $0x4e0] sm:$0xff]
    %v929 = vld [vmem:[#allocation11 + $0x4e8] sm:$0xff]
    %v930 = vld [vmem:[#allocation11 + $0x4f0] sm:$0xff]
    %v931 = vld [vmem:[#allocation11 + $0x4f8] sm:$0xff]
    %v932 = vld [vmem:[#allocation11 + $0x500] sm:$0xff]
    %v933 = vld [vmem:[#allocation11 + $0x508] sm:$0xff]
    %v934 = vld [vmem:[#allocation11 + $0x510] sm:$0xff]
    %v935 = vld [vmem:[#allocation11 + $0x518] sm:$0xff]
    %v936 = vld [vmem:[#allocation11 + $0x520] sm:$0xff]
    %v937 = vld [vmem:[#allocation11 + $0x528] sm:$0xff]
    %v938 = vld [vmem:[#allocation11 + $0x530] sm:$0xff]
    %v939 = vld [vmem:[#allocation11 + $0x538] sm:$0xff]
    %v940 = vld [vmem:[#allocation11 + $0x540] sm:$0xff]
    %v941 = vld [vmem:[#allocation11 + $0x548] sm:$0xff]
    %v942 = vld [vmem:[#allocation11 + $0x550] sm:$0xff]
    %v943 = vld [vmem:[#allocation11 + $0x558] sm:$0xff]
    %v944 = vld [vmem:[#allocation11 + $0x560] sm:$0xff]
    %v945 = vld [vmem:[#allocation11 + $0x568] sm:$0xff]
    %v946 = vld [vmem:[#allocation11 + $0x570] sm:$0xff]
    %v947 = vld [vmem:[#allocation11 + $0x578] sm:$0xff]
    %v948 = vld [vmem:[#allocation11 + $0x580] sm:$0xff]
    %v949 = vld [vmem:[#allocation11 + $0x588] sm:$0xff]
    %v950 = vld [vmem:[#allocation11 + $0x590] sm:$0xff]
    %v951 = vld [vmem:[#allocation11 + $0x598] sm:$0xff]
    %v952 = vld [vmem:[#allocation11 + $0x5a0] sm:$0xff]
    %v953 = vld [vmem:[#allocation11 + $0x5a8] sm:$0xff]
    %v954 = vld [vmem:[#allocation11 + $0x5b0] sm:$0xff]
    %v955 = vld [vmem:[#allocation11 + $0x5b8] sm:$0xff]
    %v956 = vld [vmem:[#allocation11 + $0x5c0] sm:$0xff]
    %v957 = vld [vmem:[#allocation11 + $0x5c8] sm:$0xff]
    %v958 = vld [vmem:[#allocation11 + $0x5d0] sm:$0xff]
    %v959 = vld [vmem:[#allocation11 + $0x5d8] sm:$0xff]
    %v960 = vld [vmem:[#allocation11 + $0x5e0] sm:$0xff]
    %v961 = vld [vmem:[#allocation11 + $0x5e8] sm:$0xff]
    %v962 = vld [vmem:[#allocation11 + $0x5f0] sm:$0xff]
    %v963 = vld [vmem:[#allocation11 + $0x5f8] sm:$0xff]
    %v964 = vld [vmem:[#allocation13] sm:$0x3f]
    %v966 = vlaneseq
    %v967 = vshrl.u32 %v966, 7
    %v968 = vsub.s32 0, %v967
    %v969 = vrot.slane %v964, %v968
    %v970 = vlaneseq
    %v971 = vshrl.u32 %v970, 7
    %v972 = vsub.s32 1, %v971
    %v973 = vrot.slane %v964, %v972
    %v974 = vlaneseq
    %v975 = vshrl.u32 %v974, 7
    %v976 = vsub.s32 2, %v975
    %v977 = vrot.slane %v964, %v976
    %v978 = vlaneseq
    %v979 = vshrl.u32 %v978, 7
    %v980 = vsub.s32 3, %v979
    %v981 = vrot.slane %v964, %v980
    %v982 = vlaneseq
    %v983 = vshrl.u32 %v982, 7
    %v984 = vsub.s32 4, %v983
    %v985 = vrot.slane %v964, %v984
    %v986 = vlaneseq
    %v987 = vshrl.u32 %v986, 7
    %v988 = vsub.s32 5, %v987
    %v989 = vrot.slane %v964, %v988
    %v1188 = vunpack.c.l.b16 %v772
    %v1189 = vunpack.c.h.b16 %v772
    %v1190 = vunpack.c.l.b16 %v773
    %v1191 = vunpack.c.h.b16 %v773
    %v1192 = vunpack.c.l.b16 %v774
    %v1193 = vunpack.c.h.b16 %v774
    %v1194 = vunpack.c.l.b16 %v775
    %v1195 = vunpack.c.h.b16 %v775
    %v1196 = vunpack.c.l.b16 %v776
    %v1197 = vunpack.c.h.b16 %v776
    %v1198 = vunpack.c.l.b16 %v777
    %v1199 = vunpack.c.h.b16 %v777
    %v1200 = vunpack.c.l.b16 %v778
    %v1201 = vunpack.c.h.b16 %v778
    %v1202 = vunpack.c.l.b16 %v779
    %v1203 = vunpack.c.h.b16 %v779
    %v1204 = vunpack.c.l.b16 %v780
    %v1205 = vunpack.c.h.b16 %v780
    %v1206 = vunpack.c.l.b16 %v781
    %v1207 = vunpack.c.h.b16 %v781
    %v1208 = vunpack.c.l.b16 %v782
    %v1209 = vunpack.c.h.b16 %v782
    %v1210 = vunpack.c.l.b16 %v783
    %v1211 = vunpack.c.h.b16 %v783
    %v1212 = vunpack.c.l.b16 %v784
    %v1213 = vunpack.c.h.b16 %v784
    %v1214 = vunpack.c.l.b16 %v785
    %v1215 = vunpack.c.h.b16 %v785
    %v1216 = vunpack.c.l.b16 %v786
    %v1217 = vunpack.c.h.b16 %v786
    %v1218 = vunpack.c.l.b16 %v787
    %v1219 = vunpack.c.h.b16 %v787
    %v1220 = vunpack.c.l.b16 %v788
    %v1221 = vunpack.c.h.b16 %v788
    %v1222 = vunpack.c.l.b16 %v789
    %v1223 = vunpack.c.h.b16 %v789
    %v1224 = vunpack.c.l.b16 %v790
    %v1225 = vunpack.c.h.b16 %v790
    %v1226 = vunpack.c.l.b16 %v791
    %v1227 = vunpack.c.h.b16 %v791
    %v1228 = vunpack.c.l.b16 %v792
    %v1229 = vunpack.c.h.b16 %v792
    %v1230 = vunpack.c.l.b16 %v793
    %v1231 = vunpack.c.h.b16 %v793
    %v1232 = vunpack.c.l.b16 %v794
    %v1233 = vunpack.c.h.b16 %v794
    %v1234 = vunpack.c.l.b16 %v795
    %v1235 = vunpack.c.h.b16 %v795
    %v1236 = vunpack.c.l.b16 %v796
    %v1237 = vunpack.c.h.b16 %v796
    %v1238 = vunpack.c.l.b16 %v797
    %v1239 = vunpack.c.h.b16 %v797
    %v1240 = vunpack.c.l.b16 %v798
    %v1241 = vunpack.c.h.b16 %v798
    %v1242 = vunpack.c.l.b16 %v799
    %v1243 = vunpack.c.h.b16 %v799
    %v1244 = vunpack.c.l.b16 %v800
    %v1245 = vunpack.c.h.b16 %v800
    %v1246 = vunpack.c.l.b16 %v801
    %v1247 = vunpack.c.h.b16 %v801
    %v1248 = vunpack.c.l.b16 %v802
    %v1249 = vunpack.c.h.b16 %v802
    %v1250 = vunpack.c.l.b16 %v803
    %v1251 = vunpack.c.h.b16 %v803
    %v1252 = vunpack.c.l.b16 %v804
    %v1253 = vunpack.c.h.b16 %v804
    %v1254 = vunpack.c.l.b16 %v805
    %v1255 = vunpack.c.h.b16 %v805
    %v1256 = vunpack.c.l.b16 %v806
    %v1257 = vunpack.c.h.b16 %v806
    %v1258 = vunpack.c.l.b16 %v807
    %v1259 = vunpack.c.h.b16 %v807
    %v1260 = vunpack.c.l.b16 %v808
    %v1261 = vunpack.c.h.b16 %v808
    %v1262 = vunpack.c.l.b16 %v809
    %v1263 = vunpack.c.h.b16 %v809
    %v1264 = vunpack.c.l.b16 %v810
    %v1265 = vunpack.c.h.b16 %v810
    %v1266 = vunpack.c.l.b16 %v811
    %v1267 = vunpack.c.h.b16 %v811
    %v1268 = vunpack.c.l.b16 %v812
    %v1269 = vunpack.c.h.b16 %v812
    %v1270 = vunpack.c.l.b16 %v813
    %v1271 = vunpack.c.h.b16 %v813
    %v1272 = vunpack.c.l.b16 %v814
    %v1273 = vunpack.c.h.b16 %v814
    %v1274 = vunpack.c.l.b16 %v815
    %v1275 = vunpack.c.h.b16 %v815
    %v1276 = vunpack.c.l.b16 %v816
    %v1277 = vunpack.c.h.b16 %v816
    %v1278 = vunpack.c.l.b16 %v817
    %v1279 = vunpack.c.h.b16 %v817
    %v1280 = vunpack.c.l.b16 %v818
    %v1281 = vunpack.c.h.b16 %v818
    %v1282 = vunpack.c.l.b16 %v819
    %v1283 = vunpack.c.h.b16 %v819
    %v1284 = vunpack.c.l.b16 %v820
    %v1285 = vunpack.c.h.b16 %v820
    %v1286 = vunpack.c.l.b16 %v821
    %v1287 = vunpack.c.h.b16 %v821
    %v1288 = vunpack.c.l.b16 %v822
    %v1289 = vunpack.c.h.b16 %v822
    %v1290 = vunpack.c.l.b16 %v823
    %v1291 = vunpack.c.h.b16 %v823
    %v1292 = vunpack.c.l.b16 %v824
    %v1293 = vunpack.c.h.b16 %v824
    %v1294 = vunpack.c.l.b16 %v825
    %v1295 = vunpack.c.h.b16 %v825
    %v1296 = vunpack.c.l.b16 %v826
    %v1297 = vunpack.c.h.b16 %v826
    %v1298 = vunpack.c.l.b16 %v827
    %v1299 = vunpack.c.h.b16 %v827
    %v1300 = vunpack.c.l.b16 %v828
    %v1301 = vunpack.c.h.b16 %v828
    %v1302 = vunpack.c.l.b16 %v829
    %v1303 = vunpack.c.h.b16 %v829
    %v1304 = vunpack.c.l.b16 %v830
    %v1305 = vunpack.c.h.b16 %v830
    %v1306 = vunpack.c.l.b16 %v831
    %v1307 = vunpack.c.h.b16 %v831
    %v1308 = vunpack.c.l.b16 %v832
    %v1309 = vunpack.c.h.b16 %v832
    %v1310 = vunpack.c.l.b16 %v833
    %v1311 = vunpack.c.h.b16 %v833
    %v1312 = vunpack.c.l.b16 %v834
    %v1313 = vunpack.c.h.b16 %v834
    %v1314 = vunpack.c.l.b16 %v835
    %v1315 = vunpack.c.h.b16 %v835
    %v1316 = vunpack.c.l.b16 %v836
    %v1317 = vunpack.c.h.b16 %v836
    %v1318 = vunpack.c.l.b16 %v837
    %v1319 = vunpack.c.h.b16 %v837
    %v1320 = vunpack.c.l.b16 %v838
    %v1321 = vunpack.c.h.b16 %v838
    %v1322 = vunpack.c.l.b16 %v839
    %v1323 = vunpack.c.h.b16 %v839
    %v1324 = vunpack.c.l.b16 %v840
    %v1325 = vunpack.c.h.b16 %v840
    %v1326 = vunpack.c.l.b16 %v841
    %v1327 = vunpack.c.h.b16 %v841
    %v1328 = vunpack.c.l.b16 %v842
    %v1329 = vunpack.c.h.b16 %v842
    %v1330 = vunpack.c.l.b16 %v843
    %v1331 = vunpack.c.h.b16 %v843
    %v1332 = vunpack.c.l.b16 %v844
    %v1333 = vunpack.c.h.b16 %v844
    %v1334 = vunpack.c.l.b16 %v845
    %v1335 = vunpack.c.h.b16 %v845
    %v1336 = vunpack.c.l.b16 %v846
    %v1337 = vunpack.c.h.b16 %v846
    %v1338 = vunpack.c.l.b16 %v847
    %v1339 = vunpack.c.h.b16 %v847
    %v1340 = vunpack.c.l.b16 %v848
    %v1341 = vunpack.c.h.b16 %v848
    %v1342 = vunpack.c.l.b16 %v849
    %v1343 = vunpack.c.h.b16 %v849
    %v1344 = vunpack.c.l.b16 %v850
    %v1345 = vunpack.c.h.b16 %v850
    %v1346 = vunpack.c.l.b16 %v851
    %v1347 = vunpack.c.h.b16 %v851
    %v1348 = vunpack.c.l.b16 %v852
    %v1349 = vunpack.c.h.b16 %v852
    %v1350 = vunpack.c.l.b16 %v853
    %v1351 = vunpack.c.h.b16 %v853
    %v1352 = vunpack.c.l.b16 %v854
    %v1353 = vunpack.c.h.b16 %v854
    %v1354 = vunpack.c.l.b16 %v855
    %v1355 = vunpack.c.h.b16 %v855
    %v1356 = vunpack.c.l.b16 %v856
    %v1357 = vunpack.c.h.b16 %v856
    %v1358 = vunpack.c.l.b16 %v857
    %v1359 = vunpack.c.h.b16 %v857
    %v1360 = vunpack.c.l.b16 %v858
    %v1361 = vunpack.c.h.b16 %v858
    %v1362 = vunpack.c.l.b16 %v859
    %v1363 = vunpack.c.h.b16 %v859
    %v1364 = vunpack.c.l.b16 %v860
    %v1365 = vunpack.c.h.b16 %v860
    %v1366 = vunpack.c.l.b16 %v861
    %v1367 = vunpack.c.h.b16 %v861
    %v1368 = vunpack.c.l.b16 %v862
    %v1369 = vunpack.c.h.b16 %v862
    %v1370 = vunpack.c.l.b16 %v863
    %v1371 = vunpack.c.h.b16 %v863
    %v1372 = vunpack.c.l.b16 %v864
    %v1373 = vunpack.c.h.b16 %v864
    %v1374 = vunpack.c.l.b16 %v865
    %v1375 = vunpack.c.h.b16 %v865
    %v1376 = vunpack.c.l.b16 %v866
    %v1377 = vunpack.c.h.b16 %v866
    %v1378 = vunpack.c.l.b16 %v867
    %v1379 = vunpack.c.h.b16 %v867
    %v1380 = vunpack.c.l.b16 %v868
    %v1381 = vunpack.c.h.b16 %v868
    %v1382 = vunpack.c.l.b16 %v869
    %v1383 = vunpack.c.h.b16 %v869
    %v1384 = vunpack.c.l.b16 %v870
    %v1385 = vunpack.c.h.b16 %v870
    %v1386 = vunpack.c.l.b16 %v871
    %v1387 = vunpack.c.h.b16 %v871
    %v1388 = vunpack.c.l.b16 %v872
    %v1389 = vunpack.c.h.b16 %v872
    %v1390 = vunpack.c.l.b16 %v873
    %v1391 = vunpack.c.h.b16 %v873
    %v1392 = vunpack.c.l.b16 %v874
    %v1393 = vunpack.c.h.b16 %v874
    %v1394 = vunpack.c.l.b16 %v875
    %v1395 = vunpack.c.h.b16 %v875
    %v1396 = vunpack.c.l.b16 %v876
    %v1397 = vunpack.c.h.b16 %v876
    %v1398 = vunpack.c.l.b16 %v877
    %v1399 = vunpack.c.h.b16 %v877
    %v1400 = vunpack.c.l.b16 %v878
    %v1401 = vunpack.c.h.b16 %v878
    %v1402 = vunpack.c.l.b16 %v879
    %v1403 = vunpack.c.h.b16 %v879
    %v1404 = vunpack.c.l.b16 %v880
    %v1405 = vunpack.c.h.b16 %v880
    %v1406 = vunpack.c.l.b16 %v881
    %v1407 = vunpack.c.h.b16 %v881
    %v1408 = vunpack.c.l.b16 %v882
    %v1409 = vunpack.c.h.b16 %v882
    %v1410 = vunpack.c.l.b16 %v883
    %v1411 = vunpack.c.h.b16 %v883
    %v1412 = vunpack.c.l.b16 %v884
    %v1413 = vunpack.c.h.b16 %v884
    %v1414 = vunpack.c.l.b16 %v885
    %v1415 = vunpack.c.h.b16 %v885
    %v1416 = vunpack.c.l.b16 %v886
    %v1417 = vunpack.c.h.b16 %v886
    %v1418 = vunpack.c.l.b16 %v887
    %v1419 = vunpack.c.h.b16 %v887
    %v1420 = vunpack.c.l.b16 %v888
    %v1421 = vunpack.c.h.b16 %v888
    %v1422 = vunpack.c.l.b16 %v889
    %v1423 = vunpack.c.h.b16 %v889
    %v1424 = vunpack.c.l.b16 %v890
    %v1425 = vunpack.c.h.b16 %v890
    %v1426 = vunpack.c.l.b16 %v891
    %v1427 = vunpack.c.h.b16 %v891
    %v1428 = vunpack.c.l.b16 %v892
    %v1429 = vunpack.c.h.b16 %v892
    %v1430 = vunpack.c.l.b16 %v893
    %v1431 = vunpack.c.h.b16 %v893
    %v1432 = vunpack.c.l.b16 %v894
    %v1433 = vunpack.c.h.b16 %v894
    %v1434 = vunpack.c.l.b16 %v895
    %v1435 = vunpack.c.h.b16 %v895
    %v1436 = vunpack.c.l.b16 %v896
    %v1437 = vunpack.c.h.b16 %v896
    %v1438 = vunpack.c.l.b16 %v897
    %v1439 = vunpack.c.h.b16 %v897
    %v1440 = vunpack.c.l.b16 %v898
    %v1441 = vunpack.c.h.b16 %v898
    %v1442 = vunpack.c.l.b16 %v899
    %v1443 = vunpack.c.h.b16 %v899
    %v1444 = vunpack.c.l.b16 %v900
    %v1445 = vunpack.c.h.b16 %v900
    %v1446 = vunpack.c.l.b16 %v901
    %v1447 = vunpack.c.h.b16 %v901
    %v1448 = vunpack.c.l.b16 %v902
    %v1449 = vunpack.c.h.b16 %v902
    %v1450 = vunpack.c.l.b16 %v903
    %v1451 = vunpack.c.h.b16 %v903
    %v1452 = vunpack.c.l.b16 %v904
    %v1453 = vunpack.c.h.b16 %v904
    %v1454 = vunpack.c.l.b16 %v905
    %v1455 = vunpack.c.h.b16 %v905
    %v1456 = vunpack.c.l.b16 %v906
    %v1457 = vunpack.c.h.b16 %v906
    %v1458 = vunpack.c.l.b16 %v907
    %v1459 = vunpack.c.h.b16 %v907
    %v1460 = vunpack.c.l.b16 %v908
    %v1461 = vunpack.c.h.b16 %v908
    %v1462 = vunpack.c.l.b16 %v909
    %v1463 = vunpack.c.h.b16 %v909
    %v1464 = vunpack.c.l.b16 %v910
    %v1465 = vunpack.c.h.b16 %v910
    %v1466 = vunpack.c.l.b16 %v911
    %v1467 = vunpack.c.h.b16 %v911
    %v1468 = vunpack.c.l.b16 %v912
    %v1469 = vunpack.c.h.b16 %v912
    %v1470 = vunpack.c.l.b16 %v913
    %v1471 = vunpack.c.h.b16 %v913
    %v1472 = vunpack.c.l.b16 %v914
    %v1473 = vunpack.c.h.b16 %v914
    %v1474 = vunpack.c.l.b16 %v915
    %v1475 = vunpack.c.h.b16 %v915
    %v1476 = vunpack.c.l.b16 %v916
    %v1477 = vunpack.c.h.b16 %v916
    %v1478 = vunpack.c.l.b16 %v917
    %v1479 = vunpack.c.h.b16 %v917
    %v1480 = vunpack.c.l.b16 %v918
    %v1481 = vunpack.c.h.b16 %v918
    %v1482 = vunpack.c.l.b16 %v919
    %v1483 = vunpack.c.h.b16 %v919
    %v1484 = vunpack.c.l.b16 %v920
    %v1485 = vunpack.c.h.b16 %v920
    %v1486 = vunpack.c.l.b16 %v921
    %v1487 = vunpack.c.h.b16 %v921
    %v1488 = vunpack.c.l.b16 %v922
    %v1489 = vunpack.c.h.b16 %v922
    %v1490 = vunpack.c.l.b16 %v923
    %v1491 = vunpack.c.h.b16 %v923
    %v1492 = vunpack.c.l.b16 %v924
    %v1493 = vunpack.c.h.b16 %v924
    %v1494 = vunpack.c.l.b16 %v925
    %v1495 = vunpack.c.h.b16 %v925
    %v1496 = vunpack.c.l.b16 %v926
    %v1497 = vunpack.c.h.b16 %v926
    %v1498 = vunpack.c.l.b16 %v927
    %v1499 = vunpack.c.h.b16 %v927
    %v1500 = vunpack.c.l.b16 %v928
    %v1501 = vunpack.c.h.b16 %v928
    %v1502 = vunpack.c.l.b16 %v929
    %v1503 = vunpack.c.h.b16 %v929
    %v1504 = vunpack.c.l.b16 %v930
    %v1505 = vunpack.c.h.b16 %v930
    %v1506 = vunpack.c.l.b16 %v931
    %v1507 = vunpack.c.h.b16 %v931
    %v1508 = vunpack.c.l.b16 %v932
    %v1509 = vunpack.c.h.b16 %v932
    %v1510 = vunpack.c.l.b16 %v933
    %v1511 = vunpack.c.h.b16 %v933
    %v1512 = vunpack.c.l.b16 %v934
    %v1513 = vunpack.c.h.b16 %v934
    %v1514 = vunpack.c.l.b16 %v935
    %v1515 = vunpack.c.h.b16 %v935
    %v1516 = vunpack.c.l.b16 %v936
    %v1517 = vunpack.c.h.b16 %v936
    %v1518 = vunpack.c.l.b16 %v937
    %v1519 = vunpack.c.h.b16 %v937
    %v1520 = vunpack.c.l.b16 %v938
    %v1521 = vunpack.c.h.b16 %v938
    %v1522 = vunpack.c.l.b16 %v939
    %v1523 = vunpack.c.h.b16 %v939
    %v1524 = vunpack.c.l.b16 %v940
    %v1525 = vunpack.c.h.b16 %v940
    %v1526 = vunpack.c.l.b16 %v941
    %v1527 = vunpack.c.h.b16 %v941
    %v1528 = vunpack.c.l.b16 %v942
    %v1529 = vunpack.c.h.b16 %v942
    %v1530 = vunpack.c.l.b16 %v943
    %v1531 = vunpack.c.h.b16 %v943
    %v1532 = vunpack.c.l.b16 %v944
    %v1533 = vunpack.c.h.b16 %v944
    %v1534 = vunpack.c.l.b16 %v945
    %v1535 = vunpack.c.h.b16 %v945
    %v1536 = vunpack.c.l.b16 %v946
    %v1537 = vunpack.c.h.b16 %v946
    %v1538 = vunpack.c.l.b16 %v947
    %v1539 = vunpack.c.h.b16 %v947
    %v1540 = vunpack.c.l.b16 %v948
    %v1541 = vunpack.c.h.b16 %v948
    %v1542 = vunpack.c.l.b16 %v949
    %v1543 = vunpack.c.h.b16 %v949
    %v1544 = vunpack.c.l.b16 %v950
    %v1545 = vunpack.c.h.b16 %v950
    %v1546 = vunpack.c.l.b16 %v951
    %v1547 = vunpack.c.h.b16 %v951
    %v1548 = vunpack.c.l.b16 %v952
    %v1549 = vunpack.c.h.b16 %v952
    %v1550 = vunpack.c.l.b16 %v953
    %v1551 = vunpack.c.h.b16 %v953
    %v1552 = vunpack.c.l.b16 %v954
    %v1553 = vunpack.c.h.b16 %v954
    %v1554 = vunpack.c.l.b16 %v955
    %v1555 = vunpack.c.h.b16 %v955
    %v1556 = vunpack.c.l.b16 %v956
    %v1557 = vunpack.c.h.b16 %v956
    %v1558 = vunpack.c.l.b16 %v957
    %v1559 = vunpack.c.h.b16 %v957
    %v1560 = vunpack.c.l.b16 %v958
    %v1561 = vunpack.c.h.b16 %v958
    %v1562 = vunpack.c.l.b16 %v959
    %v1563 = vunpack.c.h.b16 %v959
    %v1564 = vunpack.c.l.b16 %v960
    %v1565 = vunpack.c.h.b16 %v960
    %v1566 = vunpack.c.l.b16 %v961
    %v1567 = vunpack.c.h.b16 %v961
    %v1568 = vunpack.c.l.b16 %v962
    %v1569 = vunpack.c.h.b16 %v962
    %v1570 = vunpack.c.l.b16 %v963
    %v1571 = vunpack.c.h.b16 %v963
    %v1572 = vpack.c.b16 %v1194, %v1188
    %v1573 = vpack.c.b16 %v1195, %v1189
    %v1574 = vpack.c.b16 %v1196, %v1190
    %v1575 = vpack.c.b16 %v1197, %v1191
    %v1576 = vpack.c.b16 %v1198, %v1192
    %v1577 = vpack.c.b16 %v1199, %v1193
    %v1578 = vpack.c.b16 %v1206, %v1200
    %v1579 = vpack.c.b16 %v1207, %v1201
    %v1580 = vpack.c.b16 %v1208, %v1202
    %v1581 = vpack.c.b16 %v1209, %v1203
    %v1582 = vpack.c.b16 %v1210, %v1204
    %v1583 = vpack.c.b16 %v1211, %v1205
    %v1584 = vpack.c.b16 %v1218, %v1212
    %v1585 = vpack.c.b16 %v1219, %v1213
    %v1586 = vpack.c.b16 %v1220, %v1214
    %v1587 = vpack.c.b16 %v1221, %v1215
    %v1588 = vpack.c.b16 %v1222, %v1216
    %v1589 = vpack.c.b16 %v1223, %v1217
    %v1590 = vpack.c.b16 %v1230, %v1224
    %v1591 = vpack.c.b16 %v1231, %v1225
    %v1592 = vpack.c.b16 %v1232, %v1226
    %v1593 = vpack.c.b16 %v1233, %v1227
    %v1594 = vpack.c.b16 %v1234, %v1228
    %v1595 = vpack.c.b16 %v1235, %v1229
    %v1596 = vpack.c.b16 %v1242, %v1236
    %v1597 = vpack.c.b16 %v1243, %v1237
    %v1598 = vpack.c.b16 %v1244, %v1238
    %v1599 = vpack.c.b16 %v1245, %v1239
    %v1600 = vpack.c.b16 %v1246, %v1240
    %v1601 = vpack.c.b16 %v1247, %v1241
    %v1602 = vpack.c.b16 %v1254, %v1248
    %v1603 = vpack.c.b16 %v1255, %v1249
    %v1604 = vpack.c.b16 %v1256, %v1250
    %v1605 = vpack.c.b16 %v1257, %v1251
    %v1606 = vpack.c.b16 %v1258, %v1252
    %v1607 = vpack.c.b16 %v1259, %v1253
    %v1608 = vpack.c.b16 %v1266, %v1260
    %v1609 = vpack.c.b16 %v1267, %v1261
    %v1610 = vpack.c.b16 %v1268, %v1262
    %v1611 = vpack.c.b16 %v1269, %v1263
    %v1612 = vpack.c.b16 %v1270, %v1264
    %v1613 = vpack.c.b16 %v1271, %v1265
    %v1614 = vpack.c.b16 %v1278, %v1272
    %v1615 = vpack.c.b16 %v1279, %v1273
    %v1616 = vpack.c.b16 %v1280, %v1274
    %v1617 = vpack.c.b16 %v1281, %v1275
    %v1618 = vpack.c.b16 %v1282, %v1276
    %v1619 = vpack.c.b16 %v1283, %v1277
    %v1620 = vpack.c.b16 %v1290, %v1284
    %v1621 = vpack.c.b16 %v1291, %v1285
    %v1622 = vpack.c.b16 %v1292, %v1286
    %v1623 = vpack.c.b16 %v1293, %v1287
    %v1624 = vpack.c.b16 %v1294, %v1288
    %v1625 = vpack.c.b16 %v1295, %v1289
    %v1626 = vpack.c.b16 %v1302, %v1296
    %v1627 = vpack.c.b16 %v1303, %v1297
    %v1628 = vpack.c.b16 %v1304, %v1298
    %v1629 = vpack.c.b16 %v1305, %v1299
    %v1630 = vpack.c.b16 %v1306, %v1300
    %v1631 = vpack.c.b16 %v1307, %v1301
    %v1632 = vpack.c.b16 %v1314, %v1308
    %v1633 = vpack.c.b16 %v1315, %v1309
    %v1634 = vpack.c.b16 %v1316, %v1310
    %v1635 = vpack.c.b16 %v1317, %v1311
    %v1636 = vpack.c.b16 %v1318, %v1312
    %v1637 = vpack.c.b16 %v1319, %v1313
    %v1638 = vpack.c.b16 %v1326, %v1320
    %v1639 = vpack.c.b16 %v1327, %v1321
    %v1640 = vpack.c.b16 %v1328, %v1322
    %v1641 = vpack.c.b16 %v1329, %v1323
    %v1642 = vpack.c.b16 %v1330, %v1324
    %v1643 = vpack.c.b16 %v1331, %v1325
    %v1644 = vpack.c.b16 %v1338, %v1332
    %v1645 = vpack.c.b16 %v1339, %v1333
    %v1646 = vpack.c.b16 %v1340, %v1334
    %v1647 = vpack.c.b16 %v1341, %v1335
    %v1648 = vpack.c.b16 %v1342, %v1336
    %v1649 = vpack.c.b16 %v1343, %v1337
    %v1650 = vpack.c.b16 %v1350, %v1344
    %v1651 = vpack.c.b16 %v1351, %v1345
    %v1652 = vpack.c.b16 %v1352, %v1346
    %v1653 = vpack.c.b16 %v1353, %v1347
    %v1654 = vpack.c.b16 %v1354, %v1348
    %v1655 = vpack.c.b16 %v1355, %v1349
    %v1656 = vpack.c.b16 %v1362, %v1356
    %v1657 = vpack.c.b16 %v1363, %v1357
    %v1658 = vpack.c.b16 %v1364, %v1358
    %v1659 = vpack.c.b16 %v1365, %v1359
    %v1660 = vpack.c.b16 %v1366, %v1360
    %v1661 = vpack.c.b16 %v1367, %v1361
    %v1662 = vpack.c.b16 %v1374, %v1368
    %v1663 = vpack.c.b16 %v1375, %v1369
    %v1664 = vpack.c.b16 %v1376, %v1370
    %v1665 = vpack.c.b16 %v1377, %v1371
    %v1666 = vpack.c.b16 %v1378, %v1372
    %v1667 = vpack.c.b16 %v1379, %v1373
    %v1668 = vpack.c.b16 %v1386, %v1380
    %v1669 = vpack.c.b16 %v1387, %v1381
    %v1670 = vpack.c.b16 %v1388, %v1382
    %v1671 = vpack.c.b16 %v1389, %v1383
    %v1672 = vpack.c.b16 %v1390, %v1384
    %v1673 = vpack.c.b16 %v1391, %v1385
    %v1674 = vpack.c.b16 %v1398, %v1392
    %v1675 = vpack.c.b16 %v1399, %v1393
    %v1676 = vpack.c.b16 %v1400, %v1394
    %v1677 = vpack.c.b16 %v1401, %v1395
    %v1678 = vpack.c.b16 %v1402, %v1396
    %v1679 = vpack.c.b16 %v1403, %v1397
    %v1680 = vpack.c.b16 %v1410, %v1404
    %v1681 = vpack.c.b16 %v1411, %v1405
    %v1682 = vpack.c.b16 %v1412, %v1406
    %v1683 = vpack.c.b16 %v1413, %v1407
    %v1684 = vpack.c.b16 %v1414, %v1408
    %v1685 = vpack.c.b16 %v1415, %v1409
    %v1686 = vpack.c.b16 %v1422, %v1416
    %v1687 = vpack.c.b16 %v1423, %v1417
    %v1688 = vpack.c.b16 %v1424, %v1418
    %v1689 = vpack.c.b16 %v1425, %v1419
    %v1690 = vpack.c.b16 %v1426, %v1420
    %v1691 = vpack.c.b16 %v1427, %v1421
    %v1692 = vpack.c.b16 %v1434, %v1428
    %v1693 = vpack.c.b16 %v1435, %v1429
    %v1694 = vpack.c.b16 %v1436, %v1430
    %v1695 = vpack.c.b16 %v1437, %v1431
    %v1696 = vpack.c.b16 %v1438, %v1432
    %v1697 = vpack.c.b16 %v1439, %v1433
    %v1698 = vpack.c.b16 %v1446, %v1440
    %v1699 = vpack.c.b16 %v1447, %v1441
    %v1700 = vpack.c.b16 %v1448, %v1442
    %v1701 = vpack.c.b16 %v1449, %v1443
    %v1702 = vpack.c.b16 %v1450, %v1444
    %v1703 = vpack.c.b16 %v1451, %v1445
    %v1704 = vpack.c.b16 %v1458, %v1452
    %v1705 = vpack.c.b16 %v1459, %v1453
    %v1706 = vpack.c.b16 %v1460, %v1454
    %v1707 = vpack.c.b16 %v1461, %v1455
    %v1708 = vpack.c.b16 %v1462, %v1456
    %v1709 = vpack.c.b16 %v1463, %v1457
    %v1710 = vpack.c.b16 %v1470, %v1464
    %v1711 = vpack.c.b16 %v1471, %v1465
    %v1712 = vpack.c.b16 %v1472, %v1466
    %v1713 = vpack.c.b16 %v1473, %v1467
    %v1714 = vpack.c.b16 %v1474, %v1468
    %v1715 = vpack.c.b16 %v1475, %v1469
    %v1716 = vpack.c.b16 %v1482, %v1476
    %v1717 = vpack.c.b16 %v1483, %v1477
    %v1718 = vpack.c.b16 %v1484, %v1478
    %v1719 = vpack.c.b16 %v1485, %v1479
    %v1720 = vpack.c.b16 %v1486, %v1480
    %v1721 = vpack.c.b16 %v1487, %v1481
    %v1722 = vpack.c.b16 %v1494, %v1488
    %v1723 = vpack.c.b16 %v1495, %v1489
    %v1724 = vpack.c.b16 %v1496, %v1490
    %v1725 = vpack.c.b16 %v1497, %v1491
    %v1726 = vpack.c.b16 %v1498, %v1492
    %v1727 = vpack.c.b16 %v1499, %v1493
    %v1728 = vpack.c.b16 %v1506, %v1500
    %v1729 = vpack.c.b16 %v1507, %v1501
    %v1730 = vpack.c.b16 %v1508, %v1502
    %v1731 = vpack.c.b16 %v1509, %v1503
    %v1732 = vpack.c.b16 %v1510, %v1504
    %v1733 = vpack.c.b16 %v1511, %v1505
    %v1734 = vpack.c.b16 %v1518, %v1512
    %v1735 = vpack.c.b16 %v1519, %v1513
    %v1736 = vpack.c.b16 %v1520, %v1514
    %v1737 = vpack.c.b16 %v1521, %v1515
    %v1738 = vpack.c.b16 %v1522, %v1516
    %v1739 = vpack.c.b16 %v1523, %v1517
    %v1740 = vpack.c.b16 %v1530, %v1524
    %v1741 = vpack.c.b16 %v1531, %v1525
    %v1742 = vpack.c.b16 %v1532, %v1526
    %v1743 = vpack.c.b16 %v1533, %v1527
    %v1744 = vpack.c.b16 %v1534, %v1528
    %v1745 = vpack.c.b16 %v1535, %v1529
    %v1746 = vpack.c.b16 %v1542, %v1536
    %v1747 = vpack.c.b16 %v1543, %v1537
    %v1748 = vpack.c.b16 %v1544, %v1538
    %v1749 = vpack.c.b16 %v1545, %v1539
    %v1750 = vpack.c.b16 %v1546, %v1540
    %v1751 = vpack.c.b16 %v1547, %v1541
    %v1752 = vpack.c.b16 %v1554, %v1548
    %v1753 = vpack.c.b16 %v1555, %v1549
    %v1754 = vpack.c.b16 %v1556, %v1550
    %v1755 = vpack.c.b16 %v1557, %v1551
    %v1756 = vpack.c.b16 %v1558, %v1552
    %v1757 = vpack.c.b16 %v1559, %v1553
    %v1758 = vpack.c.b16 %v1566, %v1560
    %v1759 = vpack.c.b16 %v1567, %v1561
    %v1760 = vpack.c.b16 %v1568, %v1562
    %v1761 = vpack.c.b16 %v1569, %v1563
    %v1762 = vpack.c.b16 %v1570, %v1564
    %v1763 = vpack.c.b16 %v1571, %v1565
    %1956 = vmatprep.subr.bf16.mxu0 %v1573
    %1957 = vmatpush1.bf16.msra.mxu0 %v1572
    %1958 = vmatprep.subr.bf16.mxu0 %v1579
    %1959 = vmatpush1.bf16.msra.mxu0 %v1578
    %1960 = vmatprep.subr.bf16.mxu0 %v1585
    %1961 = vmatpush1.bf16.msra.mxu0 %v1584
    %1962 = vmatprep.subr.bf16.mxu0 %v1591
    %1963 = vmatpush1.bf16.msra.mxu0 %v1590
    %1964 = vmatprep.subr.bf16.mxu0 %v1597
    %1965 = vmatpush1.bf16.msra.mxu0 %v1596
    %1966 = vmatprep.subr.bf16.mxu0 %v1603
    %1967 = vmatpush1.bf16.msra.mxu0 %v1602
    %1968 = vmatprep.subr.bf16.mxu0 %v1609
    %1969 = vmatpush1.bf16.msra.mxu0 %v1608
    %1970 = vmatprep.subr.bf16.mxu0 %v1615
    %1971 = vmatpush1.bf16.msra.mxu0 %v1614
    %1972 = vmatprep.subr.bf16.mxu0 %v1621
    %1973 = vmatpush1.bf16.msra.mxu0 %v1620
    %1974 = vmatprep.subr.bf16.mxu0 %v1627
    %1975 = vmatpush1.bf16.msra.mxu0 %v1626
    %1976 = vmatprep.subr.bf16.mxu0 %v1633
    %1977 = vmatpush1.bf16.msra.mxu0 %v1632
    %1978 = vmatprep.subr.bf16.mxu0 %v1639
    %1979 = vmatpush1.bf16.msra.mxu0 %v1638
    %1980 = vmatprep.subr.bf16.mxu0 %v1645
    %1981 = vmatpush1.bf16.msra.mxu0 %v1644
    %1982 = vmatprep.subr.bf16.mxu0 %v1651
    %1983 = vmatpush1.bf16.msra.mxu0 %v1650
    %1984 = vmatprep.subr.bf16.mxu0 %v1657
    %1985 = vmatpush1.bf16.msra.mxu0 %v1656
    %1986 = vmatprep.subr.bf16.mxu0 %v1663
    %1987 = vmatpush1.bf16.msra.mxu0 %v1662
    %1988 = vmatprep.mubr.bf16.mxu0 %v769
    %1989 = vmatmul.mubr.bf16.gmra.mrb[0].mxu0 %v768
    %v1990 = vpop.f32.mrb[0].mxu0
    %v1991 = vadd.f32 %v969, %v1990
    %v1992 = vpop.f32.mrb[0].mxu0
    %v1993 = vadd.f32 %v973, %v1992
    %v1994 = vpop.f32.mrb[0].mxu0
    %v1995 = vpop.f32.mrb[0].mxu0
    %1996 = vdwg.mxu0
    %1997 = vmatprep.subr.bf16.mxu0 %v1669
    %1998 = vmatpush1.bf16.msra.mxu0 %v1668
    %1999 = vmatprep.subr.bf16.mxu0 %v1675
    %2000 = vmatpush1.bf16.msra.mxu0 %v1674
    %2001 = vmatprep.subr.bf16.mxu0 %v1681
    %2002 = vmatpush1.bf16.msra.mxu0 %v1680
    %2003 = vmatprep.subr.bf16.mxu0 %v1687
    %2004 = vmatpush1.bf16.msra.mxu0 %v1686
    %2005 = vmatprep.subr.bf16.mxu0 %v1693
    %2006 = vmatpush1.bf16.msra.mxu0 %v1692
    %2007 = vmatprep.subr.bf16.mxu0 %v1699
    %2008 = vmatpush1.bf16.msra.mxu0 %v1698
    %2009 = vmatprep.subr.bf16.mxu0 %v1705
    %2010 = vmatpush1.bf16.msra.mxu0 %v1704
    %2011 = vmatprep.subr.bf16.mxu0 %v1711
    %2012 = vmatpush1.bf16.msra.mxu0 %v1710
    %2013 = vmatprep.subr.bf16.mxu0 %v1717
    %2014 = vmatpush1.bf16.msra.mxu0 %v1716
    %2015 = vmatprep.subr.bf16.mxu0 %v1723
    %2016 = vmatpush1.bf16.msra.mxu0 %v1722
    %2017 = vmatprep.subr.bf16.mxu0 %v1729
    %2018 = vmatpush1.bf16.msra.mxu0 %v1728
    %2019 = vmatprep.subr.bf16.mxu0 %v1735
    %2020 = vmatpush1.bf16.msra.mxu0 %v1734
    %2021 = vmatprep.subr.bf16.mxu0 %v1741
    %2022 = vmatpush1.bf16.msra.mxu0 %v1740
    %2023 = vmatprep.subr.bf16.mxu0 %v1747
    %2024 = vmatpush1.bf16.msra.mxu0 %v1746
    %2025 = vmatprep.subr.bf16.mxu0 %v1753
    %2026 = vmatpush1.bf16.msra.mxu0 %v1752
    %2027 = vmatprep.subr.bf16.mxu0 %v1759
    %2028 = vmatpush1.bf16.msra.mxu0 %v1758
    %2029 = vmatprep.mubr.bf16.mxu0 %v771
    %2030 = vmatmul.mubr.bf16.gmra.mrb[0].mxu0 %v770
    %v2031 = vpop.f32.mrb[0].mxu0
    %v2032 = vadd.f32 %v1991, %v2031
    %v2033 = vpop.f32.mrb[0].mxu0
    %v2034 = vadd.f32 %v1993, %v2033
    %v2035 = vpop.f32.mrb[0].mxu0
    %v2036 = vpop.f32.mrb[0].mxu0
    %2037 = vdwg.mxu0
    %2038 = vmatprep.subr.bf16.mxu0 %v1575
    %2039 = vmatpush1.bf16.msra.mxu0 %v1574
    %2040 = vmatprep.subr.bf16.mxu0 %v1581
    %2041 = vmatpush1.bf16.msra.mxu0 %v1580
    %2042 = vmatprep.subr.bf16.mxu0 %v1587
    %2043 = vmatpush1.bf16.msra.mxu0 %v1586
    %2044 = vmatprep.subr.bf16.mxu0 %v1593
    %2045 = vmatpush1.bf16.msra.mxu0 %v1592
    %2046 = vmatprep.subr.bf16.mxu0 %v1599
    %2047 = vmatpush1.bf16.msra.mxu0 %v1598
    %2048 = vmatprep.subr.bf16.mxu0 %v1605
    %2049 = vmatpush1.bf16.msra.mxu0 %v1604
    %2050 = vmatprep.subr.bf16.mxu0 %v1611
    %2051 = vmatpush1.bf16.msra.mxu0 %v1610
    %2052 = vmatprep.subr.bf16.mxu0 %v1617
    %2053 = vmatpush1.bf16.msra.mxu0 %v1616
    %2054 = vmatprep.subr.bf16.mxu0 %v1623
    %2055 = vmatpush1.bf16.msra.mxu0 %v1622
    %2056 = vmatprep.subr.bf16.mxu0 %v1629
    %2057 = vmatpush1.bf16.msra.mxu0 %v1628
    %2058 = vmatprep.subr.bf16.mxu0 %v1635
    %2059 = vmatpush1.bf16.msra.mxu0 %v1634
    %2060 = vmatprep.subr.bf16.mxu0 %v1641
    %2061 = vmatpush1.bf16.msra.mxu0 %v1640
    %2062 = vmatprep.subr.bf16.mxu0 %v1647
    %2063 = vmatpush1.bf16.msra.mxu0 %v1646
    %2064 = vmatprep.subr.bf16.mxu0 %v1653
    %2065 = vmatpush1.bf16.msra.mxu0 %v1652
    %2066 = vmatprep.subr.bf16.mxu0 %v1659
    %2067 = vmatpush1.bf16.msra.mxu0 %v1658
    %2068 = vmatprep.subr.bf16.mxu0 %v1665
    %2069 = vmatpush1.bf16.msra.mxu0 %v1664
    %2070 = vmatprep.mubr.bf16.mxu0 %v769
    %2071 = vmatmul.mubr.bf16.gmra.mrb[0].mxu0 %v768
    %v2072 = vpop.f32.mrb[0].mxu0
    %v2073 = vadd.f32 %v977, %v2072
    %v2074 = vpop.f32.mrb[0].mxu0
    %v2075 = vadd.f32 %v981, %v2074
    %v2076 = vpop.f32.mrb[0].mxu0
    %v2077 = vpop.f32.mrb[0].mxu0
    %2078 = vdwg.mxu0
    %2079 = vmatprep.subr.bf16.mxu0 %v1671
    %2080 = vmatpush1.bf16.msra.mxu0 %v1670
    %2081 = vmatprep.subr.bf16.mxu0 %v1677
    %2082 = vmatpush1.bf16.msra.mxu0 %v1676
    %2083 = vmatprep.subr.bf16.mxu0 %v1683
    %2084 = vmatpush1.bf16.msra.mxu0 %v1682
    %2085 = vmatprep.subr.bf16.mxu0 %v1689
    %2086 = vmatpush1.bf16.msra.mxu0 %v1688
    %2087 = vmatprep.subr.bf16.mxu0 %v1695
    %2088 = vmatpush1.bf16.msra.mxu0 %v1694
    %2089 = vmatprep.subr.bf16.mxu0 %v1701
    %2090 = vmatpush1.bf16.msra.mxu0 %v1700
    %2091 = vmatprep.subr.bf16.mxu0 %v1707
    %2092 = vmatpush1.bf16.msra.mxu0 %v1706
    %2093 = vmatprep.subr.bf16.mxu0 %v1713
    %2094 = vmatpush1.bf16.msra.mxu0 %v1712
    %2095 = vmatprep.subr.bf16.mxu0 %v1719
    %2096 = vmatpush1.bf16.msra.mxu0 %v1718
    %2097 = vmatprep.subr.bf16.mxu0 %v1725
    %2098 = vmatpush1.bf16.msra.mxu0 %v1724
    %2099 = vmatprep.subr.bf16.mxu0 %v1731
    %2100 = vmatpush1.bf16.msra.mxu0 %v1730
    %2101 = vmatprep.subr.bf16.mxu0 %v1737
    %2102 = vmatpush1.bf16.msra.mxu0 %v1736
    %2103 = vmatprep.subr.bf16.mxu0 %v1743
    %2104 = vmatpush1.bf16.msra.mxu0 %v1742
    %2105 = vmatprep.subr.bf16.mxu0 %v1749
    %2106 = vmatpush1.bf16.msra.mxu0 %v1748
    %2107 = vmatprep.subr.bf16.mxu0 %v1755
    %2108 = vmatpush1.bf16.msra.mxu0 %v1754
    %2109 = vmatprep.subr.bf16.mxu0 %v1761
    %2110 = vmatpush1.bf16.msra.mxu0 %v1760
    %2111 = vmatprep.mubr.bf16.mxu0 %v771
    %2112 = vmatmul.mubr.bf16.gmra.mrb[0].mxu0 %v770
    %v2113 = vpop.f32.mrb[0].mxu0
    %v2114 = vadd.f32 %v2073, %v2113
    %v2115 = vpop.f32.mrb[0].mxu0
    %v2116 = vadd.f32 %v2075, %v2115
    %v2117 = vpop.f32.mrb[0].mxu0
    %v2118 = vpop.f32.mrb[0].mxu0
    %2119 = vdwg.mxu0
    %2120 = vmatprep.subr.bf16.mxu0 %v1577
    %2121 = vmatpush1.bf16.msra.mxu0 %v1576
    %2122 = vmatprep.subr.bf16.mxu0 %v1583
    %2123 = vmatpush1.bf16.msra.mxu0 %v1582
    %2124 = vmatprep.subr.bf16.mxu0 %v1589
    %2125 = vmatpush1.bf16.msra.mxu0 %v1588
    %2126 = vmatprep.subr.bf16.mxu0 %v1595
    %2127 = vmatpush1.bf16.msra.mxu0 %v1594
    %2128 = vmatprep.subr.bf16.mxu0 %v1601
    %2129 = vmatpush1.bf16.msra.mxu0 %v1600
    %2130 = vmatprep.subr.bf16.mxu0 %v1607
    %2131 = vmatpush1.bf16.msra.mxu0 %v1606
    %2132 = vmatprep.subr.bf16.mxu0 %v1613
    %2133 = vmatpush1.bf16.msra.mxu0 %v1612
    %2134 = vmatprep.subr.bf16.mxu0 %v1619
    %2135 = vmatpush1.bf16.msra.mxu0 %v1618
    %2136 = vmatprep.subr.bf16.mxu0 %v1625
    %2137 = vmatpush1.bf16.msra.mxu0 %v1624
    %2138 = vmatprep.subr.bf16.mxu0 %v1631
    %2139 = vmatpush1.bf16.msra.mxu0 %v1630
    %2140 = vmatprep.subr.bf16.mxu0 %v1637
    %2141 = vmatpush1.bf16.msra.mxu0 %v1636
    %2142 = vmatprep.subr.bf16.mxu0 %v1643
    %2143 = vmatpush1.bf16.msra.mxu0 %v1642
    %2144 = vmatprep.subr.bf16.mxu0 %v1649
    %2145 = vmatpush1.bf16.msra.mxu0 %v1648
    %2146 = vmatprep.subr.bf16.mxu0 %v1655
    %2147 = vmatpush1.bf16.msra.mxu0 %v1654
    %2148 = vmatprep.subr.bf16.mxu0 %v1661
    %2149 = vmatpush1.bf16.msra.mxu0 %v1660
    %2150 = vmatprep.subr.bf16.mxu0 %v1667
    %2151 = vmatpush1.bf16.msra.mxu0 %v1666
    %2152 = vmatprep.mubr.bf16.mxu0 %v769
    %2153 = vmatmul.mubr.bf16.gmra.mrb[0].mxu0 %v768
    %v2154 = vpop.f32.mrb[0].mxu0
    %v2155 = vadd.f32 %v985, %v2154
    %v2156 = vpop.f32.mrb[0].mxu0
    %v2157 = vadd.f32 %v989, %v2156
    %v2158 = vpop.f32.mrb[0].mxu0
    %v2159 = vpop.f32.mrb[0].mxu0
    %2160 = vdwg.mxu0
    %2161 = vmatprep.subr.bf16.mxu0 %v1673
    %2162 = vmatpush1.bf16.msra.mxu0 %v1672
    %2163 = vmatprep.subr.bf16.mxu0 %v1679
    %2164 = vmatpush1.bf16.msra.mxu0 %v1678
    %2165 = vmatprep.subr.bf16.mxu0 %v1685
    %2166 = vmatpush1.bf16.msra.mxu0 %v1684
    %2167 = vmatprep.subr.bf16.mxu0 %v1691
    %2168 = vmatpush1.bf16.msra.mxu0 %v1690
    %2169 = vmatprep.subr.bf16.mxu0 %v1697
    %2170 = vmatpush1.bf16.msra.mxu0 %v1696
    %2171 = vmatprep.subr.bf16.mxu0 %v1703
    %2172 = vmatpush1.bf16.msra.mxu0 %v1702
    %2173 = vmatprep.subr.bf16.mxu0 %v1709
    %2174 = vmatpush1.bf16.msra.mxu0 %v1708
    %2175 = vmatprep.subr.bf16.mxu0 %v1715
    %2176 = vmatpush1.bf16.msra.mxu0 %v1714
    %2177 = vmatprep.subr.bf16.mxu0 %v1721
    %2178 = vmatpush1.bf16.msra.mxu0 %v1720
    %2179 = vmatprep.subr.bf16.mxu0 %v1727
    %2180 = vmatpush1.bf16.msra.mxu0 %v1726
    %2181 = vmatprep.subr.bf16.mxu0 %v1733
    %2182 = vmatpush1.bf16.msra.mxu0 %v1732
    %2183 = vmatprep.subr.bf16.mxu0 %v1739
    %2184 = vmatpush1.bf16.msra.mxu0 %v1738
    %2185 = vmatprep.subr.bf16.mxu0 %v1745
    %2186 = vmatpush1.bf16.msra.mxu0 %v1744
    %2187 = vmatprep.subr.bf16.mxu0 %v1751
    %2188 = vmatpush1.bf16.msra.mxu0 %v1750
    %2189 = vmatprep.subr.bf16.mxu0 %v1757
    %2190 = vmatpush1.bf16.msra.mxu0 %v1756
    %2191 = vmatprep.subr.bf16.mxu0 %v1763
    %2192 = vmatpush1.bf16.msra.mxu0 %v1762
    %2193 = vmatprep.mubr.bf16.mxu0 %v771
    %2194 = vmatmul.mubr.bf16.gmra.mrb[0].mxu0 %v770
    %v2195 = vpop.f32.mrb[0].mxu0
    %v2196 = vadd.f32 %v2155, %v2195
    %v2197 = vpop.f32.mrb[0].mxu0
    %v2198 = vadd.f32 %v2157, %v2197
    %v2199 = vpop.f32.mrb[0].mxu0
    %v2200 = vpop.f32.mrb[0].mxu0
    %2201 = vdwg.mxu0
    %vm2202 = vcmp.gt.f32.partialorder %v2032, 0.0
    %vm2203 = vcmp.gt.f32.partialorder %v2034, 0.0
    %vm2204 = vcmp.gt.f32.partialorder %v2114, 0.0
    %vm2205 = vcmp.gt.f32.partialorder %v2116, 0.0
    %vm2206 = vcmp.gt.f32.partialorder %v2196, 0.0
    %vm2207 = vcmp.gt.f32.partialorder %v2198, 0.0
    %v2208 = vmul.f32 %v2032, 0.2
    %v2209 = vmul.f32 %v2034, 0.2
    %v2210 = vmul.f32 %v2114, 0.2
    %v2211 = vmul.f32 %v2116, 0.2
    %v2212 = vmul.f32 %v2196, 0.2
    %v2213 = vmul.f32 %v2198, 0.2
    %v2214 = vsel %vm2202, %v2032, %v2208
    %v2215 = vsel %vm2203, %v2034, %v2209
    %v2216 = vsel %vm2204, %v2114, %v2210
    %v2217 = vsel %vm2205, %v2116, %v2211
    %v2218 = vsel %vm2206, %v2196, %v2212
    %v2219 = vsel %vm2207, %v2198, %v2213
    %v2220 = vpack.c.bf16 %v2214, %v2214
    %v2221 = vpack.c.bf16 %v2215, %v2215
    %v2222 = vpack.c.bf16 %v2216, %v2216
    %v2223 = vpack.c.bf16 %v2217, %v2217
    %v2224 = vpack.c.bf16 %v2218, %v2218
    %v2225 = vpack.c.bf16 %v2219, %v2219
    %v2226 = vld [vmem:[#allocation14] sm:$0xff]
    %v2227 = vld [vmem:[#allocation14 + $0x8] sm:$0xff]
    %v2228 = vld [vmem:[#allocation14 + $0x10] sm:$0xff]
    %v2229 = vld [vmem:[#allocation14 + $0x18] sm:$0xff]
    %v2230 = vld [vmem:[#allocation14 + $0x20] sm:$0xff]
    %v2231 = vld [vmem:[#allocation14 + $0x28] sm:$0xff]
    %v2232 = vld [vmem:[#allocation14 + $0x30] sm:$0xff]
    %v2233 = vld [vmem:[#allocation14 + $0x38] sm:$0xff]
    %v2234 = vld [vmem:[#allocation14 + $0x40] sm:$0xff]
    %v2235 = vld [vmem:[#allocation14 + $0x48] sm:$0xff]
    %v2236 = vld [vmem:[#allocation14 + $0x50] sm:$0xff]
    %v2237 = vld [vmem:[#allocation14 + $0x58] sm:$0xff]
    %v2238 = vld [vmem:[#allocation14 + $0x60] sm:$0xff]
    %v2239 = vld [vmem:[#allocation14 + $0x68] sm:$0xff]
    %v2240 = vld [vmem:[#allocation14 + $0x70] sm:$0xff]
    %v2241 = vld [vmem:[#allocation14 + $0x78] sm:$0xff]
    %v2242 = vld [vmem:[#allocation14 + $0x80] sm:$0xff]
    %v2243 = vld [vmem:[#allocation14 + $0x88] sm:$0xff]
    %v2244 = vld [vmem:[#allocation14 + $0x90] sm:$0xff]
    %v2245 = vld [vmem:[#allocation14 + $0x98] sm:$0xff]
    %v2246 = vld [vmem:[#allocation14 + $0xa0] sm:$0xff]
    %v2247 = vld [vmem:[#allocation14 + $0xa8] sm:$0xff]
    %v2248 = vld [vmem:[#allocation14 + $0xb0] sm:$0xff]
    %v2249 = vld [vmem:[#allocation14 + $0xb8] sm:$0xff]
    %v2250 = vld [vmem:[#allocation14 + $0xc0] sm:$0xff]
    %v2251 = vld [vmem:[#allocation14 + $0xc8] sm:$0xff]
    %v2252 = vld [vmem:[#allocation14 + $0xd0] sm:$0xff]
    %v2253 = vld [vmem:[#allocation14 + $0xd8] sm:$0xff]
    %v2254 = vld [vmem:[#allocation14 + $0xe0] sm:$0xff]
    %v2255 = vld [vmem:[#allocation14 + $0xe8] sm:$0xff]
    %v2256 = vld [vmem:[#allocation14 + $0xf0] sm:$0xff]
    %v2257 = vld [vmem:[#allocation14 + $0xf8] sm:$0xff]
    %v2258 = vld [vmem:[#allocation14 + $0x100] sm:$0xff]
    %v2259 = vld [vmem:[#allocation14 + $0x108] sm:$0xff]
    %v2260 = vld [vmem:[#allocation14 + $0x110] sm:$0xff]
    %v2261 = vld [vmem:[#allocation14 + $0x118] sm:$0xff]
    %v2262 = vld [vmem:[#allocation14 + $0x120] sm:$0xff]
    %v2263 = vld [vmem:[#allocation14 + $0x128] sm:$0xff]
    %v2264 = vld [vmem:[#allocation14 + $0x130] sm:$0xff]
    %v2265 = vld [vmem:[#allocation14 + $0x138] sm:$0xff]
    %v2266 = vld [vmem:[#allocation14 + $0x140] sm:$0xff]
    %v2267 = vld [vmem:[#allocation14 + $0x148] sm:$0xff]
    %v2268 = vld [vmem:[#allocation14 + $0x150] sm:$0xff]
    %v2269 = vld [vmem:[#allocation14 + $0x158] sm:$0xff]
    %v2270 = vld [vmem:[#allocation14 + $0x160] sm:$0xff]
    %v2271 = vld [vmem:[#allocation14 + $0x168] sm:$0xff]
    %v2272 = vld [vmem:[#allocation14 + $0x170] sm:$0xff]
    %v2273 = vld [vmem:[#allocation14 + $0x178] sm:$0xff]
    %v2274 = vld [vmem:[#allocation14 + $0x180] sm:$0xff]
    %v2275 = vld [vmem:[#allocation14 + $0x188] sm:$0xff]
    %v2276 = vld [vmem:[#allocation14 + $0x190] sm:$0xff]
    %v2277 = vld [vmem:[#allocation14 + $0x198] sm:$0xff]
    %v2278 = vld [vmem:[#allocation14 + $0x1a0] sm:$0xff]
    %v2279 = vld [vmem:[#allocation14 + $0x1a8] sm:$0xff]
    %v2280 = vld [vmem:[#allocation14 + $0x1b0] sm:$0xff]
    %v2281 = vld [vmem:[#allocation14 + $0x1b8] sm:$0xff]
    %v2282 = vld [vmem:[#allocation14 + $0x1c0] sm:$0xff]
    %v2283 = vld [vmem:[#allocation14 + $0x1c8] sm:$0xff]
    %v2284 = vld [vmem:[#allocation14 + $0x1d0] sm:$0xff]
    %v2285 = vld [vmem:[#allocation14 + $0x1d8] sm:$0xff]
    %v2286 = vld [vmem:[#allocation14 + $0x1e0] sm:$0xff]
    %v2287 = vld [vmem:[#allocation14 + $0x1e8] sm:$0xff]
    %v2288 = vld [vmem:[#allocation14 + $0x1f0] sm:$0xff]
    %v2289 = vld [vmem:[#allocation14 + $0x1f8] sm:$0xff]
    %v2290 = vld [vmem:[#allocation14 + $0x200] sm:$0xff]
    %v2291 = vld [vmem:[#allocation14 + $0x208] sm:$0xff]
    %v2292 = vld [vmem:[#allocation14 + $0x210] sm:$0xff]
    %v2293 = vld [vmem:[#allocation14 + $0x218] sm:$0xff]
    %v2294 = vld [vmem:[#allocation14 + $0x220] sm:$0xff]
    %v2295 = vld [vmem:[#allocation14 + $0x228] sm:$0xff]
    %v2296 = vld [vmem:[#allocation14 + $0x230] sm:$0xff]
    %v2297 = vld [vmem:[#allocation14 + $0x238] sm:$0xff]
    %v2298 = vld [vmem:[#allocation14 + $0x240] sm:$0xff]
    %v2299 = vld [vmem:[#allocation14 + $0x248] sm:$0xff]
    %v2300 = vld [vmem:[#allocation14 + $0x250] sm:$0xff]
    %v2301 = vld [vmem:[#allocation14 + $0x258] sm:$0xff]
    %v2302 = vld [vmem:[#allocation14 + $0x260] sm:$0xff]
    %v2303 = vld [vmem:[#allocation14 + $0x268] sm:$0xff]
    %v2304 = vld [vmem:[#allocation14 + $0x270] sm:$0xff]
    %v2305 = vld [vmem:[#allocation14 + $0x278] sm:$0xff]
    %v2306 = vld [vmem:[#allocation14 + $0x280] sm:$0xff]
    %v2307 = vld [vmem:[#allocation14 + $0x288] sm:$0xff]
    %v2308 = vld [vmem:[#allocation14 + $0x290] sm:$0xff]
    %v2309 = vld [vmem:[#allocation14 + $0x298] sm:$0xff]
    %v2310 = vld [vmem:[#allocation14 + $0x2a0] sm:$0xff]
    %v2311 = vld [vmem:[#allocation14 + $0x2a8] sm:$0xff]
    %v2312 = vld [vmem:[#allocation14 + $0x2b0] sm:$0xff]
    %v2313 = vld [vmem:[#allocation14 + $0x2b8] sm:$0xff]
    %v2314 = vld [vmem:[#allocation14 + $0x2c0] sm:$0xff]
    %v2315 = vld [vmem:[#allocation14 + $0x2c8] sm:$0xff]
    %v2316 = vld [vmem:[#allocation14 + $0x2d0] sm:$0xff]
    %v2317 = vld [vmem:[#allocation14 + $0x2d8] sm:$0xff]
    %v2318 = vld [vmem:[#allocation14 + $0x2e0] sm:$0xff]
    %v2319 = vld [vmem:[#allocation14 + $0x2e8] sm:$0xff]
    %v2320 = vld [vmem:[#allocation14 + $0x2f0] sm:$0xff]
    %v2321 = vld [vmem:[#allocation14 + $0x2f8] sm:$0xff]
    %v2322 = vld [vmem:[#allocation14 + $0x300] sm:$0xff]
    %v2323 = vld [vmem:[#allocation14 + $0x308] sm:$0xff]
    %v2324 = vld [vmem:[#allocation14 + $0x310] sm:$0xff]
    %v2325 = vld [vmem:[#allocation14 + $0x318] sm:$0xff]
    %v2326 = vld [vmem:[#allocation14 + $0x320] sm:$0xff]
    %v2327 = vld [vmem:[#allocation14 + $0x328] sm:$0xff]
    %v2328 = vld [vmem:[#allocation14 + $0x330] sm:$0xff]
    %v2329 = vld [vmem:[#allocation14 + $0x338] sm:$0xff]
    %v2330 = vld [vmem:[#allocation14 + $0x340] sm:$0xff]
    %v2331 = vld [vmem:[#allocation14 + $0x348] sm:$0xff]
    %v2332 = vld [vmem:[#allocation14 + $0x350] sm:$0xff]
    %v2333 = vld [vmem:[#allocation14 + $0x358] sm:$0xff]
    %v2334 = vld [vmem:[#allocation14 + $0x360] sm:$0xff]
    %v2335 = vld [vmem:[#allocation14 + $0x368] sm:$0xff]
    %v2336 = vld [vmem:[#allocation14 + $0x370] sm:$0xff]
    %v2337 = vld [vmem:[#allocation14 + $0x378] sm:$0xff]
    %v2338 = vld [vmem:[#allocation14 + $0x380] sm:$0xff]
    %v2339 = vld [vmem:[#allocation14 + $0x388] sm:$0xff]
    %v2340 = vld [vmem:[#allocation14 + $0x390] sm:$0xff]
    %v2341 = vld [vmem:[#allocation14 + $0x398] sm:$0xff]
    %v2342 = vld [vmem:[#allocation14 + $0x3a0] sm:$0xff]
    %v2343 = vld [vmem:[#allocation14 + $0x3a8] sm:$0xff]
    %v2344 = vld [vmem:[#allocation14 + $0x3b0] sm:$0xff]
    %v2345 = vld [vmem:[#allocation14 + $0x3b8] sm:$0xff]
    %v2346 = vld [vmem:[#allocation14 + $0x3c0] sm:$0xff]
    %v2347 = vld [vmem:[#allocation14 + $0x3c8] sm:$0xff]
    %v2348 = vld [vmem:[#allocation14 + $0x3d0] sm:$0xff]
    %v2349 = vld [vmem:[#allocation14 + $0x3d8] sm:$0xff]
    %v2350 = vld [vmem:[#allocation14 + $0x3e0] sm:$0xff]
    %v2351 = vld [vmem:[#allocation14 + $0x3e8] sm:$0xff]
    %v2352 = vld [vmem:[#allocation14 + $0x3f0] sm:$0xff]
    %v2353 = vld [vmem:[#allocation14 + $0x3f8] sm:$0xff]
    %v2354 = vld [vmem:[#allocation14 + $0x400] sm:$0xff]
    %v2355 = vld [vmem:[#allocation14 + $0x408] sm:$0xff]
    %v2356 = vld [vmem:[#allocation14 + $0x410] sm:$0xff]
    %v2357 = vld [vmem:[#allocation14 + $0x418] sm:$0xff]
    %v2358 = vld [vmem:[#allocation14 + $0x420] sm:$0xff]
    %v2359 = vld [vmem:[#allocation14 + $0x428] sm:$0xff]
    %v2360 = vld [vmem:[#allocation14 + $0x430] sm:$0xff]
    %v2361 = vld [vmem:[#allocation14 + $0x438] sm:$0xff]
    %v2362 = vld [vmem:[#allocation14 + $0x440] sm:$0xff]
    %v2363 = vld [vmem:[#allocation14 + $0x448] sm:$0xff]
    %v2364 = vld [vmem:[#allocation14 + $0x450] sm:$0xff]
    %v2365 = vld [vmem:[#allocation14 + $0x458] sm:$0xff]
    %v2366 = vld [vmem:[#allocation14 + $0x460] sm:$0xff]
    %v2367 = vld [vmem:[#allocation14 + $0x468] sm:$0xff]
    %v2368 = vld [vmem:[#allocation14 + $0x470] sm:$0xff]
    %v2369 = vld [vmem:[#allocation14 + $0x478] sm:$0xff]
    %v2370 = vld [vmem:[#allocation14 + $0x480] sm:$0xff]
    %v2371 = vld [vmem:[#allocation14 + $0x488] sm:$0xff]
    %v2372 = vld [vmem:[#allocation14 + $0x490] sm:$0xff]
    %v2373 = vld [vmem:[#allocation14 + $0x498] sm:$0xff]
    %v2374 = vld [vmem:[#allocation14 + $0x4a0] sm:$0xff]
    %v2375 = vld [vmem:[#allocation14 + $0x4a8] sm:$0xff]
    %v2376 = vld [vmem:[#allocation14 + $0x4b0] sm:$0xff]
    %v2377 = vld [vmem:[#allocation14 + $0x4b8] sm:$0xff]
    %v2378 = vld [vmem:[#allocation14 + $0x4c0] sm:$0xff]
    %v2379 = vld [vmem:[#allocation14 + $0x4c8] sm:$0xff]
    %v2380 = vld [vmem:[#allocation14 + $0x4d0] sm:$0xff]
    %v2381 = vld [vmem:[#allocation14 + $0x4d8] sm:$0xff]
    %v2382 = vld [vmem:[#allocation14 + $0x4e0] sm:$0xff]
    %v2383 = vld [vmem:[#allocation14 + $0x4e8] sm:$0xff]
    %v2384 = vld [vmem:[#allocation14 + $0x4f0] sm:$0xff]
    %v2385 = vld [vmem:[#allocation14 + $0x4f8] sm:$0xff]
    %v2386 = vld [vmem:[#allocation14 + $0x500] sm:$0xff]
    %v2387 = vld [vmem:[#allocation14 + $0x508] sm:$0xff]
    %v2388 = vld [vmem:[#allocation14 + $0x510] sm:$0xff]
    %v2389 = vld [vmem:[#allocation14 + $0x518] sm:$0xff]
    %v2390 = vld [vmem:[#allocation14 + $0x520] sm:$0xff]
    %v2391 = vld [vmem:[#allocation14 + $0x528] sm:$0xff]
    %v2392 = vld [vmem:[#allocation14 + $0x530] sm:$0xff]
    %v2393 = vld [vmem:[#allocation14 + $0x538] sm:$0xff]
    %v2394 = vld [vmem:[#allocation14 + $0x540] sm:$0xff]
    %v2395 = vld [vmem:[#allocation14 + $0x548] sm:$0xff]
    %v2396 = vld [vmem:[#allocation14 + $0x550] sm:$0xff]
    %v2397 = vld [vmem:[#allocation14 + $0x558] sm:$0xff]
    %v2398 = vld [vmem:[#allocation14 + $0x560] sm:$0xff]
    %v2399 = vld [vmem:[#allocation14 + $0x568] sm:$0xff]
    %v2400 = vld [vmem:[#allocation14 + $0x570] sm:$0xff]
    %v2401 = vld [vmem:[#allocation14 + $0x578] sm:$0xff]
    %v2402 = vld [vmem:[#allocation14 + $0x580] sm:$0xff]
    %v2403 = vld [vmem:[#allocation14 + $0x588] sm:$0xff]
    %v2404 = vld [vmem:[#allocation14 + $0x590] sm:$0xff]
    %v2405 = vld [vmem:[#allocation14 + $0x598] sm:$0xff]
    %v2406 = vld [vmem:[#allocation14 + $0x5a0] sm:$0xff]
    %v2407 = vld [vmem:[#allocation14 + $0x5a8] sm:$0xff]
    %v2408 = vld [vmem:[#allocation14 + $0x5b0] sm:$0xff]
    %v2409 = vld [vmem:[#allocation14 + $0x5b8] sm:$0xff]
    %v2410 = vld [vmem:[#allocation14 + $0x5c0] sm:$0xff]
    %v2411 = vld [vmem:[#allocation14 + $0x5c8] sm:$0xff]
    %v2412 = vld [vmem:[#allocation14 + $0x5d0] sm:$0xff]
    %v2413 = vld [vmem:[#allocation14 + $0x5d8] sm:$0xff]
    %v2414 = vld [vmem:[#allocation14 + $0x5e0] sm:$0xff]
    %v2415 = vld [vmem:[#allocation14 + $0x5e8] sm:$0xff]
    %v2416 = vld [vmem:[#allocation14 + $0x5f0] sm:$0xff]
    %v2417 = vld [vmem:[#allocation14 + $0x5f8] sm:$0xff]
    %v2418 = vld [vmem:[#allocation14 + $0x600] sm:$0xff]
    %v2419 = vld [vmem:[#allocation14 + $0x608] sm:$0xff]
    %v2420 = vld [vmem:[#allocation14 + $0x610] sm:$0xff]
    %v2421 = vld [vmem:[#allocation14 + $0x618] sm:$0xff]
    %v2422 = vld [vmem:[#allocation14 + $0x620] sm:$0xff]
    %v2423 = vld [vmem:[#allocation14 + $0x628] sm:$0xff]
    %v2424 = vld [vmem:[#allocation14 + $0x630] sm:$0xff]
    %v2425 = vld [vmem:[#allocation14 + $0x638] sm:$0xff]
    %v2426 = vld [vmem:[#allocation14 + $0x640] sm:$0xff]
    %v2427 = vld [vmem:[#allocation14 + $0x648] sm:$0xff]
    %v2428 = vld [vmem:[#allocation14 + $0x650] sm:$0xff]
    %v2429 = vld [vmem:[#allocation14 + $0x658] sm:$0xff]
    %v2430 = vld [vmem:[#allocation14 + $0x660] sm:$0xff]
    %v2431 = vld [vmem:[#allocation14 + $0x668] sm:$0xff]
    %v2432 = vld [vmem:[#allocation14 + $0x670] sm:$0xff]
    %v2433 = vld [vmem:[#allocation14 + $0x678] sm:$0xff]
    %v2434 = vld [vmem:[#allocation14 + $0x680] sm:$0xff]
    %v2435 = vld [vmem:[#allocation14 + $0x688] sm:$0xff]
    %v2436 = vld [vmem:[#allocation14 + $0x690] sm:$0xff]
    %v2437 = vld [vmem:[#allocation14 + $0x698] sm:$0xff]
    %v2438 = vld [vmem:[#allocation14 + $0x6a0] sm:$0xff]
    %v2439 = vld [vmem:[#allocation14 + $0x6a8] sm:$0xff]
    %v2440 = vld [vmem:[#allocation14 + $0x6b0] sm:$0xff]
    %v2441 = vld [vmem:[#allocation14 + $0x6b8] sm:$0xff]
    %v2442 = vld [vmem:[#allocation14 + $0x6c0] sm:$0xff]
    %v2443 = vld [vmem:[#allocation14 + $0x6c8] sm:$0xff]
    %v2444 = vld [vmem:[#allocation14 + $0x6d0] sm:$0xff]
    %v2445 = vld [vmem:[#allocation14 + $0x6d8] sm:$0xff]
    %v2446 = vld [vmem:[#allocation14 + $0x6e0] sm:$0xff]
    %v2447 = vld [vmem:[#allocation14 + $0x6e8] sm:$0xff]
    %v2448 = vld [vmem:[#allocation14 + $0x6f0] sm:$0xff]
    %v2449 = vld [vmem:[#allocation14 + $0x6f8] sm:$0xff]
    %v2450 = vld [vmem:[#allocation14 + $0x700] sm:$0xff]
    %v2451 = vld [vmem:[#allocation14 + $0x708] sm:$0xff]
    %v2452 = vld [vmem:[#allocation14 + $0x710] sm:$0xff]
    %v2453 = vld [vmem:[#allocation14 + $0x718] sm:$0xff]
    %v2454 = vld [vmem:[#allocation14 + $0x720] sm:$0xff]
    %v2455 = vld [vmem:[#allocation14 + $0x728] sm:$0xff]
    %v2456 = vld [vmem:[#allocation14 + $0x730] sm:$0xff]
    %v2457 = vld [vmem:[#allocation14 + $0x738] sm:$0xff]
    %v2458 = vld [vmem:[#allocation14 + $0x740] sm:$0xff]
    %v2459 = vld [vmem:[#allocation14 + $0x748] sm:$0xff]
    %v2460 = vld [vmem:[#allocation14 + $0x750] sm:$0xff]
    %v2461 = vld [vmem:[#allocation14 + $0x758] sm:$0xff]
    %v2462 = vld [vmem:[#allocation14 + $0x760] sm:$0xff]
    %v2463 = vld [vmem:[#allocation14 + $0x768] sm:$0xff]
    %v2464 = vld [vmem:[#allocation14 + $0x770] sm:$0xff]
    %v2465 = vld [vmem:[#allocation14 + $0x778] sm:$0xff]
    %v2466 = vld [vmem:[#allocation14 + $0x780] sm:$0xff]
    %v2467 = vld [vmem:[#allocation14 + $0x788] sm:$0xff]
    %v2468 = vld [vmem:[#allocation14 + $0x790] sm:$0xff]
    %v2469 = vld [vmem:[#allocation14 + $0x798] sm:$0xff]
    %v2470 = vld [vmem:[#allocation14 + $0x7a0] sm:$0xff]
    %v2471 = vld [vmem:[#allocation14 + $0x7a8] sm:$0xff]
    %v2472 = vld [vmem:[#allocation14 + $0x7b0] sm:$0xff]
    %v2473 = vld [vmem:[#allocation14 + $0x7b8] sm:$0xff]
    %v2474 = vld [vmem:[#allocation14 + $0x7c0] sm:$0xff]
    %v2475 = vld [vmem:[#allocation14 + $0x7c8] sm:$0xff]
    %v2476 = vld [vmem:[#allocation14 + $0x7d0] sm:$0xff]
    %v2477 = vld [vmem:[#allocation14 + $0x7d8] sm:$0xff]
    %v2478 = vld [vmem:[#allocation14 + $0x7e0] sm:$0xff]
    %v2479 = vld [vmem:[#allocation14 + $0x7e8] sm:$0xff]
    %v2480 = vld [vmem:[#allocation14 + $0x7f0] sm:$0xff]
    %v2481 = vld [vmem:[#allocation14 + $0x7f8] sm:$0xff]
    %v2482 = vld [vmem:[#allocation14 + $0x800] sm:$0xff]
    %v2483 = vld [vmem:[#allocation14 + $0x808] sm:$0xff]
    %v2484 = vld [vmem:[#allocation14 + $0x810] sm:$0xff]
    %v2485 = vld [vmem:[#allocation14 + $0x818] sm:$0xff]
    %v2486 = vld [vmem:[#allocation14 + $0x820] sm:$0xff]
    %v2487 = vld [vmem:[#allocation14 + $0x828] sm:$0xff]
    %v2488 = vld [vmem:[#allocation14 + $0x830] sm:$0xff]
    %v2489 = vld [vmem:[#allocation14 + $0x838] sm:$0xff]
    %v2490 = vld [vmem:[#allocation14 + $0x840] sm:$0xff]
    %v2491 = vld [vmem:[#allocation14 + $0x848] sm:$0xff]
    %v2492 = vld [vmem:[#allocation14 + $0x850] sm:$0xff]
    %v2493 = vld [vmem:[#allocation14 + $0x858] sm:$0xff]
    %v2494 = vld [vmem:[#allocation14 + $0x860] sm:$0xff]
    %v2495 = vld [vmem:[#allocation14 + $0x868] sm:$0xff]
    %v2496 = vld [vmem:[#allocation14 + $0x870] sm:$0xff]
    %v2497 = vld [vmem:[#allocation14 + $0x878] sm:$0xff]
    %v2498 = vld [vmem:[#allocation14 + $0x880] sm:$0xff]
    %v2499 = vld [vmem:[#allocation14 + $0x888] sm:$0xff]
    %v2500 = vld [vmem:[#allocation14 + $0x890] sm:$0xff]
    %v2501 = vld [vmem:[#allocation14 + $0x898] sm:$0xff]
    %v2502 = vld [vmem:[#allocation14 + $0x8a0] sm:$0xff]
    %v2503 = vld [vmem:[#allocation14 + $0x8a8] sm:$0xff]
    %v2504 = vld [vmem:[#allocation14 + $0x8b0] sm:$0xff]
    %v2505 = vld [vmem:[#allocation14 + $0x8b8] sm:$0xff]
    %v2506 = vld [vmem:[#allocation14 + $0x8c0] sm:$0xff]
    %v2507 = vld [vmem:[#allocation14 + $0x8c8] sm:$0xff]
    %v2508 = vld [vmem:[#allocation14 + $0x8d0] sm:$0xff]
    %v2509 = vld [vmem:[#allocation14 + $0x8d8] sm:$0xff]
    %v2510 = vld [vmem:[#allocation14 + $0x8e0] sm:$0xff]
    %v2511 = vld [vmem:[#allocation14 + $0x8e8] sm:$0xff]
    %v2512 = vld [vmem:[#allocation14 + $0x8f0] sm:$0xff]
    %v2513 = vld [vmem:[#allocation14 + $0x8f8] sm:$0xff]
    %v2514 = vld [vmem:[#allocation14 + $0x900] sm:$0xff]
    %v2515 = vld [vmem:[#allocation14 + $0x908] sm:$0xff]
    %v2516 = vld [vmem:[#allocation14 + $0x910] sm:$0xff]
    %v2517 = vld [vmem:[#allocation14 + $0x918] sm:$0xff]
    %v2518 = vld [vmem:[#allocation14 + $0x920] sm:$0xff]
    %v2519 = vld [vmem:[#allocation14 + $0x928] sm:$0xff]
    %v2520 = vld [vmem:[#allocation14 + $0x930] sm:$0xff]
    %v2521 = vld [vmem:[#allocation14 + $0x938] sm:$0xff]
    %v2522 = vld [vmem:[#allocation14 + $0x940] sm:$0xff]
    %v2523 = vld [vmem:[#allocation14 + $0x948] sm:$0xff]
    %v2524 = vld [vmem:[#allocation14 + $0x950] sm:$0xff]
    %v2525 = vld [vmem:[#allocation14 + $0x958] sm:$0xff]
    %v2526 = vld [vmem:[#allocation14 + $0x960] sm:$0xff]
    %v2527 = vld [vmem:[#allocation14 + $0x968] sm:$0xff]
    %v2528 = vld [vmem:[#allocation14 + $0x970] sm:$0xff]
    %v2529 = vld [vmem:[#allocation14 + $0x978] sm:$0xff]
    %v2530 = vld [vmem:[#allocation14 + $0x980] sm:$0xff]
    %v2531 = vld [vmem:[#allocation14 + $0x988] sm:$0xff]
    %v2532 = vld [vmem:[#allocation14 + $0x990] sm:$0xff]
    %v2533 = vld [vmem:[#allocation14 + $0x998] sm:$0xff]
    %v2534 = vld [vmem:[#allocation14 + $0x9a0] sm:$0xff]
    %v2535 = vld [vmem:[#allocation14 + $0x9a8] sm:$0xff]
    %v2536 = vld [vmem:[#allocation14 + $0x9b0] sm:$0xff]
    %v2537 = vld [vmem:[#allocation14 + $0x9b8] sm:$0xff]
    %v2538 = vld [vmem:[#allocation14 + $0x9c0] sm:$0xff]
    %v2539 = vld [vmem:[#allocation14 + $0x9c8] sm:$0xff]
    %v2540 = vld [vmem:[#allocation14 + $0x9d0] sm:$0xff]
    %v2541 = vld [vmem:[#allocation14 + $0x9d8] sm:$0xff]
    %v2542 = vld [vmem:[#allocation14 + $0x9e0] sm:$0xff]
    %v2543 = vld [vmem:[#allocation14 + $0x9e8] sm:$0xff]
    %v2544 = vld [vmem:[#allocation14 + $0x9f0] sm:$0xff]
    %v2545 = vld [vmem:[#allocation14 + $0x9f8] sm:$0xff]
    %v2546 = vld [vmem:[#allocation14 + $0xa00] sm:$0xff]
    %v2547 = vld [vmem:[#allocation14 + $0xa08] sm:$0xff]
    %v2548 = vld [vmem:[#allocation14 + $0xa10] sm:$0xff]
    %v2549 = vld [vmem:[#allocation14 + $0xa18] sm:$0xff]
    %v2550 = vld [vmem:[#allocation14 + $0xa20] sm:$0xff]
    %v2551 = vld [vmem:[#allocation14 + $0xa28] sm:$0xff]
    %v2552 = vld [vmem:[#allocation14 + $0xa30] sm:$0xff]
    %v2553 = vld [vmem:[#allocation14 + $0xa38] sm:$0xff]
    %v2554 = vld [vmem:[#allocation14 + $0xa40] sm:$0xff]
    %v2555 = vld [vmem:[#allocation14 + $0xa48] sm:$0xff]
    %v2556 = vld [vmem:[#allocation14 + $0xa50] sm:$0xff]
    %v2557 = vld [vmem:[#allocation14 + $0xa58] sm:$0xff]
    %v2558 = vld [vmem:[#allocation14 + $0xa60] sm:$0xff]
    %v2559 = vld [vmem:[#allocation14 + $0xa68] sm:$0xff]
    %v2560 = vld [vmem:[#allocation14 + $0xa70] sm:$0xff]
    %v2561 = vld [vmem:[#allocation14 + $0xa78] sm:$0xff]
    %v2562 = vld [vmem:[#allocation14 + $0xa80] sm:$0xff]
    %v2563 = vld [vmem:[#allocation14 + $0xa88] sm:$0xff]
    %v2564 = vld [vmem:[#allocation14 + $0xa90] sm:$0xff]
    %v2565 = vld [vmem:[#allocation14 + $0xa98] sm:$0xff]
    %v2566 = vld [vmem:[#allocation14 + $0xaa0] sm:$0xff]
    %v2567 = vld [vmem:[#allocation14 + $0xaa8] sm:$0xff]
    %v2568 = vld [vmem:[#allocation14 + $0xab0] sm:$0xff]
    %v2569 = vld [vmem:[#allocation14 + $0xab8] sm:$0xff]
    %v2570 = vld [vmem:[#allocation14 + $0xac0] sm:$0xff]
    %v2571 = vld [vmem:[#allocation14 + $0xac8] sm:$0xff]
    %v2572 = vld [vmem:[#allocation14 + $0xad0] sm:$0xff]
    %v2573 = vld [vmem:[#allocation14 + $0xad8] sm:$0xff]
    %v2574 = vld [vmem:[#allocation14 + $0xae0] sm:$0xff]
    %v2575 = vld [vmem:[#allocation14 + $0xae8] sm:$0xff]
    %v2576 = vld [vmem:[#allocation14 + $0xaf0] sm:$0xff]
    %v2577 = vld [vmem:[#allocation14 + $0xaf8] sm:$0xff]
    %v2578 = vld [vmem:[#allocation14 + $0xb00] sm:$0xff]
    %v2579 = vld [vmem:[#allocation14 + $0xb08] sm:$0xff]
    %v2580 = vld [vmem:[#allocation14 + $0xb10] sm:$0xff]
    %v2581 = vld [vmem:[#allocation14 + $0xb18] sm:$0xff]
    %v2582 = vld [vmem:[#allocation14 + $0xb20] sm:$0xff]
    %v2583 = vld [vmem:[#allocation14 + $0xb28] sm:$0xff]
    %v2584 = vld [vmem:[#allocation14 + $0xb30] sm:$0xff]
    %v2585 = vld [vmem:[#allocation14 + $0xb38] sm:$0xff]
    %v2586 = vld [vmem:[#allocation14 + $0xb40] sm:$0xff]
    %v2587 = vld [vmem:[#allocation14 + $0xb48] sm:$0xff]
    %v2588 = vld [vmem:[#allocation14 + $0xb50] sm:$0xff]
    %v2589 = vld [vmem:[#allocation14 + $0xb58] sm:$0xff]
    %v2590 = vld [vmem:[#allocation14 + $0xb60] sm:$0xff]
    %v2591 = vld [vmem:[#allocation14 + $0xb68] sm:$0xff]
    %v2592 = vld [vmem:[#allocation14 + $0xb70] sm:$0xff]
    %v2593 = vld [vmem:[#allocation14 + $0xb78] sm:$0xff]
    %v2594 = vld [vmem:[#allocation14 + $0xb80] sm:$0xff]
    %v2595 = vld [vmem:[#allocation14 + $0xb88] sm:$0xff]
    %v2596 = vld [vmem:[#allocation14 + $0xb90] sm:$0xff]
    %v2597 = vld [vmem:[#allocation14 + $0xb98] sm:$0xff]
    %v2598 = vld [vmem:[#allocation14 + $0xba0] sm:$0xff]
    %v2599 = vld [vmem:[#allocation14 + $0xba8] sm:$0xff]
    %v2600 = vld [vmem:[#allocation14 + $0xbb0] sm:$0xff]
    %v2601 = vld [vmem:[#allocation14 + $0xbb8] sm:$0xff]
    %v2602 = vld [vmem:[#allocation14 + $0xbc0] sm:$0xff]
    %v2603 = vld [vmem:[#allocation14 + $0xbc8] sm:$0xff]
    %v2604 = vld [vmem:[#allocation14 + $0xbd0] sm:$0xff]
    %v2605 = vld [vmem:[#allocation14 + $0xbd8] sm:$0xff]
    %v2606 = vld [vmem:[#allocation14 + $0xbe0] sm:$0xff]
    %v2607 = vld [vmem:[#allocation14 + $0xbe8] sm:$0xff]
    %v2608 = vld [vmem:[#allocation14 + $0xbf0] sm:$0xff]
    %v2609 = vld [vmem:[#allocation14 + $0xbf8] sm:$0xff]
    %v2610 = vld [vmem:[#allocation16] sm:$0xff]
    %v2612 = vlaneseq
    %v2613 = vshrl.u32 %v2612, 7
    %v2614 = vsub.s32 0, %v2613
    %v2615 = vrot.slane %v2610, %v2614
    %v2616 = vlaneseq
    %v2617 = vshrl.u32 %v2616, 7
    %v2618 = vsub.s32 1, %v2617
    %v2619 = vrot.slane %v2610, %v2618
    %v2620 = vlaneseq
    %v2621 = vshrl.u32 %v2620, 7
    %v2622 = vsub.s32 2, %v2621
    %v2623 = vrot.slane %v2610, %v2622
    %v2624 = vlaneseq
    %v2625 = vshrl.u32 %v2624, 7
    %v2626 = vsub.s32 3, %v2625
    %v2627 = vrot.slane %v2610, %v2626
    %v2628 = vlaneseq
    %v2629 = vshrl.u32 %v2628, 7
    %v2630 = vsub.s32 4, %v2629
    %v2631 = vrot.slane %v2610, %v2630
    %v2632 = vlaneseq
    %v2633 = vshrl.u32 %v2632, 7
    %v2634 = vsub.s32 5, %v2633
    %v2635 = vrot.slane %v2610, %v2634
    %v2636 = vlaneseq
    %v2637 = vshrl.u32 %v2636, 7
    %v2638 = vsub.s32 6, %v2637
    %v2639 = vrot.slane %v2610, %v2638
    %v2640 = vlaneseq
    %v2641 = vshrl.u32 %v2640, 7
    %v2642 = vsub.s32 7, %v2641
    %v2643 = vrot.slane %v2610, %v2642
    %v3036 = vunpack.c.l.b16 %v2226
    %v3037 = vunpack.c.h.b16 %v2226
    %v3038 = vunpack.c.l.b16 %v2227
    %v3039 = vunpack.c.h.b16 %v2227
    %v3040 = vunpack.c.l.b16 %v2228
    %v3041 = vunpack.c.h.b16 %v2228
    %v3042 = vunpack.c.l.b16 %v2229
    %v3043 = vunpack.c.h.b16 %v2229
    %v3044 = vunpack.c.l.b16 %v2230
    %v3045 = vunpack.c.h.b16 %v2230
    %v3046 = vunpack.c.l.b16 %v2231
    %v3047 = vunpack.c.h.b16 %v2231
    %v3048 = vunpack.c.l.b16 %v2232
    %v3049 = vunpack.c.h.b16 %v2232
    %v3050 = vunpack.c.l.b16 %v2233
    %v3051 = vunpack.c.h.b16 %v2233
    %v3052 = vunpack.c.l.b16 %v2234
    %v3053 = vunpack.c.h.b16 %v2234
    %v3054 = vunpack.c.l.b16 %v2235
    %v3055 = vunpack.c.h.b16 %v2235
    %v3056 = vunpack.c.l.b16 %v2236
    %v3057 = vunpack.c.h.b16 %v2236
    %v3058 = vunpack.c.l.b16 %v2237
    %v3059 = vunpack.c.h.b16 %v2237
    %v3060 = vunpack.c.l.b16 %v2238
    %v3061 = vunpack.c.h.b16 %v2238
    %v3062 = vunpack.c.l.b16 %v2239
    %v3063 = vunpack.c.h.b16 %v2239
    %v3064 = vunpack.c.l.b16 %v2240
    %v3065 = vunpack.c.h.b16 %v2240
    %v3066 = vunpack.c.l.b16 %v2241
    %v3067 = vunpack.c.h.b16 %v2241
    %v3068 = vunpack.c.l.b16 %v2242
    %v3069 = vunpack.c.h.b16 %v2242
    %v3070 = vunpack.c.l.b16 %v2243
    %v3071 = vunpack.c.h.b16 %v2243
    %v3072 = vunpack.c.l.b16 %v2244
    %v3073 = vunpack.c.h.b16 %v2244
    %v3074 = vunpack.c.l.b16 %v2245
    %v3075 = vunpack.c.h.b16 %v2245
    %v3076 = vunpack.c.l.b16 %v2246
    %v3077 = vunpack.c.h.b16 %v2246
    %v3078 = vunpack.c.l.b16 %v2247
    %v3079 = vunpack.c.h.b16 %v2247
    %v3080 = vunpack.c.l.b16 %v2248
    %v3081 = vunpack.c.h.b16 %v2248
    %v3082 = vunpack.c.l.b16 %v2249
    %v3083 = vunpack.c.h.b16 %v2249
    %v3084 = vunpack.c.l.b16 %v2250
    %v3085 = vunpack.c.h.b16 %v2250
    %v3086 = vunpack.c.l.b16 %v2251
    %v3087 = vunpack.c.h.b16 %v2251
    %v3088 = vunpack.c.l.b16 %v2252
    %v3089 = vunpack.c.h.b16 %v2252
    %v3090 = vunpack.c.l.b16 %v2253
    %v3091 = vunpack.c.h.b16 %v2253
    %v3092 = vunpack.c.l.b16 %v2254
    %v3093 = vunpack.c.h.b16 %v2254
    %v3094 = vunpack.c.l.b16 %v2255
    %v3095 = vunpack.c.h.b16 %v2255
    %v3096 = vunpack.c.l.b16 %v2256
    %v3097 = vunpack.c.h.b16 %v2256
    %v3098 = vunpack.c.l.b16 %v2257
    %v3099 = vunpack.c.h.b16 %v2257
    %v3100 = vunpack.c.l.b16 %v2258
    %v3101 = vunpack.c.h.b16 %v2258
    %v3102 = vunpack.c.l.b16 %v2259
    %v3103 = vunpack.c.h.b16 %v2259
    %v3104 = vunpack.c.l.b16 %v2260
    %v3105 = vunpack.c.h.b16 %v2260
    %v3106 = vunpack.c.l.b16 %v2261
    %v3107 = vunpack.c.h.b16 %v2261
    %v3108 = vunpack.c.l.b16 %v2262
    %v3109 = vunpack.c.h.b16 %v2262
    %v3110 = vunpack.c.l.b16 %v2263
    %v3111 = vunpack.c.h.b16 %v2263
    %v3112 = vunpack.c.l.b16 %v2264
    %v3113 = vunpack.c.h.b16 %v2264
    %v3114 = vunpack.c.l.b16 %v2265
    %v3115 = vunpack.c.h.b16 %v2265
    %v3116 = vunpack.c.l.b16 %v2266
    %v3117 = vunpack.c.h.b16 %v2266
    %v3118 = vunpack.c.l.b16 %v2267
    %v3119 = vunpack.c.h.b16 %v2267
    %v3120 = vunpack.c.l.b16 %v2268
    %v3121 = vunpack.c.h.b16 %v2268
    %v3122 = vunpack.c.l.b16 %v2269
    %v3123 = vunpack.c.h.b16 %v2269
    %v3124 = vunpack.c.l.b16 %v2270
    %v3125 = vunpack.c.h.b16 %v2270
    %v3126 = vunpack.c.l.b16 %v2271
    %v3127 = vunpack.c.h.b16 %v2271
    %v3128 = vunpack.c.l.b16 %v2272
    %v3129 = vunpack.c.h.b16 %v2272
    %v3130 = vunpack.c.l.b16 %v2273
    %v3131 = vunpack.c.h.b16 %v2273
    %v3132 = vunpack.c.l.b16 %v2274
    %v3133 = vunpack.c.h.b16 %v2274
    %v3134 = vunpack.c.l.b16 %v2275
    %v3135 = vunpack.c.h.b16 %v2275
    %v3136 = vunpack.c.l.b16 %v2276
    %v3137 = vunpack.c.h.b16 %v2276
    %v3138 = vunpack.c.l.b16 %v2277
    %v3139 = vunpack.c.h.b16 %v2277
    %v3140 = vunpack.c.l.b16 %v2278
    %v3141 = vunpack.c.h.b16 %v2278
    %v3142 = vunpack.c.l.b16 %v2279
    %v3143 = vunpack.c.h.b16 %v2279
    %v3144 = vunpack.c.l.b16 %v2280
    %v3145 = vunpack.c.h.b16 %v2280
    %v3146 = vunpack.c.l.b16 %v2281
    %v3147 = vunpack.c.h.b16 %v2281
    %v3148 = vunpack.c.l.b16 %v2282
    %v3149 = vunpack.c.h.b16 %v2282
    %v3150 = vunpack.c.l.b16 %v2283
    %v3151 = vunpack.c.h.b16 %v2283
    %v3152 = vunpack.c.l.b16 %v2284
    %v3153 = vunpack.c.h.b16 %v2284
    %v3154 = vunpack.c.l.b16 %v2285
    %v3155 = vunpack.c.h.b16 %v2285
    %v3156 = vunpack.c.l.b16 %v2286
    %v3157 = vunpack.c.h.b16 %v2286
    %v3158 = vunpack.c.l.b16 %v2287
    %v3159 = vunpack.c.h.b16 %v2287
    %v3160 = vunpack.c.l.b16 %v2288
    %v3161 = vunpack.c.h.b16 %v2288
    %v3162 = vunpack.c.l.b16 %v2289
    %v3163 = vunpack.c.h.b16 %v2289
    %v3164 = vunpack.c.l.b16 %v2290
    %v3165 = vunpack.c.h.b16 %v2290
    %v3166 = vunpack.c.l.b16 %v2291
    %v3167 = vunpack.c.h.b16 %v2291
    %v3168 = vunpack.c.l.b16 %v2292
    %v3169 = vunpack.c.h.b16 %v2292
    %v3170 = vunpack.c.l.b16 %v2293
    %v3171 = vunpack.c.h.b16 %v2293
    %v3172 = vunpack.c.l.b16 %v2294
    %v3173 = vunpack.c.h.b16 %v2294
    %v3174 = vunpack.c.l.b16 %v2295
    %v3175 = vunpack.c.h.b16 %v2295
    %v3176 = vunpack.c.l.b16 %v2296
    %v3177 = vunpack.c.h.b16 %v2296
    %v3178 = vunpack.c.l.b16 %v2297
    %v3179 = vunpack.c.h.b16 %v2297
    %v3180 = vunpack.c.l.b16 %v2298
    %v3181 = vunpack.c.h.b16 %v2298
    %v3182 = vunpack.c.l.b16 %v2299
    %v3183 = vunpack.c.h.b16 %v2299
    %v3184 = vunpack.c.l.b16 %v2300
    %v3185 = vunpack.c.h.b16 %v2300
    %v3186 = vunpack.c.l.b16 %v2301
    %v3187 = vunpack.c.h.b16 %v2301
    %v3188 = vunpack.c.l.b16 %v2302
    %v3189 = vunpack.c.h.b16 %v2302
    %v3190 = vunpack.c.l.b16 %v2303
    %v3191 = vunpack.c.h.b16 %v2303
    %v3192 = vunpack.c.l.b16 %v2304
    %v3193 = vunpack.c.h.b16 %v2304
    %v3194 = vunpack.c.l.b16 %v2305
    %v3195 = vunpack.c.h.b16 %v2305
    %v3196 = vunpack.c.l.b16 %v2306
    %v3197 = vunpack.c.h.b16 %v2306
    %v3198 = vunpack.c.l.b16 %v2307
    %v3199 = vunpack.c.h.b16 %v2307
    %v3200 = vunpack.c.l.b16 %v2308
    %v3201 = vunpack.c.h.b16 %v2308
    %v3202 = vunpack.c.l.b16 %v2309
    %v3203 = vunpack.c.h.b16 %v2309
    %v3204 = vunpack.c.l.b16 %v2310
    %v3205 = vunpack.c.h.b16 %v2310
    %v3206 = vunpack.c.l.b16 %v2311
    %v3207 = vunpack.c.h.b16 %v2311
    %v3208 = vunpack.c.l.b16 %v2312
    %v3209 = vunpack.c.h.b16 %v2312
    %v3210 = vunpack.c.l.b16 %v2313
    %v3211 = vunpack.c.h.b16 %v2313
    %v3212 = vunpack.c.l.b16 %v2314
    %v3213 = vunpack.c.h.b16 %v2314
    %v3214 = vunpack.c.l.b16 %v2315
    %v3215 = vunpack.c.h.b16 %v2315
    %v3216 = vunpack.c.l.b16 %v2316
    %v3217 = vunpack.c.h.b16 %v2316
    %v3218 = vunpack.c.l.b16 %v2317
    %v3219 = vunpack.c.h.b16 %v2317
    %v3220 = vunpack.c.l.b16 %v2318
    %v3221 = vunpack.c.h.b16 %v2318
    %v3222 = vunpack.c.l.b16 %v2319
    %v3223 = vunpack.c.h.b16 %v2319
    %v3224 = vunpack.c.l.b16 %v2320
    %v3225 = vunpack.c.h.b16 %v2320
    %v3226 = vunpack.c.l.b16 %v2321
    %v3227 = vunpack.c.h.b16 %v2321
    %v3228 = vunpack.c.l.b16 %v2322
    %v3229 = vunpack.c.h.b16 %v2322
    %v3230 = vunpack.c.l.b16 %v2323
    %v3231 = vunpack.c.h.b16 %v2323
    %v3232 = vunpack.c.l.b16 %v2324
    %v3233 = vunpack.c.h.b16 %v2324
    %v3234 = vunpack.c.l.b16 %v2325
    %v3235 = vunpack.c.h.b16 %v2325
    %v3236 = vunpack.c.l.b16 %v2326
    %v3237 = vunpack.c.h.b16 %v2326
    %v3238 = vunpack.c.l.b16 %v2327
    %v3239 = vunpack.c.h.b16 %v2327
    %v3240 = vunpack.c.l.b16 %v2328
    %v3241 = vunpack.c.h.b16 %v2328
    %v3242 = vunpack.c.l.b16 %v2329
    %v3243 = vunpack.c.h.b16 %v2329
    %v3244 = vunpack.c.l.b16 %v2330
    %v3245 = vunpack.c.h.b16 %v2330
    %v3246 = vunpack.c.l.b16 %v2331
    %v3247 = vunpack.c.h.b16 %v2331
    %v3248 = vunpack.c.l.b16 %v2332
    %v3249 = vunpack.c.h.b16 %v2332
    %v3250 = vunpack.c.l.b16 %v2333
    %v3251 = vunpack.c.h.b16 %v2333
    %v3252 = vunpack.c.l.b16 %v2334
    %v3253 = vunpack.c.h.b16 %v2334
    %v3254 = vunpack.c.l.b16 %v2335
    %v3255 = vunpack.c.h.b16 %v2335
    %v3256 = vunpack.c.l.b16 %v2336
    %v3257 = vunpack.c.h.b16 %v2336
    %v3258 = vunpack.c.l.b16 %v2337
    %v3259 = vunpack.c.h.b16 %v2337
    %v3260 = vunpack.c.l.b16 %v2338
    %v3261 = vunpack.c.h.b16 %v2338
    %v3262 = vunpack.c.l.b16 %v2339
    %v3263 = vunpack.c.h.b16 %v2339
    %v3264 = vunpack.c.l.b16 %v2340
    %v3265 = vunpack.c.h.b16 %v2340
    %v3266 = vunpack.c.l.b16 %v2341
    %v3267 = vunpack.c.h.b16 %v2341
    %v3268 = vunpack.c.l.b16 %v2342
    %v3269 = vunpack.c.h.b16 %v2342
    %v3270 = vunpack.c.l.b16 %v2343
    %v3271 = vunpack.c.h.b16 %v2343
    %v3272 = vunpack.c.l.b16 %v2344
    %v3273 = vunpack.c.h.b16 %v2344
    %v3274 = vunpack.c.l.b16 %v2345
    %v3275 = vunpack.c.h.b16 %v2345
    %v3276 = vunpack.c.l.b16 %v2346
    %v3277 = vunpack.c.h.b16 %v2346
    %v3278 = vunpack.c.l.b16 %v2347
    %v3279 = vunpack.c.h.b16 %v2347
    %v3280 = vunpack.c.l.b16 %v2348
    %v3281 = vunpack.c.h.b16 %v2348
    %v3282 = vunpack.c.l.b16 %v2349
    %v3283 = vunpack.c.h.b16 %v2349
    %v3284 = vunpack.c.l.b16 %v2350
    %v3285 = vunpack.c.h.b16 %v2350
    %v3286 = vunpack.c.l.b16 %v2351
    %v3287 = vunpack.c.h.b16 %v2351
    %v3288 = vunpack.c.l.b16 %v2352
    %v3289 = vunpack.c.h.b16 %v2352
    %v3290 = vunpack.c.l.b16 %v2353
    %v3291 = vunpack.c.h.b16 %v2353
    %v3292 = vunpack.c.l.b16 %v2354
    %v3293 = vunpack.c.h.b16 %v2354
    %v3294 = vunpack.c.l.b16 %v2355
    %v3295 = vunpack.c.h.b16 %v2355
    %v3296 = vunpack.c.l.b16 %v2356
    %v3297 = vunpack.c.h.b16 %v2356
    %v3298 = vunpack.c.l.b16 %v2357
    %v3299 = vunpack.c.h.b16 %v2357
    %v3300 = vunpack.c.l.b16 %v2358
    %v3301 = vunpack.c.h.b16 %v2358
    %v3302 = vunpack.c.l.b16 %v2359
    %v3303 = vunpack.c.h.b16 %v2359
    %v3304 = vunpack.c.l.b16 %v2360
    %v3305 = vunpack.c.h.b16 %v2360
    %v3306 = vunpack.c.l.b16 %v2361
    %v3307 = vunpack.c.h.b16 %v2361
    %v3308 = vunpack.c.l.b16 %v2362
    %v3309 = vunpack.c.h.b16 %v2362
    %v3310 = vunpack.c.l.b16 %v2363
    %v3311 = vunpack.c.h.b16 %v2363
    %v3312 = vunpack.c.l.b16 %v2364
    %v3313 = vunpack.c.h.b16 %v2364
    %v3314 = vunpack.c.l.b16 %v2365
    %v3315 = vunpack.c.h.b16 %v2365
    %v3316 = vunpack.c.l.b16 %v2366
    %v3317 = vunpack.c.h.b16 %v2366
    %v3318 = vunpack.c.l.b16 %v2367
    %v3319 = vunpack.c.h.b16 %v2367
    %v3320 = vunpack.c.l.b16 %v2368
    %v3321 = vunpack.c.h.b16 %v2368
    %v3322 = vunpack.c.l.b16 %v2369
    %v3323 = vunpack.c.h.b16 %v2369
    %v3324 = vunpack.c.l.b16 %v2370
    %v3325 = vunpack.c.h.b16 %v2370
    %v3326 = vunpack.c.l.b16 %v2371
    %v3327 = vunpack.c.h.b16 %v2371
    %v3328 = vunpack.c.l.b16 %v2372
    %v3329 = vunpack.c.h.b16 %v2372
    %v3330 = vunpack.c.l.b16 %v2373
    %v3331 = vunpack.c.h.b16 %v2373
    %v3332 = vunpack.c.l.b16 %v2374
    %v3333 = vunpack.c.h.b16 %v2374
    %v3334 = vunpack.c.l.b16 %v2375
    %v3335 = vunpack.c.h.b16 %v2375
    %v3336 = vunpack.c.l.b16 %v2376
    %v3337 = vunpack.c.h.b16 %v2376
    %v3338 = vunpack.c.l.b16 %v2377
    %v3339 = vunpack.c.h.b16 %v2377
    %v3340 = vunpack.c.l.b16 %v2378
    %v3341 = vunpack.c.h.b16 %v2378
    %v3342 = vunpack.c.l.b16 %v2379
    %v3343 = vunpack.c.h.b16 %v2379
    %v3344 = vunpack.c.l.b16 %v2380
    %v3345 = vunpack.c.h.b16 %v2380
    %v3346 = vunpack.c.l.b16 %v2381
    %v3347 = vunpack.c.h.b16 %v2381
    %v3348 = vunpack.c.l.b16 %v2382
    %v3349 = vunpack.c.h.b16 %v2382
    %v3350 = vunpack.c.l.b16 %v2383
    %v3351 = vunpack.c.h.b16 %v2383
    %v3352 = vunpack.c.l.b16 %v2384
    %v3353 = vunpack.c.h.b16 %v2384
    %v3354 = vunpack.c.l.b16 %v2385
    %v3355 = vunpack.c.h.b16 %v2385
    %v3356 = vunpack.c.l.b16 %v2386
    %v3357 = vunpack.c.h.b16 %v2386
    %v3358 = vunpack.c.l.b16 %v2387
    %v3359 = vunpack.c.h.b16 %v2387
    %v3360 = vunpack.c.l.b16 %v2388
    %v3361 = vunpack.c.h.b16 %v2388
    %v3362 = vunpack.c.l.b16 %v2389
    %v3363 = vunpack.c.h.b16 %v2389
    %v3364 = vunpack.c.l.b16 %v2390
    %v3365 = vunpack.c.h.b16 %v2390
    %v3366 = vunpack.c.l.b16 %v2391
    %v3367 = vunpack.c.h.b16 %v2391
    %v3368 = vunpack.c.l.b16 %v2392
    %v3369 = vunpack.c.h.b16 %v2392
    %v3370 = vunpack.c.l.b16 %v2393
    %v3371 = vunpack.c.h.b16 %v2393
    %v3372 = vunpack.c.l.b16 %v2394
    %v3373 = vunpack.c.h.b16 %v2394
    %v3374 = vunpack.c.l.b16 %v2395
    %v3375 = vunpack.c.h.b16 %v2395
    %v3376 = vunpack.c.l.b16 %v2396
    %v3377 = vunpack.c.h.b16 %v2396
    %v3378 = vunpack.c.l.b16 %v2397
    %v3379 = vunpack.c.h.b16 %v2397
    %v3380 = vunpack.c.l.b16 %v2398
    %v3381 = vunpack.c.h.b16 %v2398
    %v3382 = vunpack.c.l.b16 %v2399
    %v3383 = vunpack.c.h.b16 %v2399
    %v3384 = vunpack.c.l.b16 %v2400
    %v3385 = vunpack.c.h.b16 %v2400
    %v3386 = vunpack.c.l.b16 %v2401
    %v3387 = vunpack.c.h.b16 %v2401
    %v3388 = vunpack.c.l.b16 %v2402
    %v3389 = vunpack.c.h.b16 %v2402
    %v3390 = vunpack.c.l.b16 %v2403
    %v3391 = vunpack.c.h.b16 %v2403
    %v3392 = vunpack.c.l.b16 %v2404
    %v3393 = vunpack.c.h.b16 %v2404
    %v3394 = vunpack.c.l.b16 %v2405
    %v3395 = vunpack.c.h.b16 %v2405
    %v3396 = vunpack.c.l.b16 %v2406
    %v3397 = vunpack.c.h.b16 %v2406
    %v3398 = vunpack.c.l.b16 %v2407
    %v3399 = vunpack.c.h.b16 %v2407
    %v3400 = vunpack.c.l.b16 %v2408
    %v3401 = vunpack.c.h.b16 %v2408
    %v3402 = vunpack.c.l.b16 %v2409
    %v3403 = vunpack.c.h.b16 %v2409
    %v3404 = vunpack.c.l.b16 %v2410
    %v3405 = vunpack.c.h.b16 %v2410
    %v3406 = vunpack.c.l.b16 %v2411
    %v3407 = vunpack.c.h.b16 %v2411
    %v3408 = vunpack.c.l.b16 %v2412
    %v3409 = vunpack.c.h.b16 %v2412
    %v3410 = vunpack.c.l.b16 %v2413
    %v3411 = vunpack.c.h.b16 %v2413
    %v3412 = vunpack.c.l.b16 %v2414
    %v3413 = vunpack.c.h.b16 %v2414
    %v3414 = vunpack.c.l.b16 %v2415
    %v3415 = vunpack.c.h.b16 %v2415
    %v3416 = vunpack.c.l.b16 %v2416
    %v3417 = vunpack.c.h.b16 %v2416
    %v3418 = vunpack.c.l.b16 %v2417
    %v3419 = vunpack.c.h.b16 %v2417
    %v3420 = vunpack.c.l.b16 %v2418
    %v3421 = vunpack.c.h.b16 %v2418
    %v3422 = vunpack.c.l.b16 %v2419
    %v3423 = vunpack.c.h.b16 %v2419
    %v3424 = vunpack.c.l.b16 %v2420
    %v3425 = vunpack.c.h.b16 %v2420
    %v3426 = vunpack.c.l.b16 %v2421
    %v3427 = vunpack.c.h.b16 %v2421
    %v3428 = vunpack.c.l.b16 %v2422
    %v3429 = vunpack.c.h.b16 %v2422
    %v3430 = vunpack.c.l.b16 %v2423
    %v3431 = vunpack.c.h.b16 %v2423
    %v3432 = vunpack.c.l.b16 %v2424
    %v3433 = vunpack.c.h.b16 %v2424
    %v3434 = vunpack.c.l.b16 %v2425
    %v3435 = vunpack.c.h.b16 %v2425
    %v3436 = vunpack.c.l.b16 %v2426
    %v3437 = vunpack.c.h.b16 %v2426
    %v3438 = vunpack.c.l.b16 %v2427
    %v3439 = vunpack.c.h.b16 %v2427
    %v3440 = vunpack.c.l.b16 %v2428
    %v3441 = vunpack.c.h.b16 %v2428
    %v3442 = vunpack.c.l.b16 %v2429
    %v3443 = vunpack.c.h.b16 %v2429
    %v3444 = vunpack.c.l.b16 %v2430
    %v3445 = vunpack.c.h.b16 %v2430
    %v3446 = vunpack.c.l.b16 %v2431
    %v3447 = vunpack.c.h.b16 %v2431
    %v3448 = vunpack.c.l.b16 %v2432
    %v3449 = vunpack.c.h.b16 %v2432
    %v3450 = vunpack.c.l.b16 %v2433
    %v3451 = vunpack.c.h.b16 %v2433
    %v3452 = vunpack.c.l.b16 %v2434
    %v3453 = vunpack.c.h.b16 %v2434
    %v3454 = vunpack.c.l.b16 %v2435
    %v3455 = vunpack.c.h.b16 %v2435
    %v3456 = vunpack.c.l.b16 %v2436
    %v3457 = vunpack.c.h.b16 %v2436
    %v3458 = vunpack.c.l.b16 %v2437
    %v3459 = vunpack.c.h.b16 %v2437
    %v3460 = vunpack.c.l.b16 %v2438
    %v3461 = vunpack.c.h.b16 %v2438
    %v3462 = vunpack.c.l.b16 %v2439
    %v3463 = vunpack.c.h.b16 %v2439
    %v3464 = vunpack.c.l.b16 %v2440
    %v3465 = vunpack.c.h.b16 %v2440
    %v3466 = vunpack.c.l.b16 %v2441
    %v3467 = vunpack.c.h.b16 %v2441
    %v3468 = vunpack.c.l.b16 %v2442
    %v3469 = vunpack.c.h.b16 %v2442
    %v3470 = vunpack.c.l.b16 %v2443
    %v3471 = vunpack.c.h.b16 %v2443
    %v3472 = vunpack.c.l.b16 %v2444
    %v3473 = vunpack.c.h.b16 %v2444
    %v3474 = vunpack.c.l.b16 %v2445
    %v3475 = vunpack.c.h.b16 %v2445
    %v3476 = vunpack.c.l.b16 %v2446
    %v3477 = vunpack.c.h.b16 %v2446
    %v3478 = vunpack.c.l.b16 %v2447
    %v3479 = vunpack.c.h.b16 %v2447
    %v3480 = vunpack.c.l.b16 %v2448
    %v3481 = vunpack.c.h.b16 %v2448
    %v3482 = vunpack.c.l.b16 %v2449
    %v3483 = vunpack.c.h.b16 %v2449
    %v3484 = vunpack.c.l.b16 %v2450
    %v3485 = vunpack.c.h.b16 %v2450
    %v3486 = vunpack.c.l.b16 %v2451
    %v3487 = vunpack.c.h.b16 %v2451
    %v3488 = vunpack.c.l.b16 %v2452
    %v3489 = vunpack.c.h.b16 %v2452
    %v3490 = vunpack.c.l.b16 %v2453
    %v3491 = vunpack.c.h.b16 %v2453
    %v3492 = vunpack.c.l.b16 %v2454
    %v3493 = vunpack.c.h.b16 %v2454
    %v3494 = vunpack.c.l.b16 %v2455
    %v3495 = vunpack.c.h.b16 %v2455
    %v3496 = vunpack.c.l.b16 %v2456
    %v3497 = vunpack.c.h.b16 %v2456
    %v3498 = vunpack.c.l.b16 %v2457
    %v3499 = vunpack.c.h.b16 %v2457
    %v3500 = vunpack.c.l.b16 %v2458
    %v3501 = vunpack.c.h.b16 %v2458
    %v3502 = vunpack.c.l.b16 %v2459
    %v3503 = vunpack.c.h.b16 %v2459
    %v3504 = vunpack.c.l.b16 %v2460
    %v3505 = vunpack.c.h.b16 %v2460
    %v3506 = vunpack.c.l.b16 %v2461
    %v3507 = vunpack.c.h.b16 %v2461
    %v3508 = vunpack.c.l.b16 %v2462
    %v3509 = vunpack.c.h.b16 %v2462
    %v3510 = vunpack.c.l.b16 %v2463
    %v3511 = vunpack.c.h.b16 %v2463
    %v3512 = vunpack.c.l.b16 %v2464
    %v3513 = vunpack.c.h.b16 %v2464
    %v3514 = vunpack.c.l.b16 %v2465
    %v3515 = vunpack.c.h.b16 %v2465
    %v3516 = vunpack.c.l.b16 %v2466
    %v3517 = vunpack.c.h.b16 %v2466
    %v3518 = vunpack.c.l.b16 %v2467
    %v3519 = vunpack.c.h.b16 %v2467
    %v3520 = vunpack.c.l.b16 %v2468
    %v3521 = vunpack.c.h.b16 %v2468
    %v3522 = vunpack.c.l.b16 %v2469
    %v3523 = vunpack.c.h.b16 %v2469
    %v3524 = vunpack.c.l.b16 %v2470
    %v3525 = vunpack.c.h.b16 %v2470
    %v3526 = vunpack.c.l.b16 %v2471
    %v3527 = vunpack.c.h.b16 %v2471
    %v3528 = vunpack.c.l.b16 %v2472
    %v3529 = vunpack.c.h.b16 %v2472
    %v3530 = vunpack.c.l.b16 %v2473
    %v3531 = vunpack.c.h.b16 %v2473
    %v3532 = vunpack.c.l.b16 %v2474
    %v3533 = vunpack.c.h.b16 %v2474
    %v3534 = vunpack.c.l.b16 %v2475
    %v3535 = vunpack.c.h.b16 %v2475
    %v3536 = vunpack.c.l.b16 %v2476
    %v3537 = vunpack.c.h.b16 %v2476
    %v3538 = vunpack.c.l.b16 %v2477
    %v3539 = vunpack.c.h.b16 %v2477
    %v3540 = vunpack.c.l.b16 %v2478
    %v3541 = vunpack.c.h.b16 %v2478
    %v3542 = vunpack.c.l.b16 %v2479
    %v3543 = vunpack.c.h.b16 %v2479
    %v3544 = vunpack.c.l.b16 %v2480
    %v3545 = vunpack.c.h.b16 %v2480
    %v3546 = vunpack.c.l.b16 %v2481
    %v3547 = vunpack.c.h.b16 %v2481
    %v3548 = vunpack.c.l.b16 %v2482
    %v3549 = vunpack.c.h.b16 %v2482
    %v3550 = vunpack.c.l.b16 %v2483
    %v3551 = vunpack.c.h.b16 %v2483
    %v3552 = vunpack.c.l.b16 %v2484
    %v3553 = vunpack.c.h.b16 %v2484
    %v3554 = vunpack.c.l.b16 %v2485
    %v3555 = vunpack.c.h.b16 %v2485
    %v3556 = vunpack.c.l.b16 %v2486
    %v3557 = vunpack.c.h.b16 %v2486
    %v3558 = vunpack.c.l.b16 %v2487
    %v3559 = vunpack.c.h.b16 %v2487
    %v3560 = vunpack.c.l.b16 %v2488
    %v3561 = vunpack.c.h.b16 %v2488
    %v3562 = vunpack.c.l.b16 %v2489
    %v3563 = vunpack.c.h.b16 %v2489
    %v3564 = vunpack.c.l.b16 %v2490
    %v3565 = vunpack.c.h.b16 %v2490
    %v3566 = vunpack.c.l.b16 %v2491
    %v3567 = vunpack.c.h.b16 %v2491
    %v3568 = vunpack.c.l.b16 %v2492
    %v3569 = vunpack.c.h.b16 %v2492
    %v3570 = vunpack.c.l.b16 %v2493
    %v3571 = vunpack.c.h.b16 %v2493
    %v3572 = vunpack.c.l.b16 %v2494
    %v3573 = vunpack.c.h.b16 %v2494
    %v3574 = vunpack.c.l.b16 %v2495
    %v3575 = vunpack.c.h.b16 %v2495
    %v3576 = vunpack.c.l.b16 %v2496
    %v3577 = vunpack.c.h.b16 %v2496
    %v3578 = vunpack.c.l.b16 %v2497
    %v3579 = vunpack.c.h.b16 %v2497
    %v3580 = vunpack.c.l.b16 %v2498
    %v3581 = vunpack.c.h.b16 %v2498
    %v3582 = vunpack.c.l.b16 %v2499
    %v3583 = vunpack.c.h.b16 %v2499
    %v3584 = vunpack.c.l.b16 %v2500
    %v3585 = vunpack.c.h.b16 %v2500
    %v3586 = vunpack.c.l.b16 %v2501
    %v3587 = vunpack.c.h.b16 %v2501
    %v3588 = vunpack.c.l.b16 %v2502
    %v3589 = vunpack.c.h.b16 %v2502
    %v3590 = vunpack.c.l.b16 %v2503
    %v3591 = vunpack.c.h.b16 %v2503
    %v3592 = vunpack.c.l.b16 %v2504
    %v3593 = vunpack.c.h.b16 %v2504
    %v3594 = vunpack.c.l.b16 %v2505
    %v3595 = vunpack.c.h.b16 %v2505
    %v3596 = vunpack.c.l.b16 %v2506
    %v3597 = vunpack.c.h.b16 %v2506
    %v3598 = vunpack.c.l.b16 %v2507
    %v3599 = vunpack.c.h.b16 %v2507
    %v3600 = vunpack.c.l.b16 %v2508
    %v3601 = vunpack.c.h.b16 %v2508
    %v3602 = vunpack.c.l.b16 %v2509
    %v3603 = vunpack.c.h.b16 %v2509
    %v3604 = vunpack.c.l.b16 %v2510
    %v3605 = vunpack.c.h.b16 %v2510
    %v3606 = vunpack.c.l.b16 %v2511
    %v3607 = vunpack.c.h.b16 %v2511
    %v3608 = vunpack.c.l.b16 %v2512
    %v3609 = vunpack.c.h.b16 %v2512
    %v3610 = vunpack.c.l.b16 %v2513
    %v3611 = vunpack.c.h.b16 %v2513
    %v3612 = vunpack.c.l.b16 %v2514
    %v3613 = vunpack.c.h.b16 %v2514
    %v3614 = vunpack.c.l.b16 %v2515
    %v3615 = vunpack.c.h.b16 %v2515
    %v3616 = vunpack.c.l.b16 %v2516
    %v3617 = vunpack.c.h.b16 %v2516
    %v3618 = vunpack.c.l.b16 %v2517
    %v3619 = vunpack.c.h.b16 %v2517
    %v3620 = vunpack.c.l.b16 %v2518
    %v3621 = vunpack.c.h.b16 %v2518
    %v3622 = vunpack.c.l.b16 %v2519
    %v3623 = vunpack.c.h.b16 %v2519
    %v3624 = vunpack.c.l.b16 %v2520
    %v3625 = vunpack.c.h.b16 %v2520
    %v3626 = vunpack.c.l.b16 %v2521
    %v3627 = vunpack.c.h.b16 %v2521
    %v3628 = vunpack.c.l.b16 %v2522
    %v3629 = vunpack.c.h.b16 %v2522
    %v3630 = vunpack.c.l.b16 %v2523
    %v3631 = vunpack.c.h.b16 %v2523
    %v3632 = vunpack.c.l.b16 %v2524
    %v3633 = vunpack.c.h.b16 %v2524
    %v3634 = vunpack.c.l.b16 %v2525
    %v3635 = vunpack.c.h.b16 %v2525
    %v3636 = vunpack.c.l.b16 %v2526
    %v3637 = vunpack.c.h.b16 %v2526
    %v3638 = vunpack.c.l.b16 %v2527
    %v3639 = vunpack.c.h.b16 %v2527
    %v3640 = vunpack.c.l.b16 %v2528
    %v3641 = vunpack.c.h.b16 %v2528
    %v3642 = vunpack.c.l.b16 %v2529
    %v3643 = vunpack.c.h.b16 %v2529
    %v3644 = vunpack.c.l.b16 %v2530
    %v3645 = vunpack.c.h.b16 %v2530
    %v3646 = vunpack.c.l.b16 %v2531
    %v3647 = vunpack.c.h.b16 %v2531
    %v3648 = vunpack.c.l.b16 %v2532
    %v3649 = vunpack.c.h.b16 %v2532
    %v3650 = vunpack.c.l.b16 %v2533
    %v3651 = vunpack.c.h.b16 %v2533
    %v3652 = vunpack.c.l.b16 %v2534
    %v3653 = vunpack.c.h.b16 %v2534
    %v3654 = vunpack.c.l.b16 %v2535
    %v3655 = vunpack.c.h.b16 %v2535
    %v3656 = vunpack.c.l.b16 %v2536
    %v3657 = vunpack.c.h.b16 %v2536
    %v3658 = vunpack.c.l.b16 %v2537
    %v3659 = vunpack.c.h.b16 %v2537
    %v3660 = vunpack.c.l.b16 %v2538
    %v3661 = vunpack.c.h.b16 %v2538
    %v3662 = vunpack.c.l.b16 %v2539
    %v3663 = vunpack.c.h.b16 %v2539
    %v3664 = vunpack.c.l.b16 %v2540
    %v3665 = vunpack.c.h.b16 %v2540
    %v3666 = vunpack.c.l.b16 %v2541
    %v3667 = vunpack.c.h.b16 %v2541
    %v3668 = vunpack.c.l.b16 %v2542
    %v3669 = vunpack.c.h.b16 %v2542
    %v3670 = vunpack.c.l.b16 %v2543
    %v3671 = vunpack.c.h.b16 %v2543
    %v3672 = vunpack.c.l.b16 %v2544
    %v3673 = vunpack.c.h.b16 %v2544
    %v3674 = vunpack.c.l.b16 %v2545
    %v3675 = vunpack.c.h.b16 %v2545
    %v3676 = vunpack.c.l.b16 %v2546
    %v3677 = vunpack.c.h.b16 %v2546
    %v3678 = vunpack.c.l.b16 %v2547
    %v3679 = vunpack.c.h.b16 %v2547
    %v3680 = vunpack.c.l.b16 %v2548
    %v3681 = vunpack.c.h.b16 %v2548
    %v3682 = vunpack.c.l.b16 %v2549
    %v3683 = vunpack.c.h.b16 %v2549
    %v3684 = vunpack.c.l.b16 %v2550
    %v3685 = vunpack.c.h.b16 %v2550
    %v3686 = vunpack.c.l.b16 %v2551
    %v3687 = vunpack.c.h.b16 %v2551
    %v3688 = vunpack.c.l.b16 %v2552
    %v3689 = vunpack.c.h.b16 %v2552
    %v3690 = vunpack.c.l.b16 %v2553
    %v3691 = vunpack.c.h.b16 %v2553
    %v3692 = vunpack.c.l.b16 %v2554
    %v3693 = vunpack.c.h.b16 %v2554
    %v3694 = vunpack.c.l.b16 %v2555
    %v3695 = vunpack.c.h.b16 %v2555
    %v3696 = vunpack.c.l.b16 %v2556
    %v3697 = vunpack.c.h.b16 %v2556
    %v3698 = vunpack.c.l.b16 %v2557
    %v3699 = vunpack.c.h.b16 %v2557
    %v3700 = vunpack.c.l.b16 %v2558
    %v3701 = vunpack.c.h.b16 %v2558
    %v3702 = vunpack.c.l.b16 %v2559
    %v3703 = vunpack.c.h.b16 %v2559
    %v3704 = vunpack.c.l.b16 %v2560
    %v3705 = vunpack.c.h.b16 %v2560
    %v3706 = vunpack.c.l.b16 %v2561
    %v3707 = vunpack.c.h.b16 %v2561
    %v3708 = vunpack.c.l.b16 %v2562
    %v3709 = vunpack.c.h.b16 %v2562
    %v3710 = vunpack.c.l.b16 %v2563
    %v3711 = vunpack.c.h.b16 %v2563
    %v3712 = vunpack.c.l.b16 %v2564
    %v3713 = vunpack.c.h.b16 %v2564
    %v3714 = vunpack.c.l.b16 %v2565
    %v3715 = vunpack.c.h.b16 %v2565
    %v3716 = vunpack.c.l.b16 %v2566
    %v3717 = vunpack.c.h.b16 %v2566
    %v3718 = vunpack.c.l.b16 %v2567
    %v3719 = vunpack.c.h.b16 %v2567
    %v3720 = vunpack.c.l.b16 %v2568
    %v3721 = vunpack.c.h.b16 %v2568
    %v3722 = vunpack.c.l.b16 %v2569
    %v3723 = vunpack.c.h.b16 %v2569
    %v3724 = vunpack.c.l.b16 %v2570
    %v3725 = vunpack.c.h.b16 %v2570
    %v3726 = vunpack.c.l.b16 %v2571
    %v3727 = vunpack.c.h.b16 %v2571
    %v3728 = vunpack.c.l.b16 %v2572
    %v3729 = vunpack.c.h.b16 %v2572
    %v3730 = vunpack.c.l.b16 %v2573
    %v3731 = vunpack.c.h.b16 %v2573
    %v3732 = vunpack.c.l.b16 %v2574
    %v3733 = vunpack.c.h.b16 %v2574
    %v3734 = vunpack.c.l.b16 %v2575
    %v3735 = vunpack.c.h.b16 %v2575
    %v3736 = vunpack.c.l.b16 %v2576
    %v3737 = vunpack.c.h.b16 %v2576
    %v3738 = vunpack.c.l.b16 %v2577
    %v3739 = vunpack.c.h.b16 %v2577
    %v3740 = vunpack.c.l.b16 %v2578
    %v3741 = vunpack.c.h.b16 %v2578
    %v3742 = vunpack.c.l.b16 %v2579
    %v3743 = vunpack.c.h.b16 %v2579
    %v3744 = vunpack.c.l.b16 %v2580
    %v3745 = vunpack.c.h.b16 %v2580
    %v3746 = vunpack.c.l.b16 %v2581
    %v3747 = vunpack.c.h.b16 %v2581
    %v3748 = vunpack.c.l.b16 %v2582
    %v3749 = vunpack.c.h.b16 %v2582
    %v3750 = vunpack.c.l.b16 %v2583
    %v3751 = vunpack.c.h.b16 %v2583
    %v3752 = vunpack.c.l.b16 %v2584
    %v3753 = vunpack.c.h.b16 %v2584
    %v3754 = vunpack.c.l.b16 %v2585
    %v3755 = vunpack.c.h.b16 %v2585
    %v3756 = vunpack.c.l.b16 %v2586
    %v3757 = vunpack.c.h.b16 %v2586
    %v3758 = vunpack.c.l.b16 %v2587
    %v3759 = vunpack.c.h.b16 %v2587
    %v3760 = vunpack.c.l.b16 %v2588
    %v3761 = vunpack.c.h.b16 %v2588
    %v3762 = vunpack.c.l.b16 %v2589
    %v3763 = vunpack.c.h.b16 %v2589
    %v3764 = vunpack.c.l.b16 %v2590
    %v3765 = vunpack.c.h.b16 %v2590
    %v3766 = vunpack.c.l.b16 %v2591
    %v3767 = vunpack.c.h.b16 %v2591
    %v3768 = vunpack.c.l.b16 %v2592
    %v3769 = vunpack.c.h.b16 %v2592
    %v3770 = vunpack.c.l.b16 %v2593
    %v3771 = vunpack.c.h.b16 %v2593
    %v3772 = vunpack.c.l.b16 %v2594
    %v3773 = vunpack.c.h.b16 %v2594
    %v3774 = vunpack.c.l.b16 %v2595
    %v3775 = vunpack.c.h.b16 %v2595
    %v3776 = vunpack.c.l.b16 %v2596
    %v3777 = vunpack.c.h.b16 %v2596
    %v3778 = vunpack.c.l.b16 %v2597
    %v3779 = vunpack.c.h.b16 %v2597
    %v3780 = vunpack.c.l.b16 %v2598
    %v3781 = vunpack.c.h.b16 %v2598
    %v3782 = vunpack.c.l.b16 %v2599
    %v3783 = vunpack.c.h.b16 %v2599
    %v3784 = vunpack.c.l.b16 %v2600
    %v3785 = vunpack.c.h.b16 %v2600
    %v3786 = vunpack.c.l.b16 %v2601
    %v3787 = vunpack.c.h.b16 %v2601
    %v3788 = vunpack.c.l.b16 %v2602
    %v3789 = vunpack.c.h.b16 %v2602
    %v3790 = vunpack.c.l.b16 %v2603
    %v3791 = vunpack.c.h.b16 %v2603
    %v3792 = vunpack.c.l.b16 %v2604
    %v3793 = vunpack.c.h.b16 %v2604
    %v3794 = vunpack.c.l.b16 %v2605
    %v3795 = vunpack.c.h.b16 %v2605
    %v3796 = vunpack.c.l.b16 %v2606
    %v3797 = vunpack.c.h.b16 %v2606
    %v3798 = vunpack.c.l.b16 %v2607
    %v3799 = vunpack.c.h.b16 %v2607
    %v3800 = vunpack.c.l.b16 %v2608
    %v3801 = vunpack.c.h.b16 %v2608
    %v3802 = vunpack.c.l.b16 %v2609
    %v3803 = vunpack.c.h.b16 %v2609
    %v3804 = vpack.c.b16 %v3044, %v3036
    %v3805 = vpack.c.b16 %v3045, %v3037
    %v3806 = vpack.c.b16 %v3046, %v3038
    %v3807 = vpack.c.b16 %v3047, %v3039
    %v3808 = vpack.c.b16 %v3048, %v3040
    %v3809 = vpack.c.b16 %v3049, %v3041
    %v3810 = vpack.c.b16 %v3050, %v3042
    %v3811 = vpack.c.b16 %v3051, %v3043
    %v3812 = vpack.c.b16 %v3060, %v3052
    %v3813 = vpack.c.b16 %v3061, %v3053
    %v3814 = vpack.c.b16 %v3062, %v3054
    %v3815 = vpack.c.b16 %v3063, %v3055
    %v3816 = vpack.c.b16 %v3064, %v3056
    %v3817 = vpack.c.b16 %v3065, %v3057
    %v3818 = vpack.c.b16 %v3066, %v3058
    %v3819 = vpack.c.b16 %v3067, %v3059
    %v3820 = vpack.c.b16 %v3076, %v3068
    %v3821 = vpack.c.b16 %v3077, %v3069
    %v3822 = vpack.c.b16 %v3078, %v3070
    %v3823 = vpack.c.b16 %v3079, %v3071
    %v3824 = vpack.c.b16 %v3080, %v3072
    %v3825 = vpack.c.b16 %v3081, %v3073
    %v3826 = vpack.c.b16 %v3082, %v3074
    %v3827 = vpack.c.b16 %v3083, %v3075
    %v3828 = vpack.c.b16 %v3092, %v3084
    %v3829 = vpack.c.b16 %v3093, %v3085
    %v3830 = vpack.c.b16 %v3094, %v3086
    %v3831 = vpack.c.b16 %v3095, %v3087
    %v3832 = vpack.c.b16 %v3096, %v3088
    %v3833 = vpack.c.b16 %v3097, %v3089
    %v3834 = vpack.c.b16 %v3098, %v3090
    %v3835 = vpack.c.b16 %v3099, %v3091
    %v3836 = vpack.c.b16 %v3108, %v3100
    %v3837 = vpack.c.b16 %v3109, %v3101
    %v3838 = vpack.c.b16 %v3110, %v3102
    %v3839 = vpack.c.b16 %v3111, %v3103
    %v3840 = vpack.c.b16 %v3112, %v3104
    %v3841 = vpack.c.b16 %v3113, %v3105
    %v3842 = vpack.c.b16 %v3114, %v3106
    %v3843 = vpack.c.b16 %v3115, %v3107
    %v3844 = vpack.c.b16 %v3124, %v3116
    %v3845 = vpack.c.b16 %v3125, %v3117
    %v3846 = vpack.c.b16 %v3126, %v3118
    %v3847 = vpack.c.b16 %v3127, %v3119
    %v3848 = vpack.c.b16 %v3128, %v3120
    %v3849 = vpack.c.b16 %v3129, %v3121
    %v3850 = vpack.c.b16 %v3130, %v3122
    %v3851 = vpack.c.b16 %v3131, %v3123
    %v3852 = vpack.c.b16 %v3140, %v3132
    %v3853 = vpack.c.b16 %v3141, %v3133
    %v3854 = vpack.c.b16 %v3142, %v3134
    %v3855 = vpack.c.b16 %v3143, %v3135
    %v3856 = vpack.c.b16 %v3144, %v3136
    %v3857 = vpack.c.b16 %v3145, %v3137
    %v3858 = vpack.c.b16 %v3146, %v3138
    %v3859 = vpack.c.b16 %v3147, %v3139
    %v3860 = vpack.c.b16 %v3156, %v3148
    %v3861 = vpack.c.b16 %v3157, %v3149
    %v3862 = vpack.c.b16 %v3158, %v3150
    %v3863 = vpack.c.b16 %v3159, %v3151
    %v3864 = vpack.c.b16 %v3160, %v3152
    %v3865 = vpack.c.b16 %v3161, %v3153
    %v3866 = vpack.c.b16 %v3162, %v3154
    %v3867 = vpack.c.b16 %v3163, %v3155
    %v3868 = vpack.c.b16 %v3172, %v3164
    %v3869 = vpack.c.b16 %v3173, %v3165
    %v3870 = vpack.c.b16 %v3174, %v3166
    %v3871 = vpack.c.b16 %v3175, %v3167
    %v3872 = vpack.c.b16 %v3176, %v3168
    %v3873 = vpack.c.b16 %v3177, %v3169
    %v3874 = vpack.c.b16 %v3178, %v3170
    %v3875 = vpack.c.b16 %v3179, %v3171
    %v3876 = vpack.c.b16 %v3188, %v3180
    %v3877 = vpack.c.b16 %v3189, %v3181
    %v3878 = vpack.c.b16 %v3190, %v3182
    %v3879 = vpack.c.b16 %v3191, %v3183
    %v3880 = vpack.c.b16 %v3192, %v3184
    %v3881 = vpack.c.b16 %v3193, %v3185
    %v3882 = vpack.c.b16 %v3194, %v3186
    %v3883 = vpack.c.b16 %v3195, %v3187
    %v3884 = vpack.c.b16 %v3204, %v3196
    %v3885 = vpack.c.b16 %v3205, %v3197
    %v3886 = vpack.c.b16 %v3206, %v3198
    %v3887 = vpack.c.b16 %v3207, %v3199
    %v3888 = vpack.c.b16 %v3208, %v3200
    %v3889 = vpack.c.b16 %v3209, %v3201
    %v3890 = vpack.c.b16 %v3210, %v3202
    %v3891 = vpack.c.b16 %v3211, %v3203
    %v3892 = vpack.c.b16 %v3220, %v3212
    %v3893 = vpack.c.b16 %v3221, %v3213
    %v3894 = vpack.c.b16 %v3222, %v3214
    %v3895 = vpack.c.b16 %v3223, %v3215
    %v3896 = vpack.c.b16 %v3224, %v3216
    %v3897 = vpack.c.b16 %v3225, %v3217
    %v3898 = vpack.c.b16 %v3226, %v3218
    %v3899 = vpack.c.b16 %v3227, %v3219
    %v3900 = vpack.c.b16 %v3236, %v3228
    %v3901 = vpack.c.b16 %v3237, %v3229
    %v3902 = vpack.c.b16 %v3238, %v3230
    %v3903 = vpack.c.b16 %v3239, %v3231
    %v3904 = vpack.c.b16 %v3240, %v3232
    %v3905 = vpack.c.b16 %v3241, %v3233
    %v3906 = vpack.c.b16 %v3242, %v3234
    %v3907 = vpack.c.b16 %v3243, %v3235
    %v3908 = vpack.c.b16 %v3252, %v3244
    %v3909 = vpack.c.b16 %v3253, %v3245
    %v3910 = vpack.c.b16 %v3254, %v3246
    %v3911 = vpack.c.b16 %v3255, %v3247
    %v3912 = vpack.c.b16 %v3256, %v3248
    %v3913 = vpack.c.b16 %v3257, %v3249
    %v3914 = vpack.c.b16 %v3258, %v3250
    %v3915 = vpack.c.b16 %v3259, %v3251
    %v3916 = vpack.c.b16 %v3268, %v3260
    %v3917 = vpack.c.b16 %v3269, %v3261
    %v3918 = vpack.c.b16 %v3270, %v3262
    %v3919 = vpack.c.b16 %v3271, %v3263
    %v3920 = vpack.c.b16 %v3272, %v3264
    %v3921 = vpack.c.b16 %v3273, %v3265
    %v3922 = vpack.c.b16 %v3274, %v3266
    %v3923 = vpack.c.b16 %v3275, %v3267
    %v3924 = vpack.c.b16 %v3284, %v3276
    %v3925 = vpack.c.b16 %v3285, %v3277
    %v3926 = vpack.c.b16 %v3286, %v3278
    %v3927 = vpack.c.b16 %v3287, %v3279
    %v3928 = vpack.c.b16 %v3288, %v3280
    %v3929 = vpack.c.b16 %v3289, %v3281
    %v3930 = vpack.c.b16 %v3290, %v3282
    %v3931 = vpack.c.b16 %v3291, %v3283
    %v3932 = vpack.c.b16 %v3300, %v3292
    %v3933 = vpack.c.b16 %v3301, %v3293
    %v3934 = vpack.c.b16 %v3302, %v3294
    %v3935 = vpack.c.b16 %v3303, %v3295
    %v3936 = vpack.c.b16 %v3304, %v3296
    %v3937 = vpack.c.b16 %v3305, %v3297
    %v3938 = vpack.c.b16 %v3306, %v3298
    %v3939 = vpack.c.b16 %v3307, %v3299
    %v3940 = vpack.c.b16 %v3316, %v3308
    %v3941 = vpack.c.b16 %v3317, %v3309
    %v3942 = vpack.c.b16 %v3318, %v3310
    %v3943 = vpack.c.b16 %v3319, %v3311
    %v3944 = vpack.c.b16 %v3320, %v3312
    %v3945 = vpack.c.b16 %v3321, %v3313
    %v3946 = vpack.c.b16 %v3322, %v3314
    %v3947 = vpack.c.b16 %v3323, %v3315
    %v3948 = vpack.c.b16 %v3332, %v3324
    %v3949 = vpack.c.b16 %v3333, %v3325
    %v3950 = vpack.c.b16 %v3334, %v3326
    %v3951 = vpack.c.b16 %v3335, %v3327
    %v3952 = vpack.c.b16 %v3336, %v3328
    %v3953 = vpack.c.b16 %v3337, %v3329
    %v3954 = vpack.c.b16 %v3338, %v3330
    %v3955 = vpack.c.b16 %v3339, %v3331
    %v3956 = vpack.c.b16 %v3348, %v3340
    %v3957 = vpack.c.b16 %v3349, %v3341
    %v3958 = vpack.c.b16 %v3350, %v3342
    %v3959 = vpack.c.b16 %v3351, %v3343
    %v3960 = vpack.c.b16 %v3352, %v3344
    %v3961 = vpack.c.b16 %v3353, %v3345
    %v3962 = vpack.c.b16 %v3354, %v3346
    %v3963 = vpack.c.b16 %v3355, %v3347
    %v3964 = vpack.c.b16 %v3364, %v3356
    %v3965 = vpack.c.b16 %v3365, %v3357
    %v3966 = vpack.c.b16 %v3366, %v3358
    %v3967 = vpack.c.b16 %v3367, %v3359
    %v3968 = vpack.c.b16 %v3368, %v3360
    %v3969 = vpack.c.b16 %v3369, %v3361
    %v3970 = vpack.c.b16 %v3370, %v3362
    %v3971 = vpack.c.b16 %v3371, %v3363
    %v3972 = vpack.c.b16 %v3380, %v3372
    %v3973 = vpack.c.b16 %v3381, %v3373
    %v3974 = vpack.c.b16 %v3382, %v3374
    %v3975 = vpack.c.b16 %v3383, %v3375
    %v3976 = vpack.c.b16 %v3384, %v3376
    %v3977 = vpack.c.b16 %v3385, %v3377
    %v3978 = vpack.c.b16 %v3386, %v3378
    %v3979 = vpack.c.b16 %v3387, %v3379
    %v3980 = vpack.c.b16 %v3396, %v3388
    %v3981 = vpack.c.b16 %v3397, %v3389
    %v3982 = vpack.c.b16 %v3398, %v3390
    %v3983 = vpack.c.b16 %v3399, %v3391
    %v3984 = vpack.c.b16 %v3400, %v3392
    %v3985 = vpack.c.b16 %v3401, %v3393
    %v3986 = vpack.c.b16 %v3402, %v3394
    %v3987 = vpack.c.b16 %v3403, %v3395
    %v3988 = vpack.c.b16 %v3412, %v3404
    %v3989 = vpack.c.b16 %v3413, %v3405
    %v3990 = vpack.c.b16 %v3414, %v3406
    %v3991 = vpack.c.b16 %v3415, %v3407
    %v3992 = vpack.c.b16 %v3416, %v3408
    %v3993 = vpack.c.b16 %v3417, %v3409
    %v3994 = vpack.c.b16 %v3418, %v3410
    %v3995 = vpack.c.b16 %v3419, %v3411
    %v3996 = vpack.c.b16 %v3428, %v3420
    %v3997 = vpack.c.b16 %v3429, %v3421
    %v3998 = vpack.c.b16 %v3430, %v3422
    %v3999 = vpack.c.b16 %v3431, %v3423
    %v4000 = vpack.c.b16 %v3432, %v3424
    %v4001 = vpack.c.b16 %v3433, %v3425
    %v4002 = vpack.c.b16 %v3434, %v3426
    %v4003 = vpack.c.b16 %v3435, %v3427
    %v4004 = vpack.c.b16 %v3444, %v3436
    %v4005 = vpack.c.b16 %v3445, %v3437
    %v4006 = vpack.c.b16 %v3446, %v3438
    %v4007 = vpack.c.b16 %v3447, %v3439
    %v4008 = vpack.c.b16 %v3448, %v3440
    %v4009 = vpack.c.b16 %v3449, %v3441
    %v4010 = vpack.c.b16 %v3450, %v3442
    %v4011 = vpack.c.b16 %v3451, %v3443
    %v4012 = vpack.c.b16 %v3460, %v3452
    %v4013 = vpack.c.b16 %v3461, %v3453
    %v4014 = vpack.c.b16 %v3462, %v3454
    %v4015 = vpack.c.b16 %v3463, %v3455
    %v4016 = vpack.c.b16 %v3464, %v3456
    %v4017 = vpack.c.b16 %v3465, %v3457
    %v4018 = vpack.c.b16 %v3466, %v3458
    %v4019 = vpack.c.b16 %v3467, %v3459
    %v4020 = vpack.c.b16 %v3476, %v3468
    %v4021 = vpack.c.b16 %v3477, %v3469
    %v4022 = vpack.c.b16 %v3478, %v3470
    %v4023 = vpack.c.b16 %v3479, %v3471
    %v4024 = vpack.c.b16 %v3480, %v3472
    %v4025 = vpack.c.b16 %v3481, %v3473
    %v4026 = vpack.c.b16 %v3482, %v3474
    %v4027 = vpack.c.b16 %v3483, %v3475
    %v4028 = vpack.c.b16 %v3492, %v3484
    %v4029 = vpack.c.b16 %v3493, %v3485
    %v4030 = vpack.c.b16 %v3494, %v3486
    %v4031 = vpack.c.b16 %v3495, %v3487
    %v4032 = vpack.c.b16 %v3496, %v3488
    %v4033 = vpack.c.b16 %v3497, %v3489
    %v4034 = vpack.c.b16 %v3498, %v3490
    %v4035 = vpack.c.b16 %v3499, %v3491
    %v4036 = vpack.c.b16 %v3508, %v3500
    %v4037 = vpack.c.b16 %v3509, %v3501
    %v4038 = vpack.c.b16 %v3510, %v3502
    %v4039 = vpack.c.b16 %v3511, %v3503
    %v4040 = vpack.c.b16 %v3512, %v3504
    %v4041 = vpack.c.b16 %v3513, %v3505
    %v4042 = vpack.c.b16 %v3514, %v3506
    %v4043 = vpack.c.b16 %v3515, %v3507
    %v4044 = vpack.c.b16 %v3524, %v3516
    %v4045 = vpack.c.b16 %v3525, %v3517
    %v4046 = vpack.c.b16 %v3526, %v3518
    %v4047 = vpack.c.b16 %v3527, %v3519
    %v4048 = vpack.c.b16 %v3528, %v3520
    %v4049 = vpack.c.b16 %v3529, %v3521
    %v4050 = vpack.c.b16 %v3530, %v3522
    %v4051 = vpack.c.b16 %v3531, %v3523
    %v4052 = vpack.c.b16 %v3540, %v3532
    %v4053 = vpack.c.b16 %v3541, %v3533
    %v4054 = vpack.c.b16 %v3542, %v3534
    %v4055 = vpack.c.b16 %v3543, %v3535
    %v4056 = vpack.c.b16 %v3544, %v3536
    %v4057 = vpack.c.b16 %v3545, %v3537
    %v4058 = vpack.c.b16 %v3546, %v3538
    %v4059 = vpack.c.b16 %v3547, %v3539
    %v4060 = vpack.c.b16 %v3556, %v3548
    %v4061 = vpack.c.b16 %v3557, %v3549
    %v4062 = vpack.c.b16 %v3558, %v3550
    %v4063 = vpack.c.b16 %v3559, %v3551
    %v4064 = vpack.c.b16 %v3560, %v3552
    %v4065 = vpack.c.b16 %v3561, %v3553
    %v4066 = vpack.c.b16 %v3562, %v3554
    %v4067 = vpack.c.b16 %v3563, %v3555
    %v4068 = vpack.c.b16 %v3572, %v3564
    %v4069 = vpack.c.b16 %v3573, %v3565
    %v4070 = vpack.c.b16 %v3574, %v3566
    %v4071 = vpack.c.b16 %v3575, %v3567
    %v4072 = vpack.c.b16 %v3576, %v3568
    %v4073 = vpack.c.b16 %v3577, %v3569
    %v4074 = vpack.c.b16 %v3578, %v3570
    %v4075 = vpack.c.b16 %v3579, %v3571
    %v4076 = vpack.c.b16 %v3588, %v3580
    %v4077 = vpack.c.b16 %v3589, %v3581
    %v4078 = vpack.c.b16 %v3590, %v3582
    %v4079 = vpack.c.b16 %v3591, %v3583
    %v4080 = vpack.c.b16 %v3592, %v3584
    %v4081 = vpack.c.b16 %v3593, %v3585
    %v4082 = vpack.c.b16 %v3594, %v3586
    %v4083 = vpack.c.b16 %v3595, %v3587
    %v4084 = vpack.c.b16 %v3604, %v3596
    %v4085 = vpack.c.b16 %v3605, %v3597
    %v4086 = vpack.c.b16 %v3606, %v3598
    %v4087 = vpack.c.b16 %v3607, %v3599
    %v4088 = vpack.c.b16 %v3608, %v3600
    %v4089 = vpack.c.b16 %v3609, %v3601
    %v4090 = vpack.c.b16 %v3610, %v3602
    %v4091 = vpack.c.b16 %v3611, %v3603
    %v4092 = vpack.c.b16 %v3620, %v3612
    %v4093 = vpack.c.b16 %v3621, %v3613
    %v4094 = vpack.c.b16 %v3622, %v3614
    %v4095 = vpack.c.b16 %v3623, %v3615
    %v4096 = vpack.c.b16 %v3624, %v3616
    %v4097 = vpack.c.b16 %v3625, %v3617
    %v4098 = vpack.c.b16 %v3626, %v3618
    %v4099 = vpack.c.b16 %v3627, %v3619
    %v4100 = vpack.c.b16 %v3636, %v3628
    %v4101 = vpack.c.b16 %v3637, %v3629
    %v4102 = vpack.c.b16 %v3638, %v3630
    %v4103 = vpack.c.b16 %v3639, %v3631
    %v4104 = vpack.c.b16 %v3640, %v3632
    %v4105 = vpack.c.b16 %v3641, %v3633
    %v4106 = vpack.c.b16 %v3642, %v3634
    %v4107 = vpack.c.b16 %v3643, %v3635
    %v4108 = vpack.c.b16 %v3652, %v3644
    %v4109 = vpack.c.b16 %v3653, %v3645
    %v4110 = vpack.c.b16 %v3654, %v3646
    %v4111 = vpack.c.b16 %v3655, %v3647
    %v4112 = vpack.c.b16 %v3656, %v3648
    %v4113 = vpack.c.b16 %v3657, %v3649
    %v4114 = vpack.c.b16 %v3658, %v3650
    %v4115 = vpack.c.b16 %v3659, %v3651
    %v4116 = vpack.c.b16 %v3668, %v3660
    %v4117 = vpack.c.b16 %v3669, %v3661
    %v4118 = vpack.c.b16 %v3670, %v3662
    %v4119 = vpack.c.b16 %v3671, %v3663
    %v4120 = vpack.c.b16 %v3672, %v3664
    %v4121 = vpack.c.b16 %v3673, %v3665
    %v4122 = vpack.c.b16 %v3674, %v3666
    %v4123 = vpack.c.b16 %v3675, %v3667
    %v4124 = vpack.c.b16 %v3684, %v3676
    %v4125 = vpack.c.b16 %v3685, %v3677
    %v4126 = vpack.c.b16 %v3686, %v3678
    %v4127 = vpack.c.b16 %v3687, %v3679
    %v4128 = vpack.c.b16 %v3688, %v3680
    %v4129 = vpack.c.b16 %v3689, %v3681
    %v4130 = vpack.c.b16 %v3690, %v3682
    %v4131 = vpack.c.b16 %v3691, %v3683
    %v4132 = vpack.c.b16 %v3700, %v3692
    %v4133 = vpack.c.b16 %v3701, %v3693
    %v4134 = vpack.c.b16 %v3702, %v3694
    %v4135 = vpack.c.b16 %v3703, %v3695
    %v4136 = vpack.c.b16 %v3704, %v3696
    %v4137 = vpack.c.b16 %v3705, %v3697
    %v4138 = vpack.c.b16 %v3706, %v3698
    %v4139 = vpack.c.b16 %v3707, %v3699
    %v4140 = vpack.c.b16 %v3716, %v3708
    %v4141 = vpack.c.b16 %v3717, %v3709
    %v4142 = vpack.c.b16 %v3718, %v3710
    %v4143 = vpack.c.b16 %v3719, %v3711
    %v4144 = vpack.c.b16 %v3720, %v3712
    %v4145 = vpack.c.b16 %v3721, %v3713
    %v4146 = vpack.c.b16 %v3722, %v3714
    %v4147 = vpack.c.b16 %v3723, %v3715
    %v4148 = vpack.c.b16 %v3732, %v3724
    %v4149 = vpack.c.b16 %v3733, %v3725
    %v4150 = vpack.c.b16 %v3734, %v3726
    %v4151 = vpack.c.b16 %v3735, %v3727
    %v4152 = vpack.c.b16 %v3736, %v3728
    %v4153 = vpack.c.b16 %v3737, %v3729
    %v4154 = vpack.c.b16 %v3738, %v3730
    %v4155 = vpack.c.b16 %v3739, %v3731
    %v4156 = vpack.c.b16 %v3748, %v3740
    %v4157 = vpack.c.b16 %v3749, %v3741
    %v4158 = vpack.c.b16 %v3750, %v3742
    %v4159 = vpack.c.b16 %v3751, %v3743
    %v4160 = vpack.c.b16 %v3752, %v3744
    %v4161 = vpack.c.b16 %v3753, %v3745
    %v4162 = vpack.c.b16 %v3754, %v3746
    %v4163 = vpack.c.b16 %v3755, %v3747
    %v4164 = vpack.c.b16 %v3764, %v3756
    %v4165 = vpack.c.b16 %v3765, %v3757
    %v4166 = vpack.c.b16 %v3766, %v3758
    %v4167 = vpack.c.b16 %v3767, %v3759
    %v4168 = vpack.c.b16 %v3768, %v3760
    %v4169 = vpack.c.b16 %v3769, %v3761
    %v4170 = vpack.c.b16 %v3770, %v3762
    %v4171 = vpack.c.b16 %v3771, %v3763
    %v4172 = vpack.c.b16 %v3780, %v3772
    %v4173 = vpack.c.b16 %v3781, %v3773
    %v4174 = vpack.c.b16 %v3782, %v3774
    %v4175 = vpack.c.b16 %v3783, %v3775
    %v4176 = vpack.c.b16 %v3784, %v3776
    %v4177 = vpack.c.b16 %v3785, %v3777
    %v4178 = vpack.c.b16 %v3786, %v3778
    %v4179 = vpack.c.b16 %v3787, %v3779
    %v4180 = vpack.c.b16 %v3796, %v3788
    %v4181 = vpack.c.b16 %v3797, %v3789
    %v4182 = vpack.c.b16 %v3798, %v3790
    %v4183 = vpack.c.b16 %v3799, %v3791
    %v4184 = vpack.c.b16 %v3800, %v3792
    %v4185 = vpack.c.b16 %v3801, %v3793
    %v4186 = vpack.c.b16 %v3802, %v3794
    %v4187 = vpack.c.b16 %v3803, %v3795
    %4572 = vmatprep.subr.bf16.mxu0 %v3805
    %4573 = vmatpush1.bf16.msra.mxu0 %v3804
    %4574 = vmatprep.subr.bf16.mxu0 %v3813
    %4575 = vmatpush1.bf16.msra.mxu0 %v3812
    %4576 = vmatprep.subr.bf16.mxu0 %v3821
    %4577 = vmatpush1.bf16.msra.mxu0 %v3820
    %4578 = vmatprep.subr.bf16.mxu0 %v3829
    %4579 = vmatpush1.bf16.msra.mxu0 %v3828
    %4580 = vmatprep.subr.bf16.mxu0 %v3837
    %4581 = vmatpush1.bf16.msra.mxu0 %v3836
    %4582 = vmatprep.subr.bf16.mxu0 %v3845
    %4583 = vmatpush1.bf16.msra.mxu0 %v3844
    %4584 = vmatprep.subr.bf16.mxu0 %v3853
    %4585 = vmatpush1.bf16.msra.mxu0 %v3852
    %4586 = vmatprep.subr.bf16.mxu0 %v3861
    %4587 = vmatpush1.bf16.msra.mxu0 %v3860
    %4588 = vmatprep.subr.bf16.mxu0 %v3869
    %4589 = vmatpush1.bf16.msra.mxu0 %v3868
    %4590 = vmatprep.subr.bf16.mxu0 %v3877
    %4591 = vmatpush1.bf16.msra.mxu0 %v3876
    %4592 = vmatprep.subr.bf16.mxu0 %v3885
    %4593 = vmatpush1.bf16.msra.mxu0 %v3884
    %4594 = vmatprep.subr.bf16.mxu0 %v3893
    %4595 = vmatpush1.bf16.msra.mxu0 %v3892
    %4596 = vmatprep.subr.bf16.mxu0 %v3901
    %4597 = vmatpush1.bf16.msra.mxu0 %v3900
    %4598 = vmatprep.subr.bf16.mxu0 %v3909
    %4599 = vmatpush1.bf16.msra.mxu0 %v3908
    %4600 = vmatprep.subr.bf16.mxu0 %v3917
    %4601 = vmatpush1.bf16.msra.mxu0 %v3916
    %4602 = vmatprep.subr.bf16.mxu0 %v3925
    %4603 = vmatpush1.bf16.msra.mxu0 %v3924
    %4604 = vmatprep.mubr.bf16.mxu0 %v2221
    %4605 = vmatmul.mubr.bf16.gmra.mrb[0].mxu0 %v2220
    %v4606 = vpop.f32.mrb[0].mxu0
    %v4607 = vadd.f32 %v2615, %v4606
    %v4608 = vpop.f32.mrb[0].mxu0
    %v4609 = vadd.f32 %v2619, %v4608
    %v4610 = vpop.f32.mrb[0].mxu0
    %v4611 = vpop.f32.mrb[0].mxu0
    %4612 = vdwg.mxu0
    %4613 = vmatprep.subr.bf16.mxu0 %v3933
    %4614 = vmatpush1.bf16.msra.mxu0 %v3932
    %4615 = vmatprep.subr.bf16.mxu0 %v3941
    %4616 = vmatpush1.bf16.msra.mxu0 %v3940
    %4617 = vmatprep.subr.bf16.mxu0 %v3949
    %4618 = vmatpush1.bf16.msra.mxu0 %v3948
    %4619 = vmatprep.subr.bf16.mxu0 %v3957
    %4620 = vmatpush1.bf16.msra.mxu0 %v3956
    %4621 = vmatprep.subr.bf16.mxu0 %v3965
    %4622 = vmatpush1.bf16.msra.mxu0 %v3964
    %4623 = vmatprep.subr.bf16.mxu0 %v3973
    %4624 = vmatpush1.bf16.msra.mxu0 %v3972
    %4625 = vmatprep.subr.bf16.mxu0 %v3981
    %4626 = vmatpush1.bf16.msra.mxu0 %v3980
    %4627 = vmatprep.subr.bf16.mxu0 %v3989
    %4628 = vmatpush1.bf16.msra.mxu0 %v3988
    %4629 = vmatprep.subr.bf16.mxu0 %v3997
    %4630 = vmatpush1.bf16.msra.mxu0 %v3996
    %4631 = vmatprep.subr.bf16.mxu0 %v4005
    %4632 = vmatpush1.bf16.msra.mxu0 %v4004
    %4633 = vmatprep.subr.bf16.mxu0 %v4013
    %4634 = vmatpush1.bf16.msra.mxu0 %v4012
    %4635 = vmatprep.subr.bf16.mxu0 %v4021
    %4636 = vmatpush1.bf16.msra.mxu0 %v4020
    %4637 = vmatprep.subr.bf16.mxu0 %v4029
    %4638 = vmatpush1.bf16.msra.mxu0 %v4028
    %4639 = vmatprep.subr.bf16.mxu0 %v4037
    %4640 = vmatpush1.bf16.msra.mxu0 %v4036
    %4641 = vmatprep.subr.bf16.mxu0 %v4045
    %4642 = vmatpush1.bf16.msra.mxu0 %v4044
    %4643 = vmatprep.subr.bf16.mxu0 %v4053
    %4644 = vmatpush1.bf16.msra.mxu0 %v4052
    %4645 = vmatprep.mubr.bf16.mxu0 %v2223
    %4646 = vmatmul.mubr.bf16.gmra.mrb[0].mxu0 %v2222
    %v4647 = vpop.f32.mrb[0].mxu0
    %v4648 = vadd.f32 %v4607, %v4647
    %v4649 = vpop.f32.mrb[0].mxu0
    %v4650 = vadd.f32 %v4609, %v4649
    %v4651 = vpop.f32.mrb[0].mxu0
    %v4652 = vpop.f32.mrb[0].mxu0
    %4653 = vdwg.mxu0
    %4654 = vmatprep.subr.bf16.mxu0 %v4061
    %4655 = vmatpush1.bf16.msra.mxu0 %v4060
    %4656 = vmatprep.subr.bf16.mxu0 %v4069
    %4657 = vmatpush1.bf16.msra.mxu0 %v4068
    %4658 = vmatprep.subr.bf16.mxu0 %v4077
    %4659 = vmatpush1.bf16.msra.mxu0 %v4076
    %4660 = vmatprep.subr.bf16.mxu0 %v4085
    %4661 = vmatpush1.bf16.msra.mxu0 %v4084
    %4662 = vmatprep.subr.bf16.mxu0 %v4093
    %4663 = vmatpush1.bf16.msra.mxu0 %v4092
    %4664 = vmatprep.subr.bf16.mxu0 %v4101
    %4665 = vmatpush1.bf16.msra.mxu0 %v4100
    %4666 = vmatprep.subr.bf16.mxu0 %v4109
    %4667 = vmatpush1.bf16.msra.mxu0 %v4108
    %4668 = vmatprep.subr.bf16.mxu0 %v4117
    %4669 = vmatpush1.bf16.msra.mxu0 %v4116
    %4670 = vmatprep.subr.bf16.mxu0 %v4125
    %4671 = vmatpush1.bf16.msra.mxu0 %v4124
    %4672 = vmatprep.subr.bf16.mxu0 %v4133
    %4673 = vmatpush1.bf16.msra.mxu0 %v4132
    %4674 = vmatprep.subr.bf16.mxu0 %v4141
    %4675 = vmatpush1.bf16.msra.mxu0 %v4140
    %4676 = vmatprep.subr.bf16.mxu0 %v4149
    %4677 = vmatpush1.bf16.msra.mxu0 %v4148
    %4678 = vmatprep.subr.bf16.mxu0 %v4157
    %4679 = vmatpush1.bf16.msra.mxu0 %v4156
    %4680 = vmatprep.subr.bf16.mxu0 %v4165
    %4681 = vmatpush1.bf16.msra.mxu0 %v4164
    %4682 = vmatprep.subr.bf16.mxu0 %v4173
    %4683 = vmatpush1.bf16.msra.mxu0 %v4172
    %4684 = vmatprep.subr.bf16.mxu0 %v4181
    %4685 = vmatpush1.bf16.msra.mxu0 %v4180
    %4686 = vmatprep.mubr.bf16.mxu0 %v2225
    %4687 = vmatmul.mubr.bf16.gmra.mrb[0].mxu0 %v2224
    %v4688 = vpop.f32.mrb[0].mxu0
    %v4689 = vadd.f32 %v4648, %v4688
    %v4690 = vpop.f32.mrb[0].mxu0
    %v4691 = vadd.f32 %v4650, %v4690
    %v4692 = vpop.f32.mrb[0].mxu0
    %v4693 = vpop.f32.mrb[0].mxu0
    %4694 = vdwg.mxu0
    %4695 = vmatprep.subr.bf16.mxu0 %v3807
    %4696 = vmatpush1.bf16.msra.mxu0 %v3806
    %4697 = vmatprep.subr.bf16.mxu0 %v3815
    %4698 = vmatpush1.bf16.msra.mxu0 %v3814
    %4699 = vmatprep.subr.bf16.mxu0 %v3823
    %4700 = vmatpush1.bf16.msra.mxu0 %v3822
    %4701 = vmatprep.subr.bf16.mxu0 %v3831
    %4702 = vmatpush1.bf16.msra.mxu0 %v3830
    %4703 = vmatprep.subr.bf16.mxu0 %v3839
    %4704 = vmatpush1.bf16.msra.mxu0 %v3838
    %4705 = vmatprep.subr.bf16.mxu0 %v3847
    %4706 = vmatpush1.bf16.msra.mxu0 %v3846
    %4707 = vmatprep.subr.bf16.mxu0 %v3855
    %4708 = vmatpush1.bf16.msra.mxu0 %v3854
    %4709 = vmatprep.subr.bf16.mxu0 %v3863
    %4710 = vmatpush1.bf16.msra.mxu0 %v3862
    %4711 = vmatprep.subr.bf16.mxu0 %v3871
    %4712 = vmatpush1.bf16.msra.mxu0 %v3870
    %4713 = vmatprep.subr.bf16.mxu0 %v3879
    %4714 = vmatpush1.bf16.msra.mxu0 %v3878
    %4715 = vmatprep.subr.bf16.mxu0 %v3887
    %4716 = vmatpush1.bf16.msra.mxu0 %v3886
    %4717 = vmatprep.subr.bf16.mxu0 %v3895
    %4718 = vmatpush1.bf16.msra.mxu0 %v3894
    %4719 = vmatprep.subr.bf16.mxu0 %v3903
    %4720 = vmatpush1.bf16.msra.mxu0 %v3902
    %4721 = vmatprep.subr.bf16.mxu0 %v3911
    %4722 = vmatpush1.bf16.msra.mxu0 %v3910
    %4723 = vmatprep.subr.bf16.mxu0 %v3919
    %4724 = vmatpush1.bf16.msra.mxu0 %v3918
    %4725 = vmatprep.subr.bf16.mxu0 %v3927
    %4726 = vmatpush1.bf16.msra.mxu0 %v3926
    %4727 = vmatprep.mubr.bf16.mxu0 %v2221
    %4728 = vmatmul.mubr.bf16.gmra.mrb[0].mxu0 %v2220
    %v4729 = vpop.f32.mrb[0].mxu0
    %v4730 = vadd.f32 %v2623, %v4729
    %v4731 = vpop.f32.mrb[0].mxu0
    %v4732 = vadd.f32 %v2627, %v4731
    %v4733 = vpop.f32.mrb[0].mxu0
    %v4734 = vpop.f32.mrb[0].mxu0
    %4735 = vdwg.mxu0
    %4736 = vmatprep.subr.bf16.mxu0 %v3935
    %4737 = vmatpush1.bf16.msra.mxu0 %v3934
    %4738 = vmatprep.subr.bf16.mxu0 %v3943
    %4739 = vmatpush1.bf16.msra.mxu0 %v3942
    %4740 = vmatprep.subr.bf16.mxu0 %v3951
    %4741 = vmatpush1.bf16.msra.mxu0 %v3950
    %4742 = vmatprep.subr.bf16.mxu0 %v3959
    %4743 = vmatpush1.bf16.msra.mxu0 %v3958
    %4744 = vmatprep.subr.bf16.mxu0 %v3967
    %4745 = vmatpush1.bf16.msra.mxu0 %v3966
    %4746 = vmatprep.subr.bf16.mxu0 %v3975
    %4747 = vmatpush1.bf16.msra.mxu0 %v3974
    %4748 = vmatprep.subr.bf16.mxu0 %v3983
    %4749 = vmatpush1.bf16.msra.mxu0 %v3982
    %4750 = vmatprep.subr.bf16.mxu0 %v3991
    %4751 = vmatpush1.bf16.msra.mxu0 %v3990
    %4752 = vmatprep.subr.bf16.mxu0 %v3999
    %4753 = vmatpush1.bf16.msra.mxu0 %v3998
    %4754 = vmatprep.subr.bf16.mxu0 %v4007
    %4755 = vmatpush1.bf16.msra.mxu0 %v4006
    %4756 = vmatprep.subr.bf16.mxu0 %v4015
    %4757 = vmatpush1.bf16.msra.mxu0 %v4014
    %4758 = vmatprep.subr.bf16.mxu0 %v4023
    %4759 = vmatpush1.bf16.msra.mxu0 %v4022
    %4760 = vmatprep.subr.bf16.mxu0 %v4031
    %4761 = vmatpush1.bf16.msra.mxu0 %v4030
    %4762 = vmatprep.subr.bf16.mxu0 %v4039
    %4763 = vmatpush1.bf16.msra.mxu0 %v4038
    %4764 = vmatprep.subr.bf16.mxu0 %v4047
    %4765 = vmatpush1.bf16.msra.mxu0 %v4046
    %4766 = vmatprep.subr.bf16.mxu0 %v4055
    %4767 = vmatpush1.bf16.msra.mxu0 %v4054
    %4768 = vmatprep.mubr.bf16.mxu0 %v2223
    %4769 = vmatmul.mubr.bf16.gmra.mrb[0].mxu0 %v2222
    %v4770 = vpop.f32.mrb[0].mxu0
    %v4771 = vadd.f32 %v4730, %v4770
    %v4772 = vpop.f32.mrb[0].mxu0
    %v4773 = vadd.f32 %v4732, %v4772
    %v4774 = vpop.f32.mrb[0].mxu0
    %v4775 = vpop.f32.mrb[0].mxu0
    %4776 = vdwg.mxu0
    %4777 = vmatprep.subr.bf16.mxu0 %v4063
    %4778 = vmatpush1.bf16.msra.mxu0 %v4062
    %4779 = vmatprep.subr.bf16.mxu0 %v4071
    %4780 = vmatpush1.bf16.msra.mxu0 %v4070
    %4781 = vmatprep.subr.bf16.mxu0 %v4079
    %4782 = vmatpush1.bf16.msra.mxu0 %v4078
    %4783 = vmatprep.subr.bf16.mxu0 %v4087
    %4784 = vmatpush1.bf16.msra.mxu0 %v4086
    %4785 = vmatprep.subr.bf16.mxu0 %v4095
    %4786 = vmatpush1.bf16.msra.mxu0 %v4094
    %4787 = vmatprep.subr.bf16.mxu0 %v4103
    %4788 = vmatpush1.bf16.msra.mxu0 %v4102
    %4789 = vmatprep.subr.bf16.mxu0 %v4111
    %4790 = vmatpush1.bf16.msra.mxu0 %v4110
    %4791 = vmatprep.subr.bf16.mxu0 %v4119
    %4792 = vmatpush1.bf16.msra.mxu0 %v4118
    %4793 = vmatprep.subr.bf16.mxu0 %v4127
    %4794 = vmatpush1.bf16.msra.mxu0 %v4126
    %4795 = vmatprep.subr.bf16.mxu0 %v4135
    %4796 = vmatpush1.bf16.msra.mxu0 %v4134
    %4797 = vmatprep.subr.bf16.mxu0 %v4143
    %4798 = vmatpush1.bf16.msra.mxu0 %v4142
    %4799 = vmatprep.subr.bf16.mxu0 %v4151
    %4800 = vmatpush1.bf16.msra.mxu0 %v4150
    %4801 = vmatprep.subr.bf16.mxu0 %v4159
    %4802 = vmatpush1.bf16.msra.mxu0 %v4158
    %4803 = vmatprep.subr.bf16.mxu0 %v4167
    %4804 = vmatpush1.bf16.msra.mxu0 %v4166
    %4805 = vmatprep.subr.bf16.mxu0 %v4175
    %4806 = vmatpush1.bf16.msra.mxu0 %v4174
    %4807 = vmatprep.subr.bf16.mxu0 %v4183
    %4808 = vmatpush1.bf16.msra.mxu0 %v4182
    %4809 = vmatprep.mubr.bf16.mxu0 %v2225
    %4810 = vmatmul.mubr.bf16.gmra.mrb[0].mxu0 %v2224
    %v4811 = vpop.f32.mrb[0].mxu0
    %v4812 = vadd.f32 %v4771, %v4811
    %v4813 = vpop.f32.mrb[0].mxu0
    %v4814 = vadd.f32 %v4773, %v4813
    %v4815 = vpop.f32.mrb[0].mxu0
    %v4816 = vpop.f32.mrb[0].mxu0
    %4817 = vdwg.mxu0
    %4818 = vmatprep.subr.bf16.mxu0 %v3809
    %4819 = vmatpush1.bf16.msra.mxu0 %v3808
    %4820 = vmatprep.subr.bf16.mxu0 %v3817
    %4821 = vmatpush1.bf16.msra.mxu0 %v3816
    %4822 = vmatprep.subr.bf16.mxu0 %v3825
    %4823 = vmatpush1.bf16.msra.mxu0 %v3824
    %4824 = vmatprep.subr.bf16.mxu0 %v3833
    %4825 = vmatpush1.bf16.msra.mxu0 %v3832
    %4826 = vmatprep.subr.bf16.mxu0 %v3841
    %4827 = vmatpush1.bf16.msra.mxu0 %v3840
    %4828 = vmatprep.subr.bf16.mxu0 %v3849
    %4829 = vmatpush1.bf16.msra.mxu0 %v3848
    %4830 = vmatprep.subr.bf16.mxu0 %v3857
    %4831 = vmatpush1.bf16.msra.mxu0 %v3856
    %4832 = vmatprep.subr.bf16.mxu0 %v3865
    %4833 = vmatpush1.bf16.msra.mxu0 %v3864
    %4834 = vmatprep.subr.bf16.mxu0 %v3873
    %4835 = vmatpush1.bf16.msra.mxu0 %v3872
    %4836 = vmatprep.subr.bf16.mxu0 %v3881
    %4837 = vmatpush1.bf16.msra.mxu0 %v3880
    %4838 = vmatprep.subr.bf16.mxu0 %v3889
    %4839 = vmatpush1.bf16.msra.mxu0 %v3888
    %4840 = vmatprep.subr.bf16.mxu0 %v3897
    %4841 = vmatpush1.bf16.msra.mxu0 %v3896
    %4842 = vmatprep.subr.bf16.mxu0 %v3905
    %4843 = vmatpush1.bf16.msra.mxu0 %v3904
    %4844 = vmatprep.subr.bf16.mxu0 %v3913
    %4845 = vmatpush1.bf16.msra.mxu0 %v3912
    %4846 = vmatprep.subr.bf16.mxu0 %v3921
    %4847 = vmatpush1.bf16.msra.mxu0 %v3920
    %4848 = vmatprep.subr.bf16.mxu0 %v3929
    %4849 = vmatpush1.bf16.msra.mxu0 %v3928
    %4850 = vmatprep.mubr.bf16.mxu0 %v2221
    %4851 = vmatmul.mubr.bf16.gmra.mrb[0].mxu0 %v2220
    %v4852 = vpop.f32.mrb[0].mxu0
    %v4853 = vadd.f32 %v2631, %v4852
    %v4854 = vpop.f32.mrb[0].mxu0
    %v4855 = vadd.f32 %v2635, %v4854
    %v4856 = vpop.f32.mrb[0].mxu0
    %v4857 = vpop.f32.mrb[0].mxu0
    %4858 = vdwg.mxu0
    %4859 = vmatprep.subr.bf16.mxu0 %v3937
    %4860 = vmatpush1.bf16.msra.mxu0 %v3936
    %4861 = vmatprep.subr.bf16.mxu0 %v3945
    %4862 = vmatpush1.bf16.msra.mxu0 %v3944
    %4863 = vmatprep.subr.bf16.mxu0 %v3953
    %4864 = vmatpush1.bf16.msra.mxu0 %v3952
    %4865 = vmatprep.subr.bf16.mxu0 %v3961
    %4866 = vmatpush1.bf16.msra.mxu0 %v3960
    %4867 = vmatprep.subr.bf16.mxu0 %v3969
    %4868 = vmatpush1.bf16.msra.mxu0 %v3968
    %4869 = vmatprep.subr.bf16.mxu0 %v3977
    %4870 = vmatpush1.bf16.msra.mxu0 %v3976
    %4871 = vmatprep.subr.bf16.mxu0 %v3985
    %4872 = vmatpush1.bf16.msra.mxu0 %v3984
    %4873 = vmatprep.subr.bf16.mxu0 %v3993
    %4874 = vmatpush1.bf16.msra.mxu0 %v3992
    %4875 = vmatprep.subr.bf16.mxu0 %v4001
    %4876 = vmatpush1.bf16.msra.mxu0 %v4000
    %4877 = vmatprep.subr.bf16.mxu0 %v4009
    %4878 = vmatpush1.bf16.msra.mxu0 %v4008
    %4879 = vmatprep.subr.bf16.mxu0 %v4017
    %4880 = vmatpush1.bf16.msra.mxu0 %v4016
    %4881 = vmatprep.subr.bf16.mxu0 %v4025
    %4882 = vmatpush1.bf16.msra.mxu0 %v4024
    %4883 = vmatprep.subr.bf16.mxu0 %v4033
    %4884 = vmatpush1.bf16.msra.mxu0 %v4032
    %4885 = vmatprep.subr.bf16.mxu0 %v4041
    %4886 = vmatpush1.bf16.msra.mxu0 %v4040
    %4887 = vmatprep.subr.bf16.mxu0 %v4049
    %4888 = vmatpush1.bf16.msra.mxu0 %v4048
    %4889 = vmatprep.subr.bf16.mxu0 %v4057
    %4890 = vmatpush1.bf16.msra.mxu0 %v4056
    %4891 = vmatprep.mubr.bf16.mxu0 %v2223
    %4892 = vmatmul.mubr.bf16.gmra.mrb[0].mxu0 %v2222
    %v4893 = vpop.f32.mrb[0].mxu0
    %v4894 = vadd.f32 %v4853, %v4893
    %v4895 = vpop.f32.mrb[0].mxu0
    %v4896 = vadd.f32 %v4855, %v4895
    %v4897 = vpop.f32.mrb[0].mxu0
    %v4898 = vpop.f32.mrb[0].mxu0
    %4899 = vdwg.mxu0
    %4900 = vmatprep.subr.bf16.mxu0 %v4065
    %4901 = vmatpush1.bf16.msra.mxu0 %v4064
    %4902 = vmatprep.subr.bf16.mxu0 %v4073
    %4903 = vmatpush1.bf16.msra.mxu0 %v4072
    %4904 = vmatprep.subr.bf16.mxu0 %v4081
    %4905 = vmatpush1.bf16.msra.mxu0 %v4080
    %4906 = vmatprep.subr.bf16.mxu0 %v4089
    %4907 = vmatpush1.bf16.msra.mxu0 %v4088
    %4908 = vmatprep.subr.bf16.mxu0 %v4097
    %4909 = vmatpush1.bf16.msra.mxu0 %v4096
    %4910 = vmatprep.subr.bf16.mxu0 %v4105
    %4911 = vmatpush1.bf16.msra.mxu0 %v4104
    %4912 = vmatprep.subr.bf16.mxu0 %v4113
    %4913 = vmatpush1.bf16.msra.mxu0 %v4112
    %4914 = vmatprep.subr.bf16.mxu0 %v4121
    %4915 = vmatpush1.bf16.msra.mxu0 %v4120
    %4916 = vmatprep.subr.bf16.mxu0 %v4129
    %4917 = vmatpush1.bf16.msra.mxu0 %v4128
    %4918 = vmatprep.subr.bf16.mxu0 %v4137
    %4919 = vmatpush1.bf16.msra.mxu0 %v4136
    %4920 = vmatprep.subr.bf16.mxu0 %v4145
    %4921 = vmatpush1.bf16.msra.mxu0 %v4144
    %4922 = vmatprep.subr.bf16.mxu0 %v4153
    %4923 = vmatpush1.bf16.msra.mxu0 %v4152
    %4924 = vmatprep.subr.bf16.mxu0 %v4161
    %4925 = vmatpush1.bf16.msra.mxu0 %v4160
    %4926 = vmatprep.subr.bf16.mxu0 %v4169
    %4927 = vmatpush1.bf16.msra.mxu0 %v4168
    %4928 = vmatprep.subr.bf16.mxu0 %v4177
    %4929 = vmatpush1.bf16.msra.mxu0 %v4176
    %4930 = vmatprep.subr.bf16.mxu0 %v4185
    %4931 = vmatpush1.bf16.msra.mxu0 %v4184
    %4932 = vmatprep.mubr.bf16.mxu0 %v2225
    %4933 = vmatmul.mubr.bf16.gmra.mrb[0].mxu0 %v2224
    %v4934 = vpop.f32.mrb[0].mxu0
    %v4935 = vadd.f32 %v4894, %v4934
    %v4936 = vpop.f32.mrb[0].mxu0
    %v4937 = vadd.f32 %v4896, %v4936
    %v4938 = vpop.f32.mrb[0].mxu0
    %v4939 = vpop.f32.mrb[0].mxu0
    %4940 = vdwg.mxu0
    %4941 = vmatprep.subr.bf16.mxu0 %v3811
    %4942 = vmatpush1.bf16.msra.mxu0 %v3810
    %4943 = vmatprep.subr.bf16.mxu0 %v3819
    %4944 = vmatpush1.bf16.msra.mxu0 %v3818
    %4945 = vmatprep.subr.bf16.mxu0 %v3827
    %4946 = vmatpush1.bf16.msra.mxu0 %v3826
    %4947 = vmatprep.subr.bf16.mxu0 %v3835
    %4948 = vmatpush1.bf16.msra.mxu0 %v3834
    %4949 = vmatprep.subr.bf16.mxu0 %v3843
    %4950 = vmatpush1.bf16.msra.mxu0 %v3842
    %4951 = vmatprep.subr.bf16.mxu0 %v3851
    %4952 = vmatpush1.bf16.msra.mxu0 %v3850
    %4953 = vmatprep.subr.bf16.mxu0 %v3859
    %4954 = vmatpush1.bf16.msra.mxu0 %v3858
    %4955 = vmatprep.subr.bf16.mxu0 %v3867
    %4956 = vmatpush1.bf16.msra.mxu0 %v3866
    %4957 = vmatprep.subr.bf16.mxu0 %v3875
    %4958 = vmatpush1.bf16.msra.mxu0 %v3874
    %4959 = vmatprep.subr.bf16.mxu0 %v3883
    %4960 = vmatpush1.bf16.msra.mxu0 %v3882
    %4961 = vmatprep.subr.bf16.mxu0 %v3891
    %4962 = vmatpush1.bf16.msra.mxu0 %v3890
    %4963 = vmatprep.subr.bf16.mxu0 %v3899
    %4964 = vmatpush1.bf16.msra.mxu0 %v3898
    %4965 = vmatprep.subr.bf16.mxu0 %v3907
    %4966 = vmatpush1.bf16.msra.mxu0 %v3906
    %4967 = vmatprep.subr.bf16.mxu0 %v3915
    %4968 = vmatpush1.bf16.msra.mxu0 %v3914
    %4969 = vmatprep.subr.bf16.mxu0 %v3923
    %4970 = vmatpush1.bf16.msra.mxu0 %v3922
    %4971 = vmatprep.subr.bf16.mxu0 %v3931
    %4972 = vmatpush1.bf16.msra.mxu0 %v3930
    %4973 = vmatprep.mubr.bf16.mxu0 %v2221
    %4974 = vmatmul.mubr.bf16.gmra.mrb[0].mxu0 %v2220
    %v4975 = vpop.f32.mrb[0].mxu0
    %v4976 = vadd.f32 %v2639, %v4975
    %v4977 = vpop.f32.mrb[0].mxu0
    %v4978 = vadd.f32 %v2643, %v4977
    %v4979 = vpop.f32.mrb[0].mxu0
    %v4980 = vpop.f32.mrb[0].mxu0
    %4981 = vdwg.mxu0
    %4982 = vmatprep.subr.bf16.mxu0 %v3939
    %4983 = vmatpush1.bf16.msra.mxu0 %v3938
    %4984 = vmatprep.subr.bf16.mxu0 %v3947
    %4985 = vmatpush1.bf16.msra.mxu0 %v3946
    %4986 = vmatprep.subr.bf16.mxu0 %v3955
    %4987 = vmatpush1.bf16.msra.mxu0 %v3954
    %4988 = vmatprep.subr.bf16.mxu0 %v3963
    %4989 = vmatpush1.bf16.msra.mxu0 %v3962
    %4990 = vmatprep.subr.bf16.mxu0 %v3971
    %4991 = vmatpush1.bf16.msra.mxu0 %v3970
    %4992 = vmatprep.subr.bf16.mxu0 %v3979
    %4993 = vmatpush1.bf16.msra.mxu0 %v3978
    %4994 = vmatprep.subr.bf16.mxu0 %v3987
    %4995 = vmatpush1.bf16.msra.mxu0 %v3986
    %4996 = vmatprep.subr.bf16.mxu0 %v3995
    %4997 = vmatpush1.bf16.msra.mxu0 %v3994
    %4998 = vmatprep.subr.bf16.mxu0 %v4003
    %4999 = vmatpush1.bf16.msra.mxu0 %v4002
    %5000 = vmatprep.subr.bf16.mxu0 %v4011
    %5001 = vmatpush1.bf16.msra.mxu0 %v4010
    %5002 = vmatprep.subr.bf16.mxu0 %v4019
    %5003 = vmatpush1.bf16.msra.mxu0 %v4018
    %5004 = vmatprep.subr.bf16.mxu0 %v4027
    %5005 = vmatpush1.bf16.msra.mxu0 %v4026
    %5006 = vmatprep.subr.bf16.mxu0 %v4035
    %5007 = vmatpush1.bf16.msra.mxu0 %v4034
    %5008 = vmatprep.subr.bf16.mxu0 %v4043
    %5009 = vmatpush1.bf16.msra.mxu0 %v4042
    %5010 = vmatprep.subr.bf16.mxu0 %v4051
    %5011 = vmatpush1.bf16.msra.mxu0 %v4050
    %5012 = vmatprep.subr.bf16.mxu0 %v4059
    %5013 = vmatpush1.bf16.msra.mxu0 %v4058
    %5014 = vmatprep.mubr.bf16.mxu0 %v2223
    %5015 = vmatmul.mubr.bf16.gmra.mrb[0].mxu0 %v2222
    %v5016 = vpop.f32.mrb[0].mxu0
    %v5017 = vadd.f32 %v4976, %v5016
    %v5018 = vpop.f32.mrb[0].mxu0
    %v5019 = vadd.f32 %v4978, %v5018
    %v5020 = vpop.f32.mrb[0].mxu0
    %v5021 = vpop.f32.mrb[0].mxu0
    %5022 = vdwg.mxu0
    %5023 = vmatprep.subr.bf16.mxu0 %v4067
    %5024 = vmatpush1.bf16.msra.mxu0 %v4066
    %5025 = vmatprep.subr.bf16.mxu0 %v4075
    %5026 = vmatpush1.bf16.msra.mxu0 %v4074
    %5027 = vmatprep.subr.bf16.mxu0 %v4083
    %5028 = vmatpush1.bf16.msra.mxu0 %v4082
    %5029 = vmatprep.subr.bf16.mxu0 %v4091
    %5030 = vmatpush1.bf16.msra.mxu0 %v4090
    %5031 = vmatprep.subr.bf16.mxu0 %v4099
    %5032 = vmatpush1.bf16.msra.mxu0 %v4098
    %5033 = vmatprep.subr.bf16.mxu0 %v4107
    %5034 = vmatpush1.bf16.msra.mxu0 %v4106
    %5035 = vmatprep.subr.bf16.mxu0 %v4115
    %5036 = vmatpush1.bf16.msra.mxu0 %v4114
    %5037 = vmatprep.subr.bf16.mxu0 %v4123
    %5038 = vmatpush1.bf16.msra.mxu0 %v4122
    %5039 = vmatprep.subr.bf16.mxu0 %v4131
    %5040 = vmatpush1.bf16.msra.mxu0 %v4130
    %5041 = vmatprep.subr.bf16.mxu0 %v4139
    %5042 = vmatpush1.bf16.msra.mxu0 %v4138
    %5043 = vmatprep.subr.bf16.mxu0 %v4147
    %5044 = vmatpush1.bf16.msra.mxu0 %v4146
    %5045 = vmatprep.subr.bf16.mxu0 %v4155
    %5046 = vmatpush1.bf16.msra.mxu0 %v4154
    %5047 = vmatprep.subr.bf16.mxu0 %v4163
    %5048 = vmatpush1.bf16.msra.mxu0 %v4162
    %5049 = vmatprep.subr.bf16.mxu0 %v4171
    %5050 = vmatpush1.bf16.msra.mxu0 %v4170
    %5051 = vmatprep.subr.bf16.mxu0 %v4179
    %5052 = vmatpush1.bf16.msra.mxu0 %v4178
    %5053 = vmatprep.subr.bf16.mxu0 %v4187
    %5054 = vmatpush1.bf16.msra.mxu0 %v4186
    %5055 = vmatprep.mubr.bf16.mxu0 %v2225
    %5056 = vmatmul.mubr.bf16.gmra.mrb[0].mxu0 %v2224
    %v5057 = vpop.f32.mrb[0].mxu0
    %v5058 = vadd.f32 %v5017, %v5057
    %v5059 = vpop.f32.mrb[0].mxu0
    %v5060 = vadd.f32 %v5019, %v5059
    %v5061 = vpop.f32.mrb[0].mxu0
    %v5062 = vpop.f32.mrb[0].mxu0
    %5063 = vdwg.mxu0
    %vm5064 = vcmp.gt.f32.partialorder %v4689, 0.0
    %vm5065 = vcmp.gt.f32.partialorder %v4691, 0.0
    %vm5066 = vcmp.gt.f32.partialorder %v4812, 0.0
    %vm5067 = vcmp.gt.f32.partialorder %v4814, 0.0
    %vm5068 = vcmp.gt.f32.partialorder %v4935, 0.0
    %vm5069 = vcmp.gt.f32.partialorder %v4937, 0.0
    %vm5070 = vcmp.gt.f32.partialorder %v5058, 0.0
    %vm5071 = vcmp.gt.f32.partialorder %v5060, 0.0
    %v5072 = vmul.f32 %v4689, 0.2
    %v5073 = vmul.f32 %v4691, 0.2
    %v5074 = vmul.f32 %v4812, 0.2
    %v5075 = vmul.f32 %v4814, 0.2
    %v5076 = vmul.f32 %v4935, 0.2
    %v5077 = vmul.f32 %v4937, 0.2
    %v5078 = vmul.f32 %v5058, 0.2
    %v5079 = vmul.f32 %v5060, 0.2
    %v5080 = vsel %vm5064, %v4689, %v5072
    %v5081 = vsel %vm5065, %v4691, %v5073
    %v5082 = vsel %vm5066, %v4812, %v5074
    %v5083 = vsel %vm5067, %v4814, %v5075
    %v5084 = vsel %vm5068, %v4935, %v5076
    %v5085 = vsel %vm5069, %v4937, %v5077
    %v5086 = vsel %vm5070, %v5058, %v5078
    %v5087 = vsel %vm5071, %v5060, %v5079
    %v5088 = vpack.c.bf16 %v5080, %v5080
    %v5089 = vpack.c.bf16 %v5081, %v5081
    %v5090 = vpack.c.bf16 %v5082, %v5082
    %v5091 = vpack.c.bf16 %v5083, %v5083
    %v5092 = vpack.c.bf16 %v5084, %v5084
    %v5093 = vpack.c.bf16 %v5085, %v5085
    %v5094 = vpack.c.bf16 %v5086, %v5086
    %v5095 = vpack.c.bf16 %v5087, %v5087
    %v5096 = vld [vmem:[#allocation17] sm:$0xf]
    %v5097 = vld [vmem:[#allocation17 + $0x4] sm:$0xf]
    %v5098 = vld [vmem:[#allocation17 + $0x8] sm:$0xf]
    %v5099 = vld [vmem:[#allocation17 + $0xc] sm:$0xf]
    %v5100 = vld [vmem:[#allocation17 + $0x10] sm:$0xf]
    %v5101 = vld [vmem:[#allocation17 + $0x14] sm:$0xf]
    %v5102 = vld [vmem:[#allocation17 + $0x18] sm:$0xf]
    %v5103 = vld [vmem:[#allocation17 + $0x1c] sm:$0xf]
    %v5104 = vld [vmem:[#allocation17 + $0x20] sm:$0xf]
    %v5105 = vld [vmem:[#allocation17 + $0x24] sm:$0xf]
    %v5106 = vld [vmem:[#allocation17 + $0x28] sm:$0xf]
    %v5107 = vld [vmem:[#allocation17 + $0x2c] sm:$0xf]
    %v5108 = vld [vmem:[#allocation17 + $0x30] sm:$0xf]
    %v5109 = vld [vmem:[#allocation17 + $0x34] sm:$0xf]
    %v5110 = vld [vmem:[#allocation17 + $0x38] sm:$0xf]
    %v5111 = vld [vmem:[#allocation17 + $0x3c] sm:$0xf]
    %v5112 = vld [vmem:[#allocation17 + $0x40] sm:$0xf]
    %v5113 = vld [vmem:[#allocation17 + $0x44] sm:$0xf]
    %v5114 = vld [vmem:[#allocation17 + $0x48] sm:$0xf]
    %v5115 = vld [vmem:[#allocation17 + $0x4c] sm:$0xf]
    %v5116 = vld [vmem:[#allocation17 + $0x50] sm:$0xf]
    %v5117 = vld [vmem:[#allocation17 + $0x54] sm:$0xf]
    %v5118 = vld [vmem:[#allocation17 + $0x58] sm:$0xf]
    %v5119 = vld [vmem:[#allocation17 + $0x5c] sm:$0xf]
    %v5120 = vld [vmem:[#allocation17 + $0x60] sm:$0xf]
    %v5121 = vld [vmem:[#allocation17 + $0x64] sm:$0xf]
    %v5122 = vld [vmem:[#allocation17 + $0x68] sm:$0xf]
    %v5123 = vld [vmem:[#allocation17 + $0x6c] sm:$0xf]
    %v5124 = vld [vmem:[#allocation17 + $0x70] sm:$0xf]
    %v5125 = vld [vmem:[#allocation17 + $0x74] sm:$0xf]
    %v5126 = vld [vmem:[#allocation17 + $0x78] sm:$0xf]
    %v5127 = vld [vmem:[#allocation17 + $0x7c] sm:$0xf]
    %v5128 = vld [vmem:[#allocation17 + $0x80] sm:$0xf]
    %v5129 = vld [vmem:[#allocation17 + $0x84] sm:$0xf]
    %v5130 = vld [vmem:[#allocation17 + $0x88] sm:$0xf]
    %v5131 = vld [vmem:[#allocation17 + $0x8c] sm:$0xf]
    %v5132 = vld [vmem:[#allocation17 + $0x90] sm:$0xf]
    %v5133 = vld [vmem:[#allocation17 + $0x94] sm:$0xf]
    %v5134 = vld [vmem:[#allocation17 + $0x98] sm:$0xf]
    %v5135 = vld [vmem:[#allocation17 + $0x9c] sm:$0xf]
    %v5136 = vld [vmem:[#allocation17 + $0xa0] sm:$0xf]
    %v5137 = vld [vmem:[#allocation17 + $0xa4] sm:$0xf]
    %v5138 = vld [vmem:[#allocation17 + $0xa8] sm:$0xf]
    %v5139 = vld [vmem:[#allocation17 + $0xac] sm:$0xf]
    %v5140 = vld [vmem:[#allocation17 + $0xb0] sm:$0xf]
    %v5141 = vld [vmem:[#allocation17 + $0xb4] sm:$0xf]
    %v5142 = vld [vmem:[#allocation17 + $0xb8] sm:$0xf]
    %v5143 = vld [vmem:[#allocation17 + $0xbc] sm:$0xf]
    %v5144 = vld [vmem:[#allocation17 + $0xc0] sm:$0xf]
    %v5145 = vld [vmem:[#allocation17 + $0xc4] sm:$0xf]
    %v5146 = vld [vmem:[#allocation17 + $0xc8] sm:$0xf]
    %v5147 = vld [vmem:[#allocation17 + $0xcc] sm:$0xf]
    %v5148 = vld [vmem:[#allocation17 + $0xd0] sm:$0xf]
    %v5149 = vld [vmem:[#allocation17 + $0xd4] sm:$0xf]
    %v5150 = vld [vmem:[#allocation17 + $0xd8] sm:$0xf]
    %v5151 = vld [vmem:[#allocation17 + $0xdc] sm:$0xf]
    %v5152 = vld [vmem:[#allocation17 + $0xe0] sm:$0xf]
    %v5153 = vld [vmem:[#allocation17 + $0xe4] sm:$0xf]
    %v5154 = vld [vmem:[#allocation17 + $0xe8] sm:$0xf]
    %v5155 = vld [vmem:[#allocation17 + $0xec] sm:$0xf]
    %v5156 = vld [vmem:[#allocation17 + $0xf0] sm:$0xf]
    %v5157 = vld [vmem:[#allocation17 + $0xf4] sm:$0xf]
    %v5158 = vld [vmem:[#allocation17 + $0xf8] sm:$0xf]
    %v5159 = vld [vmem:[#allocation17 + $0xfc] sm:$0xf]
    %v5160 = vld [vmem:[#allocation17 + $0x100] sm:$0xf]
    %v5161 = vld [vmem:[#allocation17 + $0x104] sm:$0xf]
    %v5162 = vld [vmem:[#allocation17 + $0x108] sm:$0xf]
    %v5163 = vld [vmem:[#allocation17 + $0x10c] sm:$0xf]
    %v5164 = vld [vmem:[#allocation17 + $0x110] sm:$0xf]
    %v5165 = vld [vmem:[#allocation17 + $0x114] sm:$0xf]
    %v5166 = vld [vmem:[#allocation17 + $0x118] sm:$0xf]
    %v5167 = vld [vmem:[#allocation17 + $0x11c] sm:$0xf]
    %v5168 = vld [vmem:[#allocation17 + $0x120] sm:$0xf]
    %v5169 = vld [vmem:[#allocation17 + $0x124] sm:$0xf]
    %v5170 = vld [vmem:[#allocation17 + $0x128] sm:$0xf]
    %v5171 = vld [vmem:[#allocation17 + $0x12c] sm:$0xf]
    %v5172 = vld [vmem:[#allocation17 + $0x130] sm:$0xf]
    %v5173 = vld [vmem:[#allocation17 + $0x134] sm:$0xf]
    %v5174 = vld [vmem:[#allocation17 + $0x138] sm:$0xf]
    %v5175 = vld [vmem:[#allocation17 + $0x13c] sm:$0xf]
    %v5176 = vld [vmem:[#allocation17 + $0x140] sm:$0xf]
    %v5177 = vld [vmem:[#allocation17 + $0x144] sm:$0xf]
    %v5178 = vld [vmem:[#allocation17 + $0x148] sm:$0xf]
    %v5179 = vld [vmem:[#allocation17 + $0x14c] sm:$0xf]
    %v5180 = vld [vmem:[#allocation17 + $0x150] sm:$0xf]
    %v5181 = vld [vmem:[#allocation17 + $0x154] sm:$0xf]
    %v5182 = vld [vmem:[#allocation17 + $0x158] sm:$0xf]
    %v5183 = vld [vmem:[#allocation17 + $0x15c] sm:$0xf]
    %v5184 = vld [vmem:[#allocation17 + $0x160] sm:$0xf]
    %v5185 = vld [vmem:[#allocation17 + $0x164] sm:$0xf]
    %v5186 = vld [vmem:[#allocation17 + $0x168] sm:$0xf]
    %v5187 = vld [vmem:[#allocation17 + $0x16c] sm:$0xf]
    %v5188 = vld [vmem:[#allocation17 + $0x170] sm:$0xf]
    %v5189 = vld [vmem:[#allocation17 + $0x174] sm:$0xf]
    %v5190 = vld [vmem:[#allocation17 + $0x178] sm:$0xf]
    %v5191 = vld [vmem:[#allocation17 + $0x17c] sm:$0xf]
    %v5192 = vld [vmem:[#allocation17 + $0x180] sm:$0xf]
    %v5193 = vld [vmem:[#allocation17 + $0x184] sm:$0xf]
    %v5194 = vld [vmem:[#allocation17 + $0x188] sm:$0xf]
    %v5195 = vld [vmem:[#allocation17 + $0x18c] sm:$0xf]
    %v5196 = vld [vmem:[#allocation17 + $0x190] sm:$0xf]
    %v5197 = vld [vmem:[#allocation17 + $0x194] sm:$0xf]
    %v5198 = vld [vmem:[#allocation17 + $0x198] sm:$0xf]
    %v5199 = vld [vmem:[#allocation17 + $0x19c] sm:$0xf]
    %v5200 = vld [vmem:[#allocation17 + $0x1a0] sm:$0xf]
    %v5201 = vld [vmem:[#allocation17 + $0x1a4] sm:$0xf]
    %v5202 = vld [vmem:[#allocation17 + $0x1a8] sm:$0xf]
    %v5203 = vld [vmem:[#allocation17 + $0x1ac] sm:$0xf]
    %v5204 = vld [vmem:[#allocation17 + $0x1b0] sm:$0xf]
    %v5205 = vld [vmem:[#allocation17 + $0x1b4] sm:$0xf]
    %v5206 = vld [vmem:[#allocation17 + $0x1b8] sm:$0xf]
    %v5207 = vld [vmem:[#allocation17 + $0x1bc] sm:$0xf]
    %v5208 = vld [vmem:[#allocation17 + $0x1c0] sm:$0xf]
    %v5209 = vld [vmem:[#allocation17 + $0x1c4] sm:$0xf]
    %v5210 = vld [vmem:[#allocation17 + $0x1c8] sm:$0xf]
    %v5211 = vld [vmem:[#allocation17 + $0x1cc] sm:$0xf]
    %v5212 = vld [vmem:[#allocation17 + $0x1d0] sm:$0xf]
    %v5213 = vld [vmem:[#allocation17 + $0x1d4] sm:$0xf]
    %v5214 = vld [vmem:[#allocation17 + $0x1d8] sm:$0xf]
    %v5215 = vld [vmem:[#allocation17 + $0x1dc] sm:$0xf]
    %v5216 = vld [vmem:[#allocation17 + $0x1e0] sm:$0xf]
    %v5217 = vld [vmem:[#allocation17 + $0x1e4] sm:$0xf]
    %v5218 = vld [vmem:[#allocation17 + $0x1e8] sm:$0xf]
    %v5219 = vld [vmem:[#allocation17 + $0x1ec] sm:$0xf]
    %v5220 = vld [vmem:[#allocation17 + $0x1f0] sm:$0xf]
    %v5221 = vld [vmem:[#allocation17 + $0x1f4] sm:$0xf]
    %v5222 = vld [vmem:[#allocation17 + $0x1f8] sm:$0xf]
    %v5223 = vld [vmem:[#allocation17 + $0x1fc] sm:$0xf]
    %v5224 = vld [vmem:[#allocation19] sm:$0x1]
    %v5226 = vlaneseq
    %v5227 = vshrl.u32 %v5226, 7
    %v5228 = vsub.s32 0, %v5227
    %v5229 = vrot.slane %v5224, %v5228
    %v5359 = vunpack.c.l.b16 %v5096
    %v5360 = vunpack.c.l.b16 %v5097
    %v5361 = vunpack.c.l.b16 %v5098
    %v5362 = vunpack.c.l.b16 %v5099
    %v5363 = vunpack.c.l.b16 %v5100
    %v5364 = vunpack.c.l.b16 %v5101
    %v5365 = vunpack.c.l.b16 %v5102
    %v5366 = vunpack.c.l.b16 %v5103
    %v5367 = vunpack.c.l.b16 %v5104
    %v5368 = vunpack.c.l.b16 %v5105
    %v5369 = vunpack.c.l.b16 %v5106
    %v5370 = vunpack.c.l.b16 %v5107
    %v5371 = vunpack.c.l.b16 %v5108
    %v5372 = vunpack.c.l.b16 %v5109
    %v5373 = vunpack.c.l.b16 %v5110
    %v5374 = vunpack.c.l.b16 %v5111
    %v5375 = vunpack.c.l.b16 %v5112
    %v5376 = vunpack.c.l.b16 %v5113
    %v5377 = vunpack.c.l.b16 %v5114
    %v5378 = vunpack.c.l.b16 %v5115
    %v5379 = vunpack.c.l.b16 %v5116
    %v5380 = vunpack.c.l.b16 %v5117
    %v5381 = vunpack.c.l.b16 %v5118
    %v5382 = vunpack.c.l.b16 %v5119
    %v5383 = vunpack.c.l.b16 %v5120
    %v5384 = vunpack.c.l.b16 %v5121
    %v5385 = vunpack.c.l.b16 %v5122
    %v5386 = vunpack.c.l.b16 %v5123
    %v5387 = vunpack.c.l.b16 %v5124
    %v5388 = vunpack.c.l.b16 %v5125
    %v5389 = vunpack.c.l.b16 %v5126
    %v5390 = vunpack.c.l.b16 %v5127
    %v5391 = vunpack.c.l.b16 %v5128
    %v5392 = vunpack.c.l.b16 %v5129
    %v5393 = vunpack.c.l.b16 %v5130
    %v5394 = vunpack.c.l.b16 %v5131
    %v5395 = vunpack.c.l.b16 %v5132
    %v5396 = vunpack.c.l.b16 %v5133
    %v5397 = vunpack.c.l.b16 %v5134
    %v5398 = vunpack.c.l.b16 %v5135
    %v5399 = vunpack.c.l.b16 %v5136
    %v5400 = vunpack.c.l.b16 %v5137
    %v5401 = vunpack.c.l.b16 %v5138
    %v5402 = vunpack.c.l.b16 %v5139
    %v5403 = vunpack.c.l.b16 %v5140
    %v5404 = vunpack.c.l.b16 %v5141
    %v5405 = vunpack.c.l.b16 %v5142
    %v5406 = vunpack.c.l.b16 %v5143
    %v5407 = vunpack.c.l.b16 %v5144
    %v5408 = vunpack.c.l.b16 %v5145
    %v5409 = vunpack.c.l.b16 %v5146
    %v5410 = vunpack.c.l.b16 %v5147
    %v5411 = vunpack.c.l.b16 %v5148
    %v5412 = vunpack.c.l.b16 %v5149
    %v5413 = vunpack.c.l.b16 %v5150
    %v5414 = vunpack.c.l.b16 %v5151
    %v5415 = vunpack.c.l.b16 %v5152
    %v5416 = vunpack.c.l.b16 %v5153
    %v5417 = vunpack.c.l.b16 %v5154
    %v5418 = vunpack.c.l.b16 %v5155
    %v5419 = vunpack.c.l.b16 %v5156
    %v5420 = vunpack.c.l.b16 %v5157
    %v5421 = vunpack.c.l.b16 %v5158
    %v5422 = vunpack.c.l.b16 %v5159
    %v5423 = vunpack.c.l.b16 %v5160
    %v5424 = vunpack.c.l.b16 %v5161
    %v5425 = vunpack.c.l.b16 %v5162
    %v5426 = vunpack.c.l.b16 %v5163
    %v5427 = vunpack.c.l.b16 %v5164
    %v5428 = vunpack.c.l.b16 %v5165
    %v5429 = vunpack.c.l.b16 %v5166
    %v5430 = vunpack.c.l.b16 %v5167
    %v5431 = vunpack.c.l.b16 %v5168
    %v5432 = vunpack.c.l.b16 %v5169
    %v5433 = vunpack.c.l.b16 %v5170
    %v5434 = vunpack.c.l.b16 %v5171
    %v5435 = vunpack.c.l.b16 %v5172
    %v5436 = vunpack.c.l.b16 %v5173
    %v5437 = vunpack.c.l.b16 %v5174
    %v5438 = vunpack.c.l.b16 %v5175
    %v5439 = vunpack.c.l.b16 %v5176
    %v5440 = vunpack.c.l.b16 %v5177
    %v5441 = vunpack.c.l.b16 %v5178
    %v5442 = vunpack.c.l.b16 %v5179
    %v5443 = vunpack.c.l.b16 %v5180
    %v5444 = vunpack.c.l.b16 %v5181
    %v5445 = vunpack.c.l.b16 %v5182
    %v5446 = vunpack.c.l.b16 %v5183
    %v5447 = vunpack.c.l.b16 %v5184
    %v5448 = vunpack.c.l.b16 %v5185
    %v5449 = vunpack.c.l.b16 %v5186
    %v5450 = vunpack.c.l.b16 %v5187
    %v5451 = vunpack.c.l.b16 %v5188
    %v5452 = vunpack.c.l.b16 %v5189
    %v5453 = vunpack.c.l.b16 %v5190
    %v5454 = vunpack.c.l.b16 %v5191
    %v5455 = vunpack.c.l.b16 %v5192
    %v5456 = vunpack.c.l.b16 %v5193
    %v5457 = vunpack.c.l.b16 %v5194
    %v5458 = vunpack.c.l.b16 %v5195
    %v5459 = vunpack.c.l.b16 %v5196
    %v5460 = vunpack.c.l.b16 %v5197
    %v5461 = vunpack.c.l.b16 %v5198
    %v5462 = vunpack.c.l.b16 %v5199
    %v5463 = vunpack.c.l.b16 %v5200
    %v5464 = vunpack.c.l.b16 %v5201
    %v5465 = vunpack.c.l.b16 %v5202
    %v5466 = vunpack.c.l.b16 %v5203
    %v5467 = vunpack.c.l.b16 %v5204
    %v5468 = vunpack.c.l.b16 %v5205
    %v5469 = vunpack.c.l.b16 %v5206
    %v5470 = vunpack.c.l.b16 %v5207
    %v5471 = vunpack.c.l.b16 %v5208
    %v5472 = vunpack.c.l.b16 %v5209
    %v5473 = vunpack.c.l.b16 %v5210
    %v5474 = vunpack.c.l.b16 %v5211
    %v5475 = vunpack.c.l.b16 %v5212
    %v5476 = vunpack.c.l.b16 %v5213
    %v5477 = vunpack.c.l.b16 %v5214
    %v5478 = vunpack.c.l.b16 %v5215
    %v5479 = vunpack.c.l.b16 %v5216
    %v5480 = vunpack.c.l.b16 %v5217
    %v5481 = vunpack.c.l.b16 %v5218
    %v5482 = vunpack.c.l.b16 %v5219
    %v5483 = vunpack.c.l.b16 %v5220
    %v5484 = vunpack.c.l.b16 %v5221
    %v5485 = vunpack.c.l.b16 %v5222
    %v5486 = vunpack.c.l.b16 %v5223
    %v5487 = vpack.c.b16 %v5360, %v5359
    %v5488 = vpack.c.b16 %v5362, %v5361
    %v5489 = vpack.c.b16 %v5364, %v5363
    %v5490 = vpack.c.b16 %v5366, %v5365
    %v5491 = vpack.c.b16 %v5368, %v5367
    %v5492 = vpack.c.b16 %v5370, %v5369
    %v5493 = vpack.c.b16 %v5372, %v5371
    %v5494 = vpack.c.b16 %v5374, %v5373
    %v5495 = vpack.c.b16 %v5376, %v5375
    %v5496 = vpack.c.b16 %v5378, %v5377
    %v5497 = vpack.c.b16 %v5380, %v5379
    %v5498 = vpack.c.b16 %v5382, %v5381
    %v5499 = vpack.c.b16 %v5384, %v5383
    %v5500 = vpack.c.b16 %v5386, %v5385
    %v5501 = vpack.c.b16 %v5388, %v5387
    %v5502 = vpack.c.b16 %v5390, %v5389
    %v5503 = vpack.c.b16 %v5392, %v5391
    %v5504 = vpack.c.b16 %v5394, %v5393
    %v5505 = vpack.c.b16 %v5396, %v5395
    %v5506 = vpack.c.b16 %v5398, %v5397
    %v5507 = vpack.c.b16 %v5400, %v5399
    %v5508 = vpack.c.b16 %v5402, %v5401
    %v5509 = vpack.c.b16 %v5404, %v5403
    %v5510 = vpack.c.b16 %v5406, %v5405
    %v5511 = vpack.c.b16 %v5408, %v5407
    %v5512 = vpack.c.b16 %v5410, %v5409
    %v5513 = vpack.c.b16 %v5412, %v5411
    %v5514 = vpack.c.b16 %v5414, %v5413
    %v5515 = vpack.c.b16 %v5416, %v5415
    %v5516 = vpack.c.b16 %v5418, %v5417
    %v5517 = vpack.c.b16 %v5420, %v5419
    %v5518 = vpack.c.b16 %v5422, %v5421
    %v5519 = vpack.c.b16 %v5424, %v5423
    %v5520 = vpack.c.b16 %v5426, %v5425
    %v5521 = vpack.c.b16 %v5428, %v5427
    %v5522 = vpack.c.b16 %v5430, %v5429
    %v5523 = vpack.c.b16 %v5432, %v5431
    %v5524 = vpack.c.b16 %v5434, %v5433
    %v5525 = vpack.c.b16 %v5436, %v5435
    %v5526 = vpack.c.b16 %v5438, %v5437
    %v5527 = vpack.c.b16 %v5440, %v5439
    %v5528 = vpack.c.b16 %v5442, %v5441
    %v5529 = vpack.c.b16 %v5444, %v5443
    %v5530 = vpack.c.b16 %v5446, %v5445
    %v5531 = vpack.c.b16 %v5448, %v5447
    %v5532 = vpack.c.b16 %v5450, %v5449
    %v5533 = vpack.c.b16 %v5452, %v5451
    %v5534 = vpack.c.b16 %v5454, %v5453
    %v5535 = vpack.c.b16 %v5456, %v5455
    %v5536 = vpack.c.b16 %v5458, %v5457
    %v5537 = vpack.c.b16 %v5460, %v5459
    %v5538 = vpack.c.b16 %v5462, %v5461
    %v5539 = vpack.c.b16 %v5464, %v5463
    %v5540 = vpack.c.b16 %v5466, %v5465
    %v5541 = vpack.c.b16 %v5468, %v5467
    %v5542 = vpack.c.b16 %v5470, %v5469
    %v5543 = vpack.c.b16 %v5472, %v5471
    %v5544 = vpack.c.b16 %v5474, %v5473
    %v5545 = vpack.c.b16 %v5476, %v5475
    %v5546 = vpack.c.b16 %v5478, %v5477
    %v5547 = vpack.c.b16 %v5480, %v5479
    %v5548 = vpack.c.b16 %v5482, %v5481
    %v5549 = vpack.c.b16 %v5484, %v5483
    %v5550 = vpack.c.b16 %v5486, %v5485
    %5615 = vmatprep.subr.bf16.mxu0 0
    %5616 = vmatpush1.bf16.msra.mxu0 %v5487
    %5617 = vmatprep.subr.bf16.mxu0 0
    %5618 = vmatpush1.bf16.msra.mxu0 %v5488
    %5619 = vmatprep.subr.bf16.mxu0 0
    %5620 = vmatpush1.bf16.msra.mxu0 %v5489
    %5621 = vmatprep.subr.bf16.mxu0 0
    %5622 = vmatpush1.bf16.msra.mxu0 %v5490
    %5623 = vmatprep.subr.bf16.mxu0 0
    %5624 = vmatpush1.bf16.msra.mxu0 %v5491
    %5625 = vmatprep.subr.bf16.mxu0 0
    %5626 = vmatpush1.bf16.msra.mxu0 %v5492
    %5627 = vmatprep.subr.bf16.mxu0 0
    %5628 = vmatpush1.bf16.msra.mxu0 %v5493
    %5629 = vmatprep.subr.bf16.mxu0 0
    %5630 = vmatpush1.bf16.msra.mxu0 %v5494
    %5631 = vmatprep.subr.bf16.mxu0 0
    %5632 = vmatpush1.bf16.msra.mxu0 %v5495
    %5633 = vmatprep.subr.bf16.mxu0 0
    %5634 = vmatpush1.bf16.msra.mxu0 %v5496
    %5635 = vmatprep.subr.bf16.mxu0 0
    %5636 = vmatpush1.bf16.msra.mxu0 %v5497
    %5637 = vmatprep.subr.bf16.mxu0 0
    %5638 = vmatpush1.bf16.msra.mxu0 %v5498
    %5639 = vmatprep.subr.bf16.mxu0 0
    %5640 = vmatpush1.bf16.msra.mxu0 %v5499
    %5641 = vmatprep.subr.bf16.mxu0 0
    %5642 = vmatpush1.bf16.msra.mxu0 %v5500
    %5643 = vmatprep.subr.bf16.mxu0 0
    %5644 = vmatpush1.bf16.msra.mxu0 %v5501
    %5645 = vmatprep.subr.bf16.mxu0 0
    %5646 = vmatpush1.bf16.msra.mxu0 %v5502
    %5647 = vmatprep.mubr.bf16.mxu0 %v5089
    %5648 = vmatmul.mubr.bf16.gmra.mrb[0].mxu0 %v5088
    %v5649 = vpop.f32.mrb[0].mxu0
    %v5650 = vadd.f32 %v5229, %v5649
    %v5651 = vpop.f32.mrb[0].mxu0
    %v5652 = vpop.f32.mrb[0].mxu0
    %v5653 = vpop.f32.mrb[0].mxu0
    %5654 = vdwg.mxu0
    %5655 = vmatprep.subr.bf16.mxu0 0
    %5656 = vmatpush1.bf16.msra.mxu0 %v5503
    %5657 = vmatprep.subr.bf16.mxu0 0
    %5658 = vmatpush1.bf16.msra.mxu0 %v5504
    %5659 = vmatprep.subr.bf16.mxu0 0
    %5660 = vmatpush1.bf16.msra.mxu0 %v5505
    %5661 = vmatprep.subr.bf16.mxu0 0
    %5662 = vmatpush1.bf16.msra.mxu0 %v5506
    %5663 = vmatprep.subr.bf16.mxu0 0
    %5664 = vmatpush1.bf16.msra.mxu0 %v5507
    %5665 = vmatprep.subr.bf16.mxu0 0
    %5666 = vmatpush1.bf16.msra.mxu0 %v5508
    %5667 = vmatprep.subr.bf16.mxu0 0
    %5668 = vmatpush1.bf16.msra.mxu0 %v5509
    %5669 = vmatprep.subr.bf16.mxu0 0
    %5670 = vmatpush1.bf16.msra.mxu0 %v5510
    %5671 = vmatprep.subr.bf16.mxu0 0
    %5672 = vmatpush1.bf16.msra.mxu0 %v5511
    %5673 = vmatprep.subr.bf16.mxu0 0
    %5674 = vmatpush1.bf16.msra.mxu0 %v5512
    %5675 = vmatprep.subr.bf16.mxu0 0
    %5676 = vmatpush1.bf16.msra.mxu0 %v5513
    %5677 = vmatprep.subr.bf16.mxu0 0
    %5678 = vmatpush1.bf16.msra.mxu0 %v5514
    %5679 = vmatprep.subr.bf16.mxu0 0
    %5680 = vmatpush1.bf16.msra.mxu0 %v5515
    %5681 = vmatprep.subr.bf16.mxu0 0
    %5682 = vmatpush1.bf16.msra.mxu0 %v5516
    %5683 = vmatprep.subr.bf16.mxu0 0
    %5684 = vmatpush1.bf16.msra.mxu0 %v5517
    %5685 = vmatprep.subr.bf16.mxu0 0
    %5686 = vmatpush1.bf16.msra.mxu0 %v5518
    %5687 = vmatprep.mubr.bf16.mxu0 %v5091
    %5688 = vmatmul.mubr.bf16.gmra.mrb[0].mxu0 %v5090
    %v5689 = vpop.f32.mrb[0].mxu0
    %v5690 = vadd.f32 %v5650, %v5689
    %v5691 = vpop.f32.mrb[0].mxu0
    %v5692 = vpop.f32.mrb[0].mxu0
    %v5693 = vpop.f32.mrb[0].mxu0
    %5694 = vdwg.mxu0
    %5695 = vmatprep.subr.bf16.mxu0 0
    %5696 = vmatpush1.bf16.msra.mxu0 %v5519
    %5697 = vmatprep.subr.bf16.mxu0 0
    %5698 = vmatpush1.bf16.msra.mxu0 %v5520
    %5699 = vmatprep.subr.bf16.mxu0 0
    %5700 = vmatpush1.bf16.msra.mxu0 %v5521
    %5701 = vmatprep.subr.bf16.mxu0 0
    %5702 = vmatpush1.bf16.msra.mxu0 %v5522
    %5703 = vmatprep.subr.bf16.mxu0 0
    %5704 = vmatpush1.bf16.msra.mxu0 %v5523
    %5705 = vmatprep.subr.bf16.mxu0 0
    %5706 = vmatpush1.bf16.msra.mxu0 %v5524
    %5707 = vmatprep.subr.bf16.mxu0 0
    %5708 = vmatpush1.bf16.msra.mxu0 %v5525
    %5709 = vmatprep.subr.bf16.mxu0 0
    %5710 = vmatpush1.bf16.msra.mxu0 %v5526
    %5711 = vmatprep.subr.bf16.mxu0 0
    %5712 = vmatpush1.bf16.msra.mxu0 %v5527
    %5713 = vmatprep.subr.bf16.mxu0 0
    %5714 = vmatpush1.bf16.msra.mxu0 %v5528
    %5715 = vmatprep.subr.bf16.mxu0 0
    %5716 = vmatpush1.bf16.msra.mxu0 %v5529
    %5717 = vmatprep.subr.bf16.mxu0 0
    %5718 = vmatpush1.bf16.msra.mxu0 %v5530
    %5719 = vmatprep.subr.bf16.mxu0 0
    %5720 = vmatpush1.bf16.msra.mxu0 %v5531
    %5721 = vmatprep.subr.bf16.mxu0 0
    %5722 = vmatpush1.bf16.msra.mxu0 %v5532
    %5723 = vmatprep.subr.bf16.mxu0 0
    %5724 = vmatpush1.bf16.msra.mxu0 %v5533
    %5725 = vmatprep.subr.bf16.mxu0 0
    %5726 = vmatpush1.bf16.msra.mxu0 %v5534
    %5727 = vmatprep.mubr.bf16.mxu0 %v5093
    %5728 = vmatmul.mubr.bf16.gmra.mrb[0].mxu0 %v5092
    %v5729 = vpop.f32.mrb[0].mxu0
    %v5730 = vadd.f32 %v5690, %v5729
    %v5731 = vpop.f32.mrb[0].mxu0
    %v5732 = vpop.f32.mrb[0].mxu0
    %v5733 = vpop.f32.mrb[0].mxu0
    %5734 = vdwg.mxu0
    %5735 = vmatprep.subr.bf16.mxu0 0
    %5736 = vmatpush1.bf16.msra.mxu0 %v5535
    %5737 = vmatprep.subr.bf16.mxu0 0
    %5738 = vmatpush1.bf16.msra.mxu0 %v5536
    %5739 = vmatprep.subr.bf16.mxu0 0
    %5740 = vmatpush1.bf16.msra.mxu0 %v5537
    %5741 = vmatprep.subr.bf16.mxu0 0
    %5742 = vmatpush1.bf16.msra.mxu0 %v5538
    %5743 = vmatprep.subr.bf16.mxu0 0
    %5744 = vmatpush1.bf16.msra.mxu0 %v5539
    %5745 = vmatprep.subr.bf16.mxu0 0
    %5746 = vmatpush1.bf16.msra.mxu0 %v5540
    %5747 = vmatprep.subr.bf16.mxu0 0
    %5748 = vmatpush1.bf16.msra.mxu0 %v5541
    %5749 = vmatprep.subr.bf16.mxu0 0
    %5750 = vmatpush1.bf16.msra.mxu0 %v5542
    %5751 = vmatprep.subr.bf16.mxu0 0
    %5752 = vmatpush1.bf16.msra.mxu0 %v5543
    %5753 = vmatprep.subr.bf16.mxu0 0
    %5754 = vmatpush1.bf16.msra.mxu0 %v5544
    %5755 = vmatprep.subr.bf16.mxu0 0
    %5756 = vmatpush1.bf16.msra.mxu0 %v5545
    %5757 = vmatprep.subr.bf16.mxu0 0
    %5758 = vmatpush1.bf16.msra.mxu0 %v5546
    %5759 = vmatprep.subr.bf16.mxu0 0
    %5760 = vmatpush1.bf16.msra.mxu0 %v5547
    %5761 = vmatprep.subr.bf16.mxu0 0
    %5762 = vmatpush1.bf16.msra.mxu0 %v5548
    %5763 = vmatprep.subr.bf16.mxu0 0
    %5764 = vmatpush1.bf16.msra.mxu0 %v5549
    %5765 = vmatprep.subr.bf16.mxu0 0
    %5766 = vmatpush1.bf16.msra.mxu0 %v5550
    %5767 = vmatprep.mubr.bf16.mxu0 %v5095
    %5768 = vmatmul.mubr.bf16.gmra.mrb[0].mxu0 %v5094
    %v5769 = vpop.f32.mrb[0].mxu0
    %v5770 = vadd.f32 %v5730, %v5769
    %v5771 = vpop.f32.mrb[0].mxu0
    %v5772 = vpop.f32.mrb[0].mxu0
    %v5773 = vpop.f32.mrb[0].mxu0
    %5774 = vdwg.mxu0
    %v5775 = vtanh.pop %v5770
    %5776 = vst [vmem:[#allocation20] sm:$0xff] %v5775
    // Predicated region
    $region90: #{tpu_custom_call.1} parent=1 // pred_check
      _
    $region91: #{tpu_custom_call.1} parent=1 // pred_check_branch
      %5778 = sbr.rel (0) target = $region93
    $region92: #{tpu_custom_call.1} parent=1 // pred_region
      %s5780 = ssub.s32 128, 128
      %5781 = vsyncadd [#allocation4], %s5780
      %s5783 = sshll.u32 [#allocation20], 4
      %s5784 = int_to_ptr.vmem [resolvable:$true] %s5783
      %5786 = dma.vmem_to_hbm [thread:$0]  %s5784, 128, %s11, [#allocation4]
    $region93: #{tpu_custom_call.1} parent=1 // pred_fallthru
      _
    // Predicated region
    $region94: #{tpu_custom_call.1} parent=1 // pred_check
      _
    $region95: #{tpu_custom_call.1} parent=1 // pred_check_branch
      %5788 = sbr.rel (0) target = $region97
    $region96: #{tpu_custom_call.1} parent=1 // pred_region
      %5789 = dma.done [#allocation4], 128
    $region97: #{tpu_custom_call.1} parent=1 // pred_fallthru
      _
    %5790 = vsyncpa [#allocation3], 1
    %5791 = vsyncpa [#allocation6], 1
    %5792 = vsyncpa [#allocation9], 1
    %5793 = vsyncpa [#allocation12], 1
    %5794 = vsyncpa [#allocation15], 1
    %5795 = vsyncpa [#allocation18], 1
    %5796 = vsyncpa [#allocation4], 1

</llo_original>
